<compile_context>
chip_gen: v7x
topology: tpu7x:2x2x1
jax: 0.10.0
libtpu: 0.0.40
codegen_flags: <defaults>
</compile_context>

<pallas_src>
import jax
import jax.numpy as jnp
from jax import lax
from jax.experimental import pallas as pl
from jax.experimental.pallas import tpu as pltpu


def _round_up(x, m):
    return ((x + m - 1) // m) * m


def _pick_chunk(T, max_chunk=64):
    """Timesteps processed per grid step."""
    if T <= max_chunk:
        return T
    best = 1
    for c in range(max_chunk, 0, -1):
        if T % c == 0:
            best = c
            break
    if best >= max_chunk // 2:
        return best          # exact divisor, no masking needed
    return max_chunk         # remainder chunk handled by in-kernel masking


def _fuse_gru_layer(wihT, whhT, bih, bhh, H, Hp, d_lp):
    """Padded, gate-blocked weights: W_ih (d_lp,3Hp), b_i (1,3Hp), W_hh (Hp,3Hp), b_hn (1,Hp)."""
    def pad_w(w, rows_to):   # (rows, H) -> (rows_to, Hp)
        return jnp.pad(w, ((0, rows_to - w.shape[0]), (0, Hp - H)))

    def pad_b(b):            # (1, H) -> (1, Hp)
        return jnp.pad(b, ((0, 0), (0, Hp - H)))

    wir, wiz, win = wihT[:, :H], wihT[:, H:2 * H], wihT[:, 2 * H:]
    whr, whz, whn = whhT[:, :H], whhT[:, H:2 * H], whhT[:, 2 * H:]

    w_ih = jnp.concatenate(
        [pad_w(wir, d_lp), pad_w(wiz, d_lp), pad_w(win, d_lp)], axis=1)
    w_hh = jnp.concatenate(
        [pad_w(whr, Hp), pad_w(whz, Hp), pad_w(whn, Hp)], axis=1)
    b_i = jnp.concatenate(
        [pad_b(bih[:, :H] + bhh[:, :H]),           # bir + bhr (pre-summed)
         pad_b(bih[:, H:2 * H] + bhh[:, H:2 * H]),  # biz + bhz (pre-summed)
         pad_b(bih[:, 2 * H:])], axis=1)            # bin
    b_hn = pad_b(bhh[:, 2 * H:])                    # bhn (stays with gh_n)
    return w_ih, b_i, w_hh, b_hn


def make_gru_kernel(num_layers, Bp, Hp, Dp, chunk, seq_len):
    L = num_layers
    H3 = 3 * Hp
    needs_mask = (seq_len % chunk) != 0
    unroll = max(1, min(chunk, 8))

    def kernel(*args):
        x_ref = args[0]                       # (chunk, Bp, Dp)  time-major block
        w_refs = args[1:1 + 4 * L]            # per layer: W_ih, b_i, W_hh, b_hn
        fcw_ref = args[1 + 4 * L]             # (Hp, Op)
        fcb_ref = args[2 + 4 * L]             # (1, Op)
        out_ref = args[3 + 4 * L]             # (Bp, Op)
        h_ref = args[4 + 4 * L]               # VMEM scratch (L, Bp, Hp)
        seq_ref = args[5 + 4 * L]             # VMEM scratch (chunk, Bp, Hp)
        gi_ref = args[6 + 4 * L]              # VMEM scratch (chunk, Bp, 3Hp)

        pid = pl.program_id(0)

        @pl.when(pid == 0)
        def _():
            h_ref[...] = jnp.zeros_like(h_ref)

        t0 = pid * chunk                      # global timestep offset of chunk

        for l in range(L):
            wih_ref = w_refs[4 * l]
            bi_ref = w_refs[4 * l + 1]
            whh_ref = w_refs[4 * l + 2]
            bhn_ref = w_refs[4 * l + 3]

            # Batched input projection for the whole chunk: one MXU call per
            # layer per chunk (time folded into M).
            if l == 0:
                inp = x_ref[...].reshape(chunk * Bp, Dp)
            else:
                inp = seq_ref[...].reshape(chunk * Bp, Hp)
            gi_ref[...] = (
                jnp.dot(inp, wih_ref[...], preferred_element_type=jnp.float32)
                + bi_ref[...]
            ).reshape(chunk, Bp, H3)

            # Hoisted (1, Hp) -> (Bp, Hp) n-gate bias broadcast (once per layer).
            bhn = jnp.broadcast_to(bhn_ref[...], (Bp, Hp))

            last_layer = (l == L - 1)

            def step(tt, h):
                # W_hh streamed from VMEM inside the loop on purpose: holding a
                # (Hp, 3Hp) value across the loop would blow the 64-vreg budget.
                gi = gi_ref[tt]                               # leading-dim pick
                gh = jnp.dot(h, whh_ref[...],
                             preferred_element_type=jnp.float32)
                r = jax.nn.sigmoid(gi[:, 0:Hp] + gh[:, 0:Hp])
                z = jax.nn.sigmoid(gi[:, Hp:2 * Hp] + gh[:, Hp:2 * Hp])
                n = jnp.tanh(gi[:, 2 * Hp:H3] + r * (gh[:, 2 * Hp:H3] + bhn))
                h_new = (1.0 - z) * n + z * h
                if needs_mask:
                    h_new = jnp.where(t0 + tt < seq_len, h_new, h)
                if not last_layer:
                    seq_ref[tt] = h_new        # feeds next layer's batched proj
                return h_new

            # h carried in vregs across the chunk; single scratch flush per layer.
            h_last = lax.fori_loop(0, chunk, step, h_ref[l], unroll=unroll)
            h_ref[l] = h_last

        # fc only on the last chunk (lane-dense (Bp, Op) store).
        @pl.when(pid == pl.num_programs(0) - 1)
        def _():
            out_ref[...] = (
                jnp.dot(h_ref[L - 1], fcw_ref[...],
                        preferred_element_type=jnp.float32) + fcb_ref[...]
            )

    return kernel


def gru_model_forward(x, layer_params, fc_w, fc_b, hidden_size, output_size):
    """x: (B, T, input_size) batch_first, float32. Returns (B, output_size)."""
    B, T, D_in = x.shape
    L = len(layer_params)
    H = hidden_size

    Bp = _round_up(B, 8)
    Hp = _round_up(H, 128)
    Dp = _round_up(D_in, 128)
    Op = _round_up(output_size, 128)

    chunk = _pick_chunk(T)
    num_chunks = -(-T // chunk)
    Tp = chunk * num_chunks

    # Time-major, zero-padded: (Tp, Bp, Dp) so per-chunk / per-step picks are
    # leading-axis (free) and the last two dims are (sublane, lane) aligned.
    x_p = jnp.transpose(x.astype(jnp.float32), (1, 0, 2))
    x_p = jnp.pad(x_p, ((0, Tp - T), (0, Bp - B), (0, Dp - D_in)))

    fused = []
    for l, (wihT, whhT, bih, bhh) in enumerate(layer_params):
        d_lp = Dp if l == 0 else Hp
        fused.append(_fuse_gru_layer(wihT, whhT, bih, bhh, H, Hp, d_lp))

    fcw_p = jnp.pad(fc_w, ((0, Hp - H), (0, Op - output_size)))
    fcb_p = jnp.pad(fc_b, ((0, 0), (0, Op - output_size)))

    inputs = [x_p]
    in_specs = [pl.BlockSpec((chunk, Bp, Dp), lambda c: (c, 0, 0))]
    for arrs in fused:
        for a in arrs:
            inputs.append(a)
            in_specs.append(pl.BlockSpec(a.shape, lambda c: (0, 0)))
    inputs += [fcw_p, fcb_p]
    in_specs += [pl.BlockSpec(fcw_p.shape, lambda c: (0, 0)),
                 pl.BlockSpec(fcb_p.shape, lambda c: (0, 0))]

    kernel = make_gru_kernel(L, Bp, Hp, Dp, chunk, seq_len=T)

    out_p = pl.pallas_call(
        kernel,
        out_shape=jax.ShapeDtypeStruct((Bp, Op), jnp.float32),
        grid_spec=pltpu.PrefetchScalarGridSpec(
            num_scalar_prefetch=0,
            grid=(num_chunks,),
            in_specs=in_specs,
            out_specs=pl.BlockSpec((Bp, Op), lambda c: (0, 0)),
            scratch_shapes=[
                pltpu.VMEM((L, Bp, Hp), jnp.float32),        # carried hidden
                pltpu.VMEM((chunk, Bp, Hp), jnp.float32),    # layer outputs/chunk
                pltpu.VMEM((chunk, Bp, 3 * Hp), jnp.float32),  # batched gi/chunk
            ],
        ),
        compiler_params=pltpu.CompilerParams(
            dimension_semantics=("arbitrary",)),
    )(*inputs)

    return out_p[:B, :output_size]


def gru_model_ref(x, layer_params, fc_w, fc_b, hidden_size):
    """Plain-JAX reference identical to torch semantics."""
    B, T, _ = x.shape
    H = hidden_size
    L = len(layer_params)
    h = jnp.zeros((L, B, H), jnp.float32)
    for t in range(T):
        inp = x[:, t, :]
        new_h = []
        for l, (wihT, whhT, bih, bhh) in enumerate(layer_params):
            gi = inp @ wihT + bih
            gh = h[l] @ whhT + bhh
            r = jax.nn.sigmoid(gi[:, :H] + gh[:, :H])
            z = jax.nn.sigmoid(gi[:, H:2 * H] + gh[:, H:2 * H])
            n = jnp.tanh(gi[:, 2 * H:] + r * gh[:, 2 * H:])
            hn = (1.0 - z) * n + z * h[l]
            new_h.append(hn)
            inp = hn
        h = jnp.stack(new_h)
    return h[-1] @ fc_w + fc_b


def init_params(key, input_size, hidden_size, num_layers, output_size):
    """Deterministic init matching torch shapes (weights stored pre-transposed)."""
    H = hidden_size
    k = 1.0 / jnp.sqrt(jnp.float32(H))
    layer_params = []
    for l in range(num_layers):
        d_l = input_size if l == 0 else hidden_size
        key, k1, k2, k3, k4 = jax.random.split(key, 5)
        wihT = jax.random.uniform(k1, (d_l, 3 * H), jnp.float32, -k, k)   # W_ih^T
        whhT = jax.random.uniform(k2, (H, 3 * H), jnp.float32, -k, k)     # W_hh^T
        bih = jax.random.uniform(k3, (1, 3 * H), jnp.float32, -k, k)
        bhh = jax.random.uniform(k4, (1, 3 * H), jnp.float32, -k, k)
        layer_params.append((wihT, whhT, bih, bhh))
    key, k5, k6 = jax.random.split(key, 3)
    kf = 1.0 / jnp.sqrt(jnp.float32(H))
    fc_w = jax.random.uniform(k5, (H, output_size), jnp.float32, -kf, kf)  # W_fc^T
    fc_b = jax.random.uniform(k6, (1, output_size), jnp.float32, -kf, kf)
    return layer_params, fc_w, fc_b


if __name__ == "__main__":
    B, T = 2, 8
    input_size, hidden_size, num_layers, output_size = 16, 32, 2, 4

    key = jax.random.PRNGKey(0)
    key, kx = jax.random.split(key)
    x = jax.random.normal(kx, (B, T, input_size), jnp.float32)

    layer_params, fc_w, fc_b = init_params(
        key, input_size, hidden_size, num_layers, output_size)

    out = gru_model_forward(x, layer_params, fc_w, fc_b, hidden_size, output_size)
    out = jax.block_until_ready(out)

    ref = gru_model_ref(x, layer_params, fc_w, fc_b, hidden_size)
    assert out.shape == (B, output_size)
    assert jnp.allclose(out, ref, atol=1e-3, rtol=1e-3), (out, ref)

    print("KERNEL_OK")
</pallas_src>

<mosaic_0001>
module attributes {stable_mosaic.version = 11 : i64} {
  func.func @kernel(%arg0: i32, %arg1: memref<8x8x128xf32, #tpu.memory_space<vmem>>, %arg2: memref<128x384xf32, #tpu.memory_space<vmem>>, %arg3: memref<1x384xf32, #tpu.memory_space<vmem>>, %arg4: memref<128x384xf32, #tpu.memory_space<vmem>>, %arg5: memref<1x128xf32, #tpu.memory_space<vmem>>, %arg6: memref<128x384xf32, #tpu.memory_space<vmem>>, %arg7: memref<1x384xf32, #tpu.memory_space<vmem>>, %arg8: memref<128x384xf32, #tpu.memory_space<vmem>>, %arg9: memref<1x128xf32, #tpu.memory_space<vmem>>, %arg10: memref<128x128xf32, #tpu.memory_space<vmem>>, %arg11: memref<1x128xf32, #tpu.memory_space<vmem>>, %arg12: memref<8x128xf32, #tpu.memory_space<vmem>>, %arg13: memref<2x8x128xf32, #tpu.memory_space<vmem>>, %arg14: memref<8x8x128xf32, #tpu.memory_space<vmem>>, %arg15: memref<8x8x384xf32, #tpu.memory_space<vmem>>) attributes {dimension_semantics = [#tpu.dimension_semantics<arbitrary>], iteration_bounds = array<i64: 1>, scalar_prefetch = 0 : i64, scratch_operands = 3 : i64, tpu.core_type = #tpu.core_type<tc>, window_params = [{transform_indices = @transform_0, window_bounds = array<i64: 8, 8, 128>}, {pipeline_mode = #tpu.pipeline_mode<synchronous>, transform_indices = @transform_1, window_bounds = array<i64: 128, 384>}, {pipeline_mode = #tpu.pipeline_mode<synchronous>, transform_indices = @transform_2, window_bounds = array<i64: 1, 384>}, {pipeline_mode = #tpu.pipeline_mode<synchronous>, transform_indices = @transform_3, window_bounds = array<i64: 128, 384>}, {pipeline_mode = #tpu.pipeline_mode<synchronous>, transform_indices = @transform_4, window_bounds = array<i64: 1, 128>}, {pipeline_mode = #tpu.pipeline_mode<synchronous>, transform_indices = @transform_5, window_bounds = array<i64: 128, 384>}, {pipeline_mode = #tpu.pipeline_mode<synchronous>, transform_indices = @transform_6, window_bounds = array<i64: 1, 384>}, {pipeline_mode = #tpu.pipeline_mode<synchronous>, transform_indices = @transform_7, window_bounds = array<i64: 128, 384>}, {pipeline_mode = #tpu.pipeline_mode<synchronous>, transform_indices = @transform_8, window_bounds = array<i64: 1, 128>}, {pipeline_mode = #tpu.pipeline_mode<synchronous>, transform_indices = @transform_9, window_bounds = array<i64: 128, 128>}, {pipeline_mode = #tpu.pipeline_mode<synchronous>, transform_indices = @transform_10, window_bounds = array<i64: 1, 128>}, {pipeline_mode = #tpu.pipeline_mode<synchronous>, transform_indices = @transform_11, window_bounds = array<i64: 8, 128>}]} {
    %c0_i32 = arith.constant 0 : i32
    %0 = arith.cmpi eq, %arg0, %c0_i32 : i32
    %1 = arith.extui %0 : i1 to i32
    %c0_i32_0 = arith.constant 0 : i32
    %2 = arith.cmpi ne, %1, %c0_i32_0 : i32
    scf.if %2 {
      %cst_192 = arith.constant 0.000000e+00 : f32
      %584 = vector.broadcast %cst_192 : f32 to vector<2x8x128xf32>
      %c0_193 = arith.constant 0 : index
      %c0_194 = arith.constant 0 : index
      %c0_195 = arith.constant 0 : index
      %585 = vector.load %arg13[%c0_193, %c0_194, %c0_195] : memref<2x8x128xf32, #tpu.memory_space<vmem>>, vector<2x8x128xf32>
      tpu.vector_store %arg13[%c0_193, %c0_194, %c0_195], %584 {strides = array<i32>} : memref<2x8x128xf32, #tpu.memory_space<vmem>>, vector<2x8x128xf32>,
    } else {
    }
    %c0 = arith.constant 0 : index
    %c0_1 = arith.constant 0 : index
    %c0_2 = arith.constant 0 : index
    %3 = vector.load %arg1[%c0, %c0_1, %c0_2] : memref<8x8x128xf32, #tpu.memory_space<vmem>>, vector<8x8x128xf32>
    %4 = vector.shape_cast %3 : vector<8x8x128xf32> to vector<64x128xf32>
    %c0_3 = arith.constant 0 : index
    %c0_4 = arith.constant 0 : index
    %5 = vector.load %arg2[%c0_3, %c0_4] : memref<128x384xf32, #tpu.memory_space<vmem>>, vector<128x384xf32>
    %cst = arith.constant dense<0.000000e+00> : vector<64x384xf32>
    %6 = tpu.matmul %4, %5, %cst {dimension_numbers = #tpu.dot_dimension_numbers<[1], [0], [0], [1], [0, 0, 1, 1], [], []>} : vector<64x128xf32>, vector<128x384xf32>, vector<64x384xf32> -> vector<64x384xf32>
    %c0_5 = arith.constant 0 : index
    %c0_6 = arith.constant 0 : index
    %7 = vector.load %arg3[%c0_5, %c0_6] : memref<1x384xf32, #tpu.memory_space<vmem>>, vector<1x384xf32>
    %8 = vector.broadcast %7 : vector<1x384xf32> to vector<64x384xf32>
    %9 = arith.addf %6, %8 : vector<64x384xf32>
    %10 = vector.shape_cast %9 : vector<64x384xf32> to vector<8x8x384xf32>
    %c0_7 = arith.constant 0 : index
    %c0_8 = arith.constant 0 : index
    %c0_9 = arith.constant 0 : index
    %11 = vector.load %arg15[%c0_7, %c0_8, %c0_9] : memref<8x8x384xf32, #tpu.memory_space<vmem>>, vector<8x8x384xf32>
    tpu.vector_store %arg15[%c0_7, %c0_8, %c0_9], %10 {strides = array<i32>} : memref<8x8x384xf32, #tpu.memory_space<vmem>>, vector<8x8x384xf32>,
    %c0_10 = arith.constant 0 : index
    %c0_11 = arith.constant 0 : index
    %12 = vector.load %arg5[%c0_10, %c0_11] : memref<1x128xf32, #tpu.memory_space<vmem>>, vector<1x128xf32>
    %13 = vector.shape_cast %12 : vector<1x128xf32> to vector<1x128xf32>
    %14 = vector.broadcast %13 : vector<1x128xf32> to vector<8x128xf32>
    %c0_12 = arith.constant 0 : index
    %c0_13 = arith.constant 0 : index
    %c0_14 = arith.constant 0 : index
    %15 = vector.load %arg13[%c0_12, %c0_13, %c0_14] : memref<2x8x128xf32, #tpu.memory_space<vmem>>, vector<1x8x128xf32>
    %16 = vector.shape_cast %15 : vector<1x8x128xf32> to vector<8x128xf32>
    %c0_i32_15 = arith.constant 0 : i32
    %17 = arith.index_cast %c0_i32_15 : i32 to index
    %c0_16 = arith.constant 0 : index
    %c0_17 = arith.constant 0 : index
    %18 = vector.load %arg15[%17, %c0_16, %c0_17] : memref<8x8x384xf32, #tpu.memory_space<vmem>>, vector<1x8x384xf32>
    %19 = vector.shape_cast %18 : vector<1x8x384xf32> to vector<8x384xf32>
    %c0_18 = arith.constant 0 : index
    %c0_19 = arith.constant 0 : index
    %20 = vector.load %arg4[%c0_18, %c0_19] : memref<128x384xf32, #tpu.memory_space<vmem>>, vector<128x384xf32>
    %cst_20 = arith.constant dense<0.000000e+00> : vector<8x384xf32>
    %21 = tpu.matmul %16, %20, %cst_20 {dimension_numbers = #tpu.dot_dimension_numbers<[1], [0], [0], [1], [0, 0, 1, 1], [], []>} : vector<8x128xf32>, vector<128x384xf32>, vector<8x384xf32> -> vector<8x384xf32>
    %22 = vector.extract_strided_slice %19 {offsets = [0, 0], sizes = [8, 128], strides = [1, 1]} : vector<8x384xf32> to vector<8x128xf32>
    %23 = vector.extract_strided_slice %21 {offsets = [0, 0], sizes = [8, 128], strides = [1, 1]} : vector<8x384xf32> to vector<8x128xf32>
    %24 = arith.addf %22, %23 : vector<8x128xf32>
    %25 = arith.negf %24 : vector<8x128xf32>
    %26 = math.exp %25 : vector<8x128xf32>
    %cst_21 = arith.constant 1.000000e+00 : f32
    %27 = vector.broadcast %cst_21 : f32 to vector<8x128xf32>
    %28 = arith.addf %27, %26 : vector<8x128xf32>
    %29 = arith.divf %27, %28 : vector<8x128xf32>
    %30 = vector.extract_strided_slice %19 {offsets = [0, 128], sizes = [8, 128], strides = [1, 1]} : vector<8x384xf32> to vector<8x128xf32>
    %31 = vector.extract_strided_slice %21 {offsets = [0, 128], sizes = [8, 128], strides = [1, 1]} : vector<8x384xf32> to vector<8x128xf32>
    %32 = arith.addf %30, %31 : vector<8x128xf32>
    %33 = arith.negf %32 : vector<8x128xf32>
    %34 = math.exp %33 : vector<8x128xf32>
    %cst_22 = arith.constant 1.000000e+00 : f32
    %35 = vector.broadcast %cst_22 : f32 to vector<8x128xf32>
    %36 = arith.addf %35, %34 : vector<8x128xf32>
    %37 = arith.divf %35, %36 : vector<8x128xf32>
    %38 = vector.extract_strided_slice %19 {offsets = [0, 256], sizes = [8, 128], strides = [1, 1]} : vector<8x384xf32> to vector<8x128xf32>
    %39 = vector.extract_strided_slice %21 {offsets = [0, 256], sizes = [8, 128], strides = [1, 1]} : vector<8x384xf32> to vector<8x128xf32>
    %40 = arith.addf %39, %14 : vector<8x128xf32>
    %41 = arith.mulf %29, %40 : vector<8x128xf32>
    %42 = arith.addf %38, %41 : vector<8x128xf32>
    %43 = math.tanh %42 : vector<8x128xf32>
    %cst_23 = arith.constant 1.000000e+00 : f32
    %44 = vector.broadcast %cst_23 : f32 to vector<8x128xf32>
    %45 = arith.subf %44, %37 : vector<8x128xf32>
    %46 = arith.mulf %45, %43 : vector<8x128xf32>
    %47 = arith.mulf %37, %16 : vector<8x128xf32>
    %48 = arith.addf %46, %47 : vector<8x128xf32>
    %49 = arith.index_cast %c0_i32_15 : i32 to index
    %c0_24 = arith.constant 0 : index
    %c0_25 = arith.constant 0 : index
    %50 = vector.load %arg14[%49, %c0_24, %c0_25] : memref<8x8x128xf32, #tpu.memory_space<vmem>>, vector<1x8x128xf32>
    %51 = vector.shape_cast %50 : vector<1x8x128xf32> to vector<8x128xf32>
    %52 = vector.shape_cast %48 : vector<8x128xf32> to vector<1x8x128xf32>
    tpu.vector_store %arg14[%49, %c0_24, %c0_25], %52 {strides = array<i32>} : memref<8x8x128xf32, #tpu.memory_space<vmem>>, vector<1x8x128xf32>,
    %c1_i32 = arith.constant 1 : i32
    %53 = arith.index_cast %c1_i32 : i32 to index
    %c0_26 = arith.constant 0 : index
    %c0_27 = arith.constant 0 : index
    %54 = vector.load %arg15[%53, %c0_26, %c0_27] : memref<8x8x384xf32, #tpu.memory_space<vmem>>, vector<1x8x384xf32>
    %55 = vector.shape_cast %54 : vector<1x8x384xf32> to vector<8x384xf32>
    %c0_28 = arith.constant 0 : index
    %c0_29 = arith.constant 0 : index
    %56 = vector.load %arg4[%c0_28, %c0_29] : memref<128x384xf32, #tpu.memory_space<vmem>>, vector<128x384xf32>
    %cst_30 = arith.constant dense<0.000000e+00> : vector<8x384xf32>
    %57 = tpu.matmul %48, %56, %cst_30 {dimension_numbers = #tpu.dot_dimension_numbers<[1], [0], [0], [1], [0, 0, 1, 1], [], []>} : vector<8x128xf32>, vector<128x384xf32>, vector<8x384xf32> -> vector<8x384xf32>
    %58 = vector.extract_strided_slice %55 {offsets = [0, 0], sizes = [8, 128], strides = [1, 1]} : vector<8x384xf32> to vector<8x128xf32>
    %59 = vector.extract_strided_slice %57 {offsets = [0, 0], sizes = [8, 128], strides = [1, 1]} : vector<8x384xf32> to vector<8x128xf32>
    %60 = arith.addf %58, %59 : vector<8x128xf32>
    %61 = arith.negf %60 : vector<8x128xf32>
    %62 = math.exp %61 : vector<8x128xf32>
    %cst_31 = arith.constant 1.000000e+00 : f32
    %63 = vector.broadcast %cst_31 : f32 to vector<8x128xf32>
    %64 = arith.addf %63, %62 : vector<8x128xf32>
    %65 = arith.divf %63, %64 : vector<8x128xf32>
    %66 = vector.extract_strided_slice %55 {offsets = [0, 128], sizes = [8, 128], strides = [1, 1]} : vector<8x384xf32> to vector<8x128xf32>
    %67 = vector.extract_strided_slice %57 {offsets = [0, 128], sizes = [8, 128], strides = [1, 1]} : vector<8x384xf32> to vector<8x128xf32>
    %68 = arith.addf %66, %67 : vector<8x128xf32>
    %69 = arith.negf %68 : vector<8x128xf32>
    %70 = math.exp %69 : vector<8x128xf32>
    %cst_32 = arith.constant 1.000000e+00 : f32
    %71 = vector.broadcast %cst_32 : f32 to vector<8x128xf32>
    %72 = arith.addf %71, %70 : vector<8x128xf32>
    %73 = arith.divf %71, %72 : vector<8x128xf32>
    %74 = vector.extract_strided_slice %55 {offsets = [0, 256], sizes = [8, 128], strides = [1, 1]} : vector<8x384xf32> to vector<8x128xf32>
    %75 = vector.extract_strided_slice %57 {offsets = [0, 256], sizes = [8, 128], strides = [1, 1]} : vector<8x384xf32> to vector<8x128xf32>
    %76 = arith.addf %75, %14 : vector<8x128xf32>
    %77 = arith.mulf %65, %76 : vector<8x128xf32>
    %78 = arith.addf %74, %77 : vector<8x128xf32>
    %79 = math.tanh %78 : vector<8x128xf32>
    %cst_33 = arith.constant 1.000000e+00 : f32
    %80 = vector.broadcast %cst_33 : f32 to vector<8x128xf32>
    %81 = arith.subf %80, %73 : vector<8x128xf32>
    %82 = arith.mulf %81, %79 : vector<8x128xf32>
    %83 = arith.mulf %73, %48 : vector<8x128xf32>
    %84 = arith.addf %82, %83 : vector<8x128xf32>
    %85 = arith.index_cast %c1_i32 : i32 to index
    %c0_34 = arith.constant 0 : index
    %c0_35 = arith.constant 0 : index
    %86 = vector.load %arg14[%85, %c0_34, %c0_35] : memref<8x8x128xf32, #tpu.memory_space<vmem>>, vector<1x8x128xf32>
    %87 = vector.shape_cast %86 : vector<1x8x128xf32> to vector<8x128xf32>
    %88 = vector.shape_cast %84 : vector<8x128xf32> to vector<1x8x128xf32>
    tpu.vector_store %arg14[%85, %c0_34, %c0_35], %88 {strides = array<i32>} : memref<8x8x128xf32, #tpu.memory_space<vmem>>, vector<1x8x128xf32>,
    %c2_i32 = arith.constant 2 : i32
    %89 = arith.index_cast %c2_i32 : i32 to index
    %c0_36 = arith.constant 0 : index
    %c0_37 = arith.constant 0 : index
    %90 = vector.load %arg15[%89, %c0_36, %c0_37] : memref<8x8x384xf32, #tpu.memory_space<vmem>>, vector<1x8x384xf32>
    %91 = vector.shape_cast %90 : vector<1x8x384xf32> to vector<8x384xf32>
    %c0_38 = arith.constant 0 : index
    %c0_39 = arith.constant 0 : index
    %92 = vector.load %arg4[%c0_38, %c0_39] : memref<128x384xf32, #tpu.memory_space<vmem>>, vector<128x384xf32>
    %cst_40 = arith.constant dense<0.000000e+00> : vector<8x384xf32>
    %93 = tpu.matmul %84, %92, %cst_40 {dimension_numbers = #tpu.dot_dimension_numbers<[1], [0], [0], [1], [0, 0, 1, 1], [], []>} : vector<8x128xf32>, vector<128x384xf32>, vector<8x384xf32> -> vector<8x384xf32>
    %94 = vector.extract_strided_slice %91 {offsets = [0, 0], sizes = [8, 128], strides = [1, 1]} : vector<8x384xf32> to vector<8x128xf32>
    %95 = vector.extract_strided_slice %93 {offsets = [0, 0], sizes = [8, 128], strides = [1, 1]} : vector<8x384xf32> to vector<8x128xf32>
    %96 = arith.addf %94, %95 : vector<8x128xf32>
    %97 = arith.negf %96 : vector<8x128xf32>
    %98 = math.exp %97 : vector<8x128xf32>
    %cst_41 = arith.constant 1.000000e+00 : f32
    %99 = vector.broadcast %cst_41 : f32 to vector<8x128xf32>
    %100 = arith.addf %99, %98 : vector<8x128xf32>
    %101 = arith.divf %99, %100 : vector<8x128xf32>
    %102 = vector.extract_strided_slice %91 {offsets = [0, 128], sizes = [8, 128], strides = [1, 1]} : vector<8x384xf32> to vector<8x128xf32>
    %103 = vector.extract_strided_slice %93 {offsets = [0, 128], sizes = [8, 128], strides = [1, 1]} : vector<8x384xf32> to vector<8x128xf32>
    %104 = arith.addf %102, %103 : vector<8x128xf32>
    %105 = arith.negf %104 : vector<8x128xf32>
    %106 = math.exp %105 : vector<8x128xf32>
    %cst_42 = arith.constant 1.000000e+00 : f32
    %107 = vector.broadcast %cst_42 : f32 to vector<8x128xf32>
    %108 = arith.addf %107, %106 : vector<8x128xf32>
    %109 = arith.divf %107, %108 : vector<8x128xf32>
    %110 = vector.extract_strided_slice %91 {offsets = [0, 256], sizes = [8, 128], strides = [1, 1]} : vector<8x384xf32> to vector<8x128xf32>
    %111 = vector.extract_strided_slice %93 {offsets = [0, 256], sizes = [8, 128], strides = [1, 1]} : vector<8x384xf32> to vector<8x128xf32>
    %112 = arith.addf %111, %14 : vector<8x128xf32>
    %113 = arith.mulf %101, %112 : vector<8x128xf32>
    %114 = arith.addf %110, %113 : vector<8x128xf32>
    %115 = math.tanh %114 : vector<8x128xf32>
    %cst_43 = arith.constant 1.000000e+00 : f32
    %116 = vector.broadcast %cst_43 : f32 to vector<8x128xf32>
    %117 = arith.subf %116, %109 : vector<8x128xf32>
    %118 = arith.mulf %117, %115 : vector<8x128xf32>
    %119 = arith.mulf %109, %84 : vector<8x128xf32>
    %120 = arith.addf %118, %119 : vector<8x128xf32>
    %121 = arith.index_cast %c2_i32 : i32 to index
    %c0_44 = arith.constant 0 : index
    %c0_45 = arith.constant 0 : index
    %122 = vector.load %arg14[%121, %c0_44, %c0_45] : memref<8x8x128xf32, #tpu.memory_space<vmem>>, vector<1x8x128xf32>
    %123 = vector.shape_cast %122 : vector<1x8x128xf32> to vector<8x128xf32>
    %124 = vector.shape_cast %120 : vector<8x128xf32> to vector<1x8x128xf32>
    tpu.vector_store %arg14[%121, %c0_44, %c0_45], %124 {strides = array<i32>} : memref<8x8x128xf32, #tpu.memory_space<vmem>>, vector<1x8x128xf32>,
    %c3_i32 = arith.constant 3 : i32
    %125 = arith.index_cast %c3_i32 : i32 to index
    %c0_46 = arith.constant 0 : index
    %c0_47 = arith.constant 0 : index
    %126 = vector.load %arg15[%125, %c0_46, %c0_47] : memref<8x8x384xf32, #tpu.memory_space<vmem>>, vector<1x8x384xf32>
    %127 = vector.shape_cast %126 : vector<1x8x384xf32> to vector<8x384xf32>
    %c0_48 = arith.constant 0 : index
    %c0_49 = arith.constant 0 : index
    %128 = vector.load %arg4[%c0_48, %c0_49] : memref<128x384xf32, #tpu.memory_space<vmem>>, vector<128x384xf32>
    %cst_50 = arith.constant dense<0.000000e+00> : vector<8x384xf32>
    %129 = tpu.matmul %120, %128, %cst_50 {dimension_numbers = #tpu.dot_dimension_numbers<[1], [0], [0], [1], [0, 0, 1, 1], [], []>} : vector<8x128xf32>, vector<128x384xf32>, vector<8x384xf32> -> vector<8x384xf32>
    %130 = vector.extract_strided_slice %127 {offsets = [0, 0], sizes = [8, 128], strides = [1, 1]} : vector<8x384xf32> to vector<8x128xf32>
    %131 = vector.extract_strided_slice %129 {offsets = [0, 0], sizes = [8, 128], strides = [1, 1]} : vector<8x384xf32> to vector<8x128xf32>
    %132 = arith.addf %130, %131 : vector<8x128xf32>
    %133 = arith.negf %132 : vector<8x128xf32>
    %134 = math.exp %133 : vector<8x128xf32>
    %cst_51 = arith.constant 1.000000e+00 : f32
    %135 = vector.broadcast %cst_51 : f32 to vector<8x128xf32>
    %136 = arith.addf %135, %134 : vector<8x128xf32>
    %137 = arith.divf %135, %136 : vector<8x128xf32>
    %138 = vector.extract_strided_slice %127 {offsets = [0, 128], sizes = [8, 128], strides = [1, 1]} : vector<8x384xf32> to vector<8x128xf32>
    %139 = vector.extract_strided_slice %129 {offsets = [0, 128], sizes = [8, 128], strides = [1, 1]} : vector<8x384xf32> to vector<8x128xf32>
    %140 = arith.addf %138, %139 : vector<8x128xf32>
    %141 = arith.negf %140 : vector<8x128xf32>
    %142 = math.exp %141 : vector<8x128xf32>
    %cst_52 = arith.constant 1.000000e+00 : f32
    %143 = vector.broadcast %cst_52 : f32 to vector<8x128xf32>
    %144 = arith.addf %143, %142 : vector<8x128xf32>
    %145 = arith.divf %143, %144 : vector<8x128xf32>
    %146 = vector.extract_strided_slice %127 {offsets = [0, 256], sizes = [8, 128], strides = [1, 1]} : vector<8x384xf32> to vector<8x128xf32>
    %147 = vector.extract_strided_slice %129 {offsets = [0, 256], sizes = [8, 128], strides = [1, 1]} : vector<8x384xf32> to vector<8x128xf32>
    %148 = arith.addf %147, %14 : vector<8x128xf32>
    %149 = arith.mulf %137, %148 : vector<8x128xf32>
    %150 = arith.addf %146, %149 : vector<8x128xf32>
    %151 = math.tanh %150 : vector<8x128xf32>
    %cst_53 = arith.constant 1.000000e+00 : f32
    %152 = vector.broadcast %cst_53 : f32 to vector<8x128xf32>
    %153 = arith.subf %152, %145 : vector<8x128xf32>
    %154 = arith.mulf %153, %151 : vector<8x128xf32>
    %155 = arith.mulf %145, %120 : vector<8x128xf32>
    %156 = arith.addf %154, %155 : vector<8x128xf32>
    %157 = arith.index_cast %c3_i32 : i32 to index
    %c0_54 = arith.constant 0 : index
    %c0_55 = arith.constant 0 : index
    %158 = vector.load %arg14[%157, %c0_54, %c0_55] : memref<8x8x128xf32, #tpu.memory_space<vmem>>, vector<1x8x128xf32>
    %159 = vector.shape_cast %158 : vector<1x8x128xf32> to vector<8x128xf32>
    %160 = vector.shape_cast %156 : vector<8x128xf32> to vector<1x8x128xf32>
    tpu.vector_store %arg14[%157, %c0_54, %c0_55], %160 {strides = array<i32>} : memref<8x8x128xf32, #tpu.memory_space<vmem>>, vector<1x8x128xf32>,
    %c4_i32 = arith.constant 4 : i32
    %161 = arith.index_cast %c4_i32 : i32 to index
    %c0_56 = arith.constant 0 : index
    %c0_57 = arith.constant 0 : index
    %162 = vector.load %arg15[%161, %c0_56, %c0_57] : memref<8x8x384xf32, #tpu.memory_space<vmem>>, vector<1x8x384xf32>
    %163 = vector.shape_cast %162 : vector<1x8x384xf32> to vector<8x384xf32>
    %c0_58 = arith.constant 0 : index
    %c0_59 = arith.constant 0 : index
    %164 = vector.load %arg4[%c0_58, %c0_59] : memref<128x384xf32, #tpu.memory_space<vmem>>, vector<128x384xf32>
    %cst_60 = arith.constant dense<0.000000e+00> : vector<8x384xf32>
    %165 = tpu.matmul %156, %164, %cst_60 {dimension_numbers = #tpu.dot_dimension_numbers<[1], [0], [0], [1], [0, 0, 1, 1], [], []>} : vector<8x128xf32>, vector<128x384xf32>, vector<8x384xf32> -> vector<8x384xf32>
    %166 = vector.extract_strided_slice %163 {offsets = [0, 0], sizes = [8, 128], strides = [1, 1]} : vector<8x384xf32> to vector<8x128xf32>
    %167 = vector.extract_strided_slice %165 {offsets = [0, 0], sizes = [8, 128], strides = [1, 1]} : vector<8x384xf32> to vector<8x128xf32>
    %168 = arith.addf %166, %167 : vector<8x128xf32>
    %169 = arith.negf %168 : vector<8x128xf32>
    %170 = math.exp %169 : vector<8x128xf32>
    %cst_61 = arith.constant 1.000000e+00 : f32
    %171 = vector.broadcast %cst_61 : f32 to vector<8x128xf32>
    %172 = arith.addf %171, %170 : vector<8x128xf32>
    %173 = arith.divf %171, %172 : vector<8x128xf32>
    %174 = vector.extract_strided_slice %163 {offsets = [0, 128], sizes = [8, 128], strides = [1, 1]} : vector<8x384xf32> to vector<8x128xf32>
    %175 = vector.extract_strided_slice %165 {offsets = [0, 128], sizes = [8, 128], strides = [1, 1]} : vector<8x384xf32> to vector<8x128xf32>
    %176 = arith.addf %174, %175 : vector<8x128xf32>
    %177 = arith.negf %176 : vector<8x128xf32>
    %178 = math.exp %177 : vector<8x128xf32>
    %cst_62 = arith.constant 1.000000e+00 : f32
    %179 = vector.broadcast %cst_62 : f32 to vector<8x128xf32>
    %180 = arith.addf %179, %178 : vector<8x128xf32>
    %181 = arith.divf %179, %180 : vector<8x128xf32>
    %182 = vector.extract_strided_slice %163 {offsets = [0, 256], sizes = [8, 128], strides = [1, 1]} : vector<8x384xf32> to vector<8x128xf32>
    %183 = vector.extract_strided_slice %165 {offsets = [0, 256], sizes = [8, 128], strides = [1, 1]} : vector<8x384xf32> to vector<8x128xf32>
    %184 = arith.addf %183, %14 : vector<8x128xf32>
    %185 = arith.mulf %173, %184 : vector<8x128xf32>
    %186 = arith.addf %182, %185 : vector<8x128xf32>
    %187 = math.tanh %186 : vector<8x128xf32>
    %cst_63 = arith.constant 1.000000e+00 : f32
    %188 = vector.broadcast %cst_63 : f32 to vector<8x128xf32>
    %189 = arith.subf %188, %181 : vector<8x128xf32>
    %190 = arith.mulf %189, %187 : vector<8x128xf32>
    %191 = arith.mulf %181, %156 : vector<8x128xf32>
    %192 = arith.addf %190, %191 : vector<8x128xf32>
    %193 = arith.index_cast %c4_i32 : i32 to index
    %c0_64 = arith.constant 0 : index
    %c0_65 = arith.constant 0 : index
    %194 = vector.load %arg14[%193, %c0_64, %c0_65] : memref<8x8x128xf32, #tpu.memory_space<vmem>>, vector<1x8x128xf32>
    %195 = vector.shape_cast %194 : vector<1x8x128xf32> to vector<8x128xf32>
    %196 = vector.shape_cast %192 : vector<8x128xf32> to vector<1x8x128xf32>
    tpu.vector_store %arg14[%193, %c0_64, %c0_65], %196 {strides = array<i32>} : memref<8x8x128xf32, #tpu.memory_space<vmem>>, vector<1x8x128xf32>,
    %c5_i32 = arith.constant 5 : i32
    %197 = arith.index_cast %c5_i32 : i32 to index
    %c0_66 = arith.constant 0 : index
    %c0_67 = arith.constant 0 : index
    %198 = vector.load %arg15[%197, %c0_66, %c0_67] : memref<8x8x384xf32, #tpu.memory_space<vmem>>, vector<1x8x384xf32>
    %199 = vector.shape_cast %198 : vector<1x8x384xf32> to vector<8x384xf32>
    %c0_68 = arith.constant 0 : index
    %c0_69 = arith.constant 0 : index
    %200 = vector.load %arg4[%c0_68, %c0_69] : memref<128x384xf32, #tpu.memory_space<vmem>>, vector<128x384xf32>
    %cst_70 = arith.constant dense<0.000000e+00> : vector<8x384xf32>
    %201 = tpu.matmul %192, %200, %cst_70 {dimension_numbers = #tpu.dot_dimension_numbers<[1], [0], [0], [1], [0, 0, 1, 1], [], []>} : vector<8x128xf32>, vector<128x384xf32>, vector<8x384xf32> -> vector<8x384xf32>
    %202 = vector.extract_strided_slice %199 {offsets = [0, 0], sizes = [8, 128], strides = [1, 1]} : vector<8x384xf32> to vector<8x128xf32>
    %203 = vector.extract_strided_slice %201 {offsets = [0, 0], sizes = [8, 128], strides = [1, 1]} : vector<8x384xf32> to vector<8x128xf32>
    %204 = arith.addf %202, %203 : vector<8x128xf32>
    %205 = arith.negf %204 : vector<8x128xf32>
    %206 = math.exp %205 : vector<8x128xf32>
    %cst_71 = arith.constant 1.000000e+00 : f32
    %207 = vector.broadcast %cst_71 : f32 to vector<8x128xf32>
    %208 = arith.addf %207, %206 : vector<8x128xf32>
    %209 = arith.divf %207, %208 : vector<8x128xf32>
    %210 = vector.extract_strided_slice %199 {offsets = [0, 128], sizes = [8, 128], strides = [1, 1]} : vector<8x384xf32> to vector<8x128xf32>
    %211 = vector.extract_strided_slice %201 {offsets = [0, 128], sizes = [8, 128], strides = [1, 1]} : vector<8x384xf32> to vector<8x128xf32>
    %212 = arith.addf %210, %211 : vector<8x128xf32>
    %213 = arith.negf %212 : vector<8x128xf32>
    %214 = math.exp %213 : vector<8x128xf32>
    %cst_72 = arith.constant 1.000000e+00 : f32
    %215 = vector.broadcast %cst_72 : f32 to vector<8x128xf32>
    %216 = arith.addf %215, %214 : vector<8x128xf32>
    %217 = arith.divf %215, %216 : vector<8x128xf32>
    %218 = vector.extract_strided_slice %199 {offsets = [0, 256], sizes = [8, 128], strides = [1, 1]} : vector<8x384xf32> to vector<8x128xf32>
    %219 = vector.extract_strided_slice %201 {offsets = [0, 256], sizes = [8, 128], strides = [1, 1]} : vector<8x384xf32> to vector<8x128xf32>
    %220 = arith.addf %219, %14 : vector<8x128xf32>
    %221 = arith.mulf %209, %220 : vector<8x128xf32>
    %222 = arith.addf %218, %221 : vector<8x128xf32>
    %223 = math.tanh %222 : vector<8x128xf32>
    %cst_73 = arith.constant 1.000000e+00 : f32
    %224 = vector.broadcast %cst_73 : f32 to vector<8x128xf32>
    %225 = arith.subf %224, %217 : vector<8x128xf32>
    %226 = arith.mulf %225, %223 : vector<8x128xf32>
    %227 = arith.mulf %217, %192 : vector<8x128xf32>
    %228 = arith.addf %226, %227 : vector<8x128xf32>
    %229 = arith.index_cast %c5_i32 : i32 to index
    %c0_74 = arith.constant 0 : index
    %c0_75 = arith.constant 0 : index
    %230 = vector.load %arg14[%229, %c0_74, %c0_75] : memref<8x8x128xf32, #tpu.memory_space<vmem>>, vector<1x8x128xf32>
    %231 = vector.shape_cast %230 : vector<1x8x128xf32> to vector<8x128xf32>
    %232 = vector.shape_cast %228 : vector<8x128xf32> to vector<1x8x128xf32>
    tpu.vector_store %arg14[%229, %c0_74, %c0_75], %232 {strides = array<i32>} : memref<8x8x128xf32, #tpu.memory_space<vmem>>, vector<1x8x128xf32>,
    %c6_i32 = arith.constant 6 : i32
    %233 = arith.index_cast %c6_i32 : i32 to index
    %c0_76 = arith.constant 0 : index
    %c0_77 = arith.constant 0 : index
    %234 = vector.load %arg15[%233, %c0_76, %c0_77] : memref<8x8x384xf32, #tpu.memory_space<vmem>>, vector<1x8x384xf32>
    %235 = vector.shape_cast %234 : vector<1x8x384xf32> to vector<8x384xf32>
    %c0_78 = arith.constant 0 : index
    %c0_79 = arith.constant 0 : index
    %236 = vector.load %arg4[%c0_78, %c0_79] : memref<128x384xf32, #tpu.memory_space<vmem>>, vector<128x384xf32>
    %cst_80 = arith.constant dense<0.000000e+00> : vector<8x384xf32>
    %237 = tpu.matmul %228, %236, %cst_80 {dimension_numbers = #tpu.dot_dimension_numbers<[1], [0], [0], [1], [0, 0, 1, 1], [], []>} : vector<8x128xf32>, vector<128x384xf32>, vector<8x384xf32> -> vector<8x384xf32>
    %238 = vector.extract_strided_slice %235 {offsets = [0, 0], sizes = [8, 128], strides = [1, 1]} : vector<8x384xf32> to vector<8x128xf32>
    %239 = vector.extract_strided_slice %237 {offsets = [0, 0], sizes = [8, 128], strides = [1, 1]} : vector<8x384xf32> to vector<8x128xf32>
    %240 = arith.addf %238, %239 : vector<8x128xf32>
    %241 = arith.negf %240 : vector<8x128xf32>
    %242 = math.exp %241 : vector<8x128xf32>
    %cst_81 = arith.constant 1.000000e+00 : f32
    %243 = vector.broadcast %cst_81 : f32 to vector<8x128xf32>
    %244 = arith.addf %243, %242 : vector<8x128xf32>
    %245 = arith.divf %243, %244 : vector<8x128xf32>
    %246 = vector.extract_strided_slice %235 {offsets = [0, 128], sizes = [8, 128], strides = [1, 1]} : vector<8x384xf32> to vector<8x128xf32>
    %247 = vector.extract_strided_slice %237 {offsets = [0, 128], sizes = [8, 128], strides = [1, 1]} : vector<8x384xf32> to vector<8x128xf32>
    %248 = arith.addf %246, %247 : vector<8x128xf32>
    %249 = arith.negf %248 : vector<8x128xf32>
    %250 = math.exp %249 : vector<8x128xf32>
    %cst_82 = arith.constant 1.000000e+00 : f32
    %251 = vector.broadcast %cst_82 : f32 to vector<8x128xf32>
    %252 = arith.addf %251, %250 : vector<8x128xf32>
    %253 = arith.divf %251, %252 : vector<8x128xf32>
    %254 = vector.extract_strided_slice %235 {offsets = [0, 256], sizes = [8, 128], strides = [1, 1]} : vector<8x384xf32> to vector<8x128xf32>
    %255 = vector.extract_strided_slice %237 {offsets = [0, 256], sizes = [8, 128], strides = [1, 1]} : vector<8x384xf32> to vector<8x128xf32>
    %256 = arith.addf %255, %14 : vector<8x128xf32>
    %257 = arith.mulf %245, %256 : vector<8x128xf32>
    %258 = arith.addf %254, %257 : vector<8x128xf32>
    %259 = math.tanh %258 : vector<8x128xf32>
    %cst_83 = arith.constant 1.000000e+00 : f32
    %260 = vector.broadcast %cst_83 : f32 to vector<8x128xf32>
    %261 = arith.subf %260, %253 : vector<8x128xf32>
    %262 = arith.mulf %261, %259 : vector<8x128xf32>
    %263 = arith.mulf %253, %228 : vector<8x128xf32>
    %264 = arith.addf %262, %263 : vector<8x128xf32>
    %265 = arith.index_cast %c6_i32 : i32 to index
    %c0_84 = arith.constant 0 : index
    %c0_85 = arith.constant 0 : index
    %266 = vector.load %arg14[%265, %c0_84, %c0_85] : memref<8x8x128xf32, #tpu.memory_space<vmem>>, vector<1x8x128xf32>
    %267 = vector.shape_cast %266 : vector<1x8x128xf32> to vector<8x128xf32>
    %268 = vector.shape_cast %264 : vector<8x128xf32> to vector<1x8x128xf32>
    tpu.vector_store %arg14[%265, %c0_84, %c0_85], %268 {strides = array<i32>} : memref<8x8x128xf32, #tpu.memory_space<vmem>>, vector<1x8x128xf32>,
    %c7_i32 = arith.constant 7 : i32
    %269 = arith.index_cast %c7_i32 : i32 to index
    %c0_86 = arith.constant 0 : index
    %c0_87 = arith.constant 0 : index
    %270 = vector.load %arg15[%269, %c0_86, %c0_87] : memref<8x8x384xf32, #tpu.memory_space<vmem>>, vector<1x8x384xf32>
    %271 = vector.shape_cast %270 : vector<1x8x384xf32> to vector<8x384xf32>
    %c0_88 = arith.constant 0 : index
    %c0_89 = arith.constant 0 : index
    %272 = vector.load %arg4[%c0_88, %c0_89] : memref<128x384xf32, #tpu.memory_space<vmem>>, vector<128x384xf32>
    %cst_90 = arith.constant dense<0.000000e+00> : vector<8x384xf32>
    %273 = tpu.matmul %264, %272, %cst_90 {dimension_numbers = #tpu.dot_dimension_numbers<[1], [0], [0], [1], [0, 0, 1, 1], [], []>} : vector<8x128xf32>, vector<128x384xf32>, vector<8x384xf32> -> vector<8x384xf32>
    %274 = vector.extract_strided_slice %271 {offsets = [0, 0], sizes = [8, 128], strides = [1, 1]} : vector<8x384xf32> to vector<8x128xf32>
    %275 = vector.extract_strided_slice %273 {offsets = [0, 0], sizes = [8, 128], strides = [1, 1]} : vector<8x384xf32> to vector<8x128xf32>
    %276 = arith.addf %274, %275 : vector<8x128xf32>
    %277 = arith.negf %276 : vector<8x128xf32>
    %278 = math.exp %277 : vector<8x128xf32>
    %cst_91 = arith.constant 1.000000e+00 : f32
    %279 = vector.broadcast %cst_91 : f32 to vector<8x128xf32>
    %280 = arith.addf %279, %278 : vector<8x128xf32>
    %281 = arith.divf %279, %280 : vector<8x128xf32>
    %282 = vector.extract_strided_slice %271 {offsets = [0, 128], sizes = [8, 128], strides = [1, 1]} : vector<8x384xf32> to vector<8x128xf32>
    %283 = vector.extract_strided_slice %273 {offsets = [0, 128], sizes = [8, 128], strides = [1, 1]} : vector<8x384xf32> to vector<8x128xf32>
    %284 = arith.addf %282, %283 : vector<8x128xf32>
    %285 = arith.negf %284 : vector<8x128xf32>
    %286 = math.exp %285 : vector<8x128xf32>
    %cst_92 = arith.constant 1.000000e+00 : f32
    %287 = vector.broadcast %cst_92 : f32 to vector<8x128xf32>
    %288 = arith.addf %287, %286 : vector<8x128xf32>
    %289 = arith.divf %287, %288 : vector<8x128xf32>
    %290 = vector.extract_strided_slice %271 {offsets = [0, 256], sizes = [8, 128], strides = [1, 1]} : vector<8x384xf32> to vector<8x128xf32>
    %291 = vector.extract_strided_slice %273 {offsets = [0, 256], sizes = [8, 128], strides = [1, 1]} : vector<8x384xf32> to vector<8x128xf32>
    %292 = arith.addf %291, %14 : vector<8x128xf32>
    %293 = arith.mulf %281, %292 : vector<8x128xf32>
    %294 = arith.addf %290, %293 : vector<8x128xf32>
    %295 = math.tanh %294 : vector<8x128xf32>
    %cst_93 = arith.constant 1.000000e+00 : f32
    %296 = vector.broadcast %cst_93 : f32 to vector<8x128xf32>
    %297 = arith.subf %296, %289 : vector<8x128xf32>
    %298 = arith.mulf %297, %295 : vector<8x128xf32>
    %299 = arith.mulf %289, %264 : vector<8x128xf32>
    %300 = arith.addf %298, %299 : vector<8x128xf32>
    %301 = arith.index_cast %c7_i32 : i32 to index
    %c0_94 = arith.constant 0 : index
    %c0_95 = arith.constant 0 : index
    %302 = vector.load %arg14[%301, %c0_94, %c0_95] : memref<8x8x128xf32, #tpu.memory_space<vmem>>, vector<1x8x128xf32>
    %303 = vector.shape_cast %302 : vector<1x8x128xf32> to vector<8x128xf32>
    %304 = vector.shape_cast %300 : vector<8x128xf32> to vector<1x8x128xf32>
    tpu.vector_store %arg14[%301, %c0_94, %c0_95], %304 {strides = array<i32>} : memref<8x8x128xf32, #tpu.memory_space<vmem>>, vector<1x8x128xf32>,
    %c8_i32 = arith.constant 8 : i32
    %c0_96 = arith.constant 0 : index
    %c0_97 = arith.constant 0 : index
    %c0_98 = arith.constant 0 : index
    %305 = vector.load %arg13[%c0_96, %c0_97, %c0_98] : memref<2x8x128xf32, #tpu.memory_space<vmem>>, vector<1x8x128xf32>
    %306 = vector.shape_cast %305 : vector<1x8x128xf32> to vector<8x128xf32>
    %307 = vector.shape_cast %300 : vector<8x128xf32> to vector<1x8x128xf32>
    tpu.vector_store %arg13[%c0_96, %c0_97, %c0_98], %307 {strides = array<i32>} : memref<2x8x128xf32, #tpu.memory_space<vmem>>, vector<1x8x128xf32>,
    %c0_99 = arith.constant 0 : index
    %c0_100 = arith.constant 0 : index
    %c0_101 = arith.constant 0 : index
    %308 = vector.load %arg14[%c0_99, %c0_100, %c0_101] : memref<8x8x128xf32, #tpu.memory_space<vmem>>, vector<8x8x128xf32>
    %309 = vector.shape_cast %308 : vector<8x8x128xf32> to vector<64x128xf32>
    %c0_102 = arith.constant 0 : index
    %c0_103 = arith.constant 0 : index
    %310 = vector.load %arg6[%c0_102, %c0_103] : memref<128x384xf32, #tpu.memory_space<vmem>>, vector<128x384xf32>
    %cst_104 = arith.constant dense<0.000000e+00> : vector<64x384xf32>
    %311 = tpu.matmul %309, %310, %cst_104 {dimension_numbers = #tpu.dot_dimension_numbers<[1], [0], [0], [1], [0, 0, 1, 1], [], []>} : vector<64x128xf32>, vector<128x384xf32>, vector<64x384xf32> -> vector<64x384xf32>
    %c0_105 = arith.constant 0 : index
    %c0_106 = arith.constant 0 : index
    %312 = vector.load %arg7[%c0_105, %c0_106] : memref<1x384xf32, #tpu.memory_space<vmem>>, vector<1x384xf32>
    %313 = vector.broadcast %312 : vector<1x384xf32> to vector<64x384xf32>
    %314 = arith.addf %311, %313 : vector<64x384xf32>
    %315 = vector.shape_cast %314 : vector<64x384xf32> to vector<8x8x384xf32>
    %c0_107 = arith.constant 0 : index
    %c0_108 = arith.constant 0 : index
    %c0_109 = arith.constant 0 : index
    %316 = vector.load %arg15[%c0_107, %c0_108, %c0_109] : memref<8x8x384xf32, #tpu.memory_space<vmem>>, vector<8x8x384xf32>
    tpu.vector_store %arg15[%c0_107, %c0_108, %c0_109], %315 {strides = array<i32>} : memref<8x8x384xf32, #tpu.memory_space<vmem>>, vector<8x8x384xf32>,
    %c0_110 = arith.constant 0 : index
    %c0_111 = arith.constant 0 : index
    %317 = vector.load %arg9[%c0_110, %c0_111] : memref<1x128xf32, #tpu.memory_space<vmem>>, vector<1x128xf32>
    %318 = vector.shape_cast %317 : vector<1x128xf32> to vector<1x128xf32>
    %319 = vector.broadcast %318 : vector<1x128xf32> to vector<8x128xf32>
    %c1 = arith.constant 1 : index
    %c0_112 = arith.constant 0 : index
    %c0_113 = arith.constant 0 : index
    %320 = vector.load %arg13[%c1, %c0_112, %c0_113] : memref<2x8x128xf32, #tpu.memory_space<vmem>>, vector<1x8x128xf32>
    %321 = vector.shape_cast %320 : vector<1x8x128xf32> to vector<8x128xf32>
    %c0_i32_114 = arith.constant 0 : i32
    %322 = arith.index_cast %c0_i32_114 : i32 to index
    %c0_115 = arith.constant 0 : index
    %c0_116 = arith.constant 0 : index
    %323 = vector.load %arg15[%322, %c0_115, %c0_116] : memref<8x8x384xf32, #tpu.memory_space<vmem>>, vector<1x8x384xf32>
    %324 = vector.shape_cast %323 : vector<1x8x384xf32> to vector<8x384xf32>
    %c0_117 = arith.constant 0 : index
    %c0_118 = arith.constant 0 : index
    %325 = vector.load %arg8[%c0_117, %c0_118] : memref<128x384xf32, #tpu.memory_space<vmem>>, vector<128x384xf32>
    %cst_119 = arith.constant dense<0.000000e+00> : vector<8x384xf32>
    %326 = tpu.matmul %321, %325, %cst_119 {dimension_numbers = #tpu.dot_dimension_numbers<[1], [0], [0], [1], [0, 0, 1, 1], [], []>} : vector<8x128xf32>, vector<128x384xf32>, vector<8x384xf32> -> vector<8x384xf32>
    %327 = vector.extract_strided_slice %324 {offsets = [0, 0], sizes = [8, 128], strides = [1, 1]} : vector<8x384xf32> to vector<8x128xf32>
    %328 = vector.extract_strided_slice %326 {offsets = [0, 0], sizes = [8, 128], strides = [1, 1]} : vector<8x384xf32> to vector<8x128xf32>
    %329 = arith.addf %327, %328 : vector<8x128xf32>
    %330 = arith.negf %329 : vector<8x128xf32>
    %331 = math.exp %330 : vector<8x128xf32>
    %cst_120 = arith.constant 1.000000e+00 : f32
    %332 = vector.broadcast %cst_120 : f32 to vector<8x128xf32>
    %333 = arith.addf %332, %331 : vector<8x128xf32>
    %334 = arith.divf %332, %333 : vector<8x128xf32>
    %335 = vector.extract_strided_slice %324 {offsets = [0, 128], sizes = [8, 128], strides = [1, 1]} : vector<8x384xf32> to vector<8x128xf32>
    %336 = vector.extract_strided_slice %326 {offsets = [0, 128], sizes = [8, 128], strides = [1, 1]} : vector<8x384xf32> to vector<8x128xf32>
    %337 = arith.addf %335, %336 : vector<8x128xf32>
    %338 = arith.negf %337 : vector<8x128xf32>
    %339 = math.exp %338 : vector<8x128xf32>
    %cst_121 = arith.constant 1.000000e+00 : f32
    %340 = vector.broadcast %cst_121 : f32 to vector<8x128xf32>
    %341 = arith.addf %340, %339 : vector<8x128xf32>
    %342 = arith.divf %340, %341 : vector<8x128xf32>
    %343 = vector.extract_strided_slice %324 {offsets = [0, 256], sizes = [8, 128], strides = [1, 1]} : vector<8x384xf32> to vector<8x128xf32>
    %344 = vector.extract_strided_slice %326 {offsets = [0, 256], sizes = [8, 128], strides = [1, 1]} : vector<8x384xf32> to vector<8x128xf32>
    %345 = arith.addf %344, %319 : vector<8x128xf32>
    %346 = arith.mulf %334, %345 : vector<8x128xf32>
    %347 = arith.addf %343, %346 : vector<8x128xf32>
    %348 = math.tanh %347 : vector<8x128xf32>
    %cst_122 = arith.constant 1.000000e+00 : f32
    %349 = vector.broadcast %cst_122 : f32 to vector<8x128xf32>
    %350 = arith.subf %349, %342 : vector<8x128xf32>
    %351 = arith.mulf %350, %348 : vector<8x128xf32>
    %352 = arith.mulf %342, %321 : vector<8x128xf32>
    %353 = arith.addf %351, %352 : vector<8x128xf32>
    %c1_i32_123 = arith.constant 1 : i32
    %354 = arith.index_cast %c1_i32_123 : i32 to index
    %c0_124 = arith.constant 0 : index
    %c0_125 = arith.constant 0 : index
    %355 = vector.load %arg15[%354, %c0_124, %c0_125] : memref<8x8x384xf32, #tpu.memory_space<vmem>>, vector<1x8x384xf32>
    %356 = vector.shape_cast %355 : vector<1x8x384xf32> to vector<8x384xf32>
    %c0_126 = arith.constant 0 : index
    %c0_127 = arith.constant 0 : index
    %357 = vector.load %arg8[%c0_126, %c0_127] : memref<128x384xf32, #tpu.memory_space<vmem>>, vector<128x384xf32>
    %cst_128 = arith.constant dense<0.000000e+00> : vector<8x384xf32>
    %358 = tpu.matmul %353, %357, %cst_128 {dimension_numbers = #tpu.dot_dimension_numbers<[1], [0], [0], [1], [0, 0, 1, 1], [], []>} : vector<8x128xf32>, vector<128x384xf32>, vector<8x384xf32> -> vector<8x384xf32>
    %359 = vector.extract_strided_slice %356 {offsets = [0, 0], sizes = [8, 128], strides = [1, 1]} : vector<8x384xf32> to vector<8x128xf32>
    %360 = vector.extract_strided_slice %358 {offsets = [0, 0], sizes = [8, 128], strides = [1, 1]} : vector<8x384xf32> to vector<8x128xf32>
    %361 = arith.addf %359, %360 : vector<8x128xf32>
    %362 = arith.negf %361 : vector<8x128xf32>
    %363 = math.exp %362 : vector<8x128xf32>
    %cst_129 = arith.constant 1.000000e+00 : f32
    %364 = vector.broadcast %cst_129 : f32 to vector<8x128xf32>
    %365 = arith.addf %364, %363 : vector<8x128xf32>
    %366 = arith.divf %364, %365 : vector<8x128xf32>
    %367 = vector.extract_strided_slice %356 {offsets = [0, 128], sizes = [8, 128], strides = [1, 1]} : vector<8x384xf32> to vector<8x128xf32>
    %368 = vector.extract_strided_slice %358 {offsets = [0, 128], sizes = [8, 128], strides = [1, 1]} : vector<8x384xf32> to vector<8x128xf32>
    %369 = arith.addf %367, %368 : vector<8x128xf32>
    %370 = arith.negf %369 : vector<8x128xf32>
    %371 = math.exp %370 : vector<8x128xf32>
    %cst_130 = arith.constant 1.000000e+00 : f32
    %372 = vector.broadcast %cst_130 : f32 to vector<8x128xf32>
    %373 = arith.addf %372, %371 : vector<8x128xf32>
    %374 = arith.divf %372, %373 : vector<8x128xf32>
    %375 = vector.extract_strided_slice %356 {offsets = [0, 256], sizes = [8, 128], strides = [1, 1]} : vector<8x384xf32> to vector<8x128xf32>
    %376 = vector.extract_strided_slice %358 {offsets = [0, 256], sizes = [8, 128], strides = [1, 1]} : vector<8x384xf32> to vector<8x128xf32>
    %377 = arith.addf %376, %319 : vector<8x128xf32>
    %378 = arith.mulf %366, %377 : vector<8x128xf32>
    %379 = arith.addf %375, %378 : vector<8x128xf32>
    %380 = math.tanh %379 : vector<8x128xf32>
    %cst_131 = arith.constant 1.000000e+00 : f32
    %381 = vector.broadcast %cst_131 : f32 to vector<8x128xf32>
    %382 = arith.subf %381, %374 : vector<8x128xf32>
    %383 = arith.mulf %382, %380 : vector<8x128xf32>
    %384 = arith.mulf %374, %353 : vector<8x128xf32>
    %385 = arith.addf %383, %384 : vector<8x128xf32>
    %c2_i32_132 = arith.constant 2 : i32
    %386 = arith.index_cast %c2_i32_132 : i32 to index
    %c0_133 = arith.constant 0 : index
    %c0_134 = arith.constant 0 : index
    %387 = vector.load %arg15[%386, %c0_133, %c0_134] : memref<8x8x384xf32, #tpu.memory_space<vmem>>, vector<1x8x384xf32>
    %388 = vector.shape_cast %387 : vector<1x8x384xf32> to vector<8x384xf32>
    %c0_135 = arith.constant 0 : index
    %c0_136 = arith.constant 0 : index
    %389 = vector.load %arg8[%c0_135, %c0_136] : memref<128x384xf32, #tpu.memory_space<vmem>>, vector<128x384xf32>
    %cst_137 = arith.constant dense<0.000000e+00> : vector<8x384xf32>
    %390 = tpu.matmul %385, %389, %cst_137 {dimension_numbers = #tpu.dot_dimension_numbers<[1], [0], [0], [1], [0, 0, 1, 1], [], []>} : vector<8x128xf32>, vector<128x384xf32>, vector<8x384xf32> -> vector<8x384xf32>
    %391 = vector.extract_strided_slice %388 {offsets = [0, 0], sizes = [8, 128], strides = [1, 1]} : vector<8x384xf32> to vector<8x128xf32>
    %392 = vector.extract_strided_slice %390 {offsets = [0, 0], sizes = [8, 128], strides = [1, 1]} : vector<8x384xf32> to vector<8x128xf32>
    %393 = arith.addf %391, %392 : vector<8x128xf32>
    %394 = arith.negf %393 : vector<8x128xf32>
    %395 = math.exp %394 : vector<8x128xf32>
    %cst_138 = arith.constant 1.000000e+00 : f32
    %396 = vector.broadcast %cst_138 : f32 to vector<8x128xf32>
    %397 = arith.addf %396, %395 : vector<8x128xf32>
    %398 = arith.divf %396, %397 : vector<8x128xf32>
    %399 = vector.extract_strided_slice %388 {offsets = [0, 128], sizes = [8, 128], strides = [1, 1]} : vector<8x384xf32> to vector<8x128xf32>
    %400 = vector.extract_strided_slice %390 {offsets = [0, 128], sizes = [8, 128], strides = [1, 1]} : vector<8x384xf32> to vector<8x128xf32>
    %401 = arith.addf %399, %400 : vector<8x128xf32>
    %402 = arith.negf %401 : vector<8x128xf32>
    %403 = math.exp %402 : vector<8x128xf32>
    %cst_139 = arith.constant 1.000000e+00 : f32
    %404 = vector.broadcast %cst_139 : f32 to vector<8x128xf32>
    %405 = arith.addf %404, %403 : vector<8x128xf32>
    %406 = arith.divf %404, %405 : vector<8x128xf32>
    %407 = vector.extract_strided_slice %388 {offsets = [0, 256], sizes = [8, 128], strides = [1, 1]} : vector<8x384xf32> to vector<8x128xf32>
    %408 = vector.extract_strided_slice %390 {offsets = [0, 256], sizes = [8, 128], strides = [1, 1]} : vector<8x384xf32> to vector<8x128xf32>
    %409 = arith.addf %408, %319 : vector<8x128xf32>
    %410 = arith.mulf %398, %409 : vector<8x128xf32>
    %411 = arith.addf %407, %410 : vector<8x128xf32>
    %412 = math.tanh %411 : vector<8x128xf32>
    %cst_140 = arith.constant 1.000000e+00 : f32
    %413 = vector.broadcast %cst_140 : f32 to vector<8x128xf32>
    %414 = arith.subf %413, %406 : vector<8x128xf32>
    %415 = arith.mulf %414, %412 : vector<8x128xf32>
    %416 = arith.mulf %406, %385 : vector<8x128xf32>
    %417 = arith.addf %415, %416 : vector<8x128xf32>
    %c3_i32_141 = arith.constant 3 : i32
    %418 = arith.index_cast %c3_i32_141 : i32 to index
    %c0_142 = arith.constant 0 : index
    %c0_143 = arith.constant 0 : index
    %419 = vector.load %arg15[%418, %c0_142, %c0_143] : memref<8x8x384xf32, #tpu.memory_space<vmem>>, vector<1x8x384xf32>
    %420 = vector.shape_cast %419 : vector<1x8x384xf32> to vector<8x384xf32>
    %c0_144 = arith.constant 0 : index
    %c0_145 = arith.constant 0 : index
    %421 = vector.load %arg8[%c0_144, %c0_145] : memref<128x384xf32, #tpu.memory_space<vmem>>, vector<128x384xf32>
    %cst_146 = arith.constant dense<0.000000e+00> : vector<8x384xf32>
    %422 = tpu.matmul %417, %421, %cst_146 {dimension_numbers = #tpu.dot_dimension_numbers<[1], [0], [0], [1], [0, 0, 1, 1], [], []>} : vector<8x128xf32>, vector<128x384xf32>, vector<8x384xf32> -> vector<8x384xf32>
    %423 = vector.extract_strided_slice %420 {offsets = [0, 0], sizes = [8, 128], strides = [1, 1]} : vector<8x384xf32> to vector<8x128xf32>
    %424 = vector.extract_strided_slice %422 {offsets = [0, 0], sizes = [8, 128], strides = [1, 1]} : vector<8x384xf32> to vector<8x128xf32>
    %425 = arith.addf %423, %424 : vector<8x128xf32>
    %426 = arith.negf %425 : vector<8x128xf32>
    %427 = math.exp %426 : vector<8x128xf32>
    %cst_147 = arith.constant 1.000000e+00 : f32
    %428 = vector.broadcast %cst_147 : f32 to vector<8x128xf32>
    %429 = arith.addf %428, %427 : vector<8x128xf32>
    %430 = arith.divf %428, %429 : vector<8x128xf32>
    %431 = vector.extract_strided_slice %420 {offsets = [0, 128], sizes = [8, 128], strides = [1, 1]} : vector<8x384xf32> to vector<8x128xf32>
    %432 = vector.extract_strided_slice %422 {offsets = [0, 128], sizes = [8, 128], strides = [1, 1]} : vector<8x384xf32> to vector<8x128xf32>
    %433 = arith.addf %431, %432 : vector<8x128xf32>
    %434 = arith.negf %433 : vector<8x128xf32>
    %435 = math.exp %434 : vector<8x128xf32>
    %cst_148 = arith.constant 1.000000e+00 : f32
    %436 = vector.broadcast %cst_148 : f32 to vector<8x128xf32>
    %437 = arith.addf %436, %435 : vector<8x128xf32>
    %438 = arith.divf %436, %437 : vector<8x128xf32>
    %439 = vector.extract_strided_slice %420 {offsets = [0, 256], sizes = [8, 128], strides = [1, 1]} : vector<8x384xf32> to vector<8x128xf32>
    %440 = vector.extract_strided_slice %422 {offsets = [0, 256], sizes = [8, 128], strides = [1, 1]} : vector<8x384xf32> to vector<8x128xf32>
    %441 = arith.addf %440, %319 : vector<8x128xf32>
    %442 = arith.mulf %430, %441 : vector<8x128xf32>
    %443 = arith.addf %439, %442 : vector<8x128xf32>
    %444 = math.tanh %443 : vector<8x128xf32>
    %cst_149 = arith.constant 1.000000e+00 : f32
    %445 = vector.broadcast %cst_149 : f32 to vector<8x128xf32>
    %446 = arith.subf %445, %438 : vector<8x128xf32>
    %447 = arith.mulf %446, %444 : vector<8x128xf32>
    %448 = arith.mulf %438, %417 : vector<8x128xf32>
    %449 = arith.addf %447, %448 : vector<8x128xf32>
    %c4_i32_150 = arith.constant 4 : i32
    %450 = arith.index_cast %c4_i32_150 : i32 to index
    %c0_151 = arith.constant 0 : index
    %c0_152 = arith.constant 0 : index
    %451 = vector.load %arg15[%450, %c0_151, %c0_152] : memref<8x8x384xf32, #tpu.memory_space<vmem>>, vector<1x8x384xf32>
    %452 = vector.shape_cast %451 : vector<1x8x384xf32> to vector<8x384xf32>
    %c0_153 = arith.constant 0 : index
    %c0_154 = arith.constant 0 : index
    %453 = vector.load %arg8[%c0_153, %c0_154] : memref<128x384xf32, #tpu.memory_space<vmem>>, vector<128x384xf32>
    %cst_155 = arith.constant dense<0.000000e+00> : vector<8x384xf32>
    %454 = tpu.matmul %449, %453, %cst_155 {dimension_numbers = #tpu.dot_dimension_numbers<[1], [0], [0], [1], [0, 0, 1, 1], [], []>} : vector<8x128xf32>, vector<128x384xf32>, vector<8x384xf32> -> vector<8x384xf32>
    %455 = vector.extract_strided_slice %452 {offsets = [0, 0], sizes = [8, 128], strides = [1, 1]} : vector<8x384xf32> to vector<8x128xf32>
    %456 = vector.extract_strided_slice %454 {offsets = [0, 0], sizes = [8, 128], strides = [1, 1]} : vector<8x384xf32> to vector<8x128xf32>
    %457 = arith.addf %455, %456 : vector<8x128xf32>
    %458 = arith.negf %457 : vector<8x128xf32>
    %459 = math.exp %458 : vector<8x128xf32>
    %cst_156 = arith.constant 1.000000e+00 : f32
    %460 = vector.broadcast %cst_156 : f32 to vector<8x128xf32>
    %461 = arith.addf %460, %459 : vector<8x128xf32>
    %462 = arith.divf %460, %461 : vector<8x128xf32>
    %463 = vector.extract_strided_slice %452 {offsets = [0, 128], sizes = [8, 128], strides = [1, 1]} : vector<8x384xf32> to vector<8x128xf32>
    %464 = vector.extract_strided_slice %454 {offsets = [0, 128], sizes = [8, 128], strides = [1, 1]} : vector<8x384xf32> to vector<8x128xf32>
    %465 = arith.addf %463, %464 : vector<8x128xf32>
    %466 = arith.negf %465 : vector<8x128xf32>
    %467 = math.exp %466 : vector<8x128xf32>
    %cst_157 = arith.constant 1.000000e+00 : f32
    %468 = vector.broadcast %cst_157 : f32 to vector<8x128xf32>
    %469 = arith.addf %468, %467 : vector<8x128xf32>
    %470 = arith.divf %468, %469 : vector<8x128xf32>
    %471 = vector.extract_strided_slice %452 {offsets = [0, 256], sizes = [8, 128], strides = [1, 1]} : vector<8x384xf32> to vector<8x128xf32>
    %472 = vector.extract_strided_slice %454 {offsets = [0, 256], sizes = [8, 128], strides = [1, 1]} : vector<8x384xf32> to vector<8x128xf32>
    %473 = arith.addf %472, %319 : vector<8x128xf32>
    %474 = arith.mulf %462, %473 : vector<8x128xf32>
    %475 = arith.addf %471, %474 : vector<8x128xf32>
    %476 = math.tanh %475 : vector<8x128xf32>
    %cst_158 = arith.constant 1.000000e+00 : f32
    %477 = vector.broadcast %cst_158 : f32 to vector<8x128xf32>
    %478 = arith.subf %477, %470 : vector<8x128xf32>
    %479 = arith.mulf %478, %476 : vector<8x128xf32>
    %480 = arith.mulf %470, %449 : vector<8x128xf32>
    %481 = arith.addf %479, %480 : vector<8x128xf32>
    %c5_i32_159 = arith.constant 5 : i32
    %482 = arith.index_cast %c5_i32_159 : i32 to index
    %c0_160 = arith.constant 0 : index
    %c0_161 = arith.constant 0 : index
    %483 = vector.load %arg15[%482, %c0_160, %c0_161] : memref<8x8x384xf32, #tpu.memory_space<vmem>>, vector<1x8x384xf32>
    %484 = vector.shape_cast %483 : vector<1x8x384xf32> to vector<8x384xf32>
    %c0_162 = arith.constant 0 : index
    %c0_163 = arith.constant 0 : index
    %485 = vector.load %arg8[%c0_162, %c0_163] : memref<128x384xf32, #tpu.memory_space<vmem>>, vector<128x384xf32>
    %cst_164 = arith.constant dense<0.000000e+00> : vector<8x384xf32>
    %486 = tpu.matmul %481, %485, %cst_164 {dimension_numbers = #tpu.dot_dimension_numbers<[1], [0], [0], [1], [0, 0, 1, 1], [], []>} : vector<8x128xf32>, vector<128x384xf32>, vector<8x384xf32> -> vector<8x384xf32>
    %487 = vector.extract_strided_slice %484 {offsets = [0, 0], sizes = [8, 128], strides = [1, 1]} : vector<8x384xf32> to vector<8x128xf32>
    %488 = vector.extract_strided_slice %486 {offsets = [0, 0], sizes = [8, 128], strides = [1, 1]} : vector<8x384xf32> to vector<8x128xf32>
    %489 = arith.addf %487, %488 : vector<8x128xf32>
    %490 = arith.negf %489 : vector<8x128xf32>
    %491 = math.exp %490 : vector<8x128xf32>
    %cst_165 = arith.constant 1.000000e+00 : f32
    %492 = vector.broadcast %cst_165 : f32 to vector<8x128xf32>
    %493 = arith.addf %492, %491 : vector<8x128xf32>
    %494 = arith.divf %492, %493 : vector<8x128xf32>
    %495 = vector.extract_strided_slice %484 {offsets = [0, 128], sizes = [8, 128], strides = [1, 1]} : vector<8x384xf32> to vector<8x128xf32>
    %496 = vector.extract_strided_slice %486 {offsets = [0, 128], sizes = [8, 128], strides = [1, 1]} : vector<8x384xf32> to vector<8x128xf32>
    %497 = arith.addf %495, %496 : vector<8x128xf32>
    %498 = arith.negf %497 : vector<8x128xf32>
    %499 = math.exp %498 : vector<8x128xf32>
    %cst_166 = arith.constant 1.000000e+00 : f32
    %500 = vector.broadcast %cst_166 : f32 to vector<8x128xf32>
    %501 = arith.addf %500, %499 : vector<8x128xf32>
    %502 = arith.divf %500, %501 : vector<8x128xf32>
    %503 = vector.extract_strided_slice %484 {offsets = [0, 256], sizes = [8, 128], strides = [1, 1]} : vector<8x384xf32> to vector<8x128xf32>
    %504 = vector.extract_strided_slice %486 {offsets = [0, 256], sizes = [8, 128], strides = [1, 1]} : vector<8x384xf32> to vector<8x128xf32>
    %505 = arith.addf %504, %319 : vector<8x128xf32>
    %506 = arith.mulf %494, %505 : vector<8x128xf32>
    %507 = arith.addf %503, %506 : vector<8x128xf32>
    %508 = math.tanh %507 : vector<8x128xf32>
    %cst_167 = arith.constant 1.000000e+00 : f32
    %509 = vector.broadcast %cst_167 : f32 to vector<8x128xf32>
    %510 = arith.subf %509, %502 : vector<8x128xf32>
    %511 = arith.mulf %510, %508 : vector<8x128xf32>
    %512 = arith.mulf %502, %481 : vector<8x128xf32>
    %513 = arith.addf %511, %512 : vector<8x128xf32>
    %c6_i32_168 = arith.constant 6 : i32
    %514 = arith.index_cast %c6_i32_168 : i32 to index
    %c0_169 = arith.constant 0 : index
    %c0_170 = arith.constant 0 : index
    %515 = vector.load %arg15[%514, %c0_169, %c0_170] : memref<8x8x384xf32, #tpu.memory_space<vmem>>, vector<1x8x384xf32>
    %516 = vector.shape_cast %515 : vector<1x8x384xf32> to vector<8x384xf32>
    %c0_171 = arith.constant 0 : index
    %c0_172 = arith.constant 0 : index
    %517 = vector.load %arg8[%c0_171, %c0_172] : memref<128x384xf32, #tpu.memory_space<vmem>>, vector<128x384xf32>
    %cst_173 = arith.constant dense<0.000000e+00> : vector<8x384xf32>
    %518 = tpu.matmul %513, %517, %cst_173 {dimension_numbers = #tpu.dot_dimension_numbers<[1], [0], [0], [1], [0, 0, 1, 1], [], []>} : vector<8x128xf32>, vector<128x384xf32>, vector<8x384xf32> -> vector<8x384xf32>
    %519 = vector.extract_strided_slice %516 {offsets = [0, 0], sizes = [8, 128], strides = [1, 1]} : vector<8x384xf32> to vector<8x128xf32>
    %520 = vector.extract_strided_slice %518 {offsets = [0, 0], sizes = [8, 128], strides = [1, 1]} : vector<8x384xf32> to vector<8x128xf32>
    %521 = arith.addf %519, %520 : vector<8x128xf32>
    %522 = arith.negf %521 : vector<8x128xf32>
    %523 = math.exp %522 : vector<8x128xf32>
    %cst_174 = arith.constant 1.000000e+00 : f32
    %524 = vector.broadcast %cst_174 : f32 to vector<8x128xf32>
    %525 = arith.addf %524, %523 : vector<8x128xf32>
    %526 = arith.divf %524, %525 : vector<8x128xf32>
    %527 = vector.extract_strided_slice %516 {offsets = [0, 128], sizes = [8, 128], strides = [1, 1]} : vector<8x384xf32> to vector<8x128xf32>
    %528 = vector.extract_strided_slice %518 {offsets = [0, 128], sizes = [8, 128], strides = [1, 1]} : vector<8x384xf32> to vector<8x128xf32>
    %529 = arith.addf %527, %528 : vector<8x128xf32>
    %530 = arith.negf %529 : vector<8x128xf32>
    %531 = math.exp %530 : vector<8x128xf32>
    %cst_175 = arith.constant 1.000000e+00 : f32
    %532 = vector.broadcast %cst_175 : f32 to vector<8x128xf32>
    %533 = arith.addf %532, %531 : vector<8x128xf32>
    %534 = arith.divf %532, %533 : vector<8x128xf32>
    %535 = vector.extract_strided_slice %516 {offsets = [0, 256], sizes = [8, 128], strides = [1, 1]} : vector<8x384xf32> to vector<8x128xf32>
    %536 = vector.extract_strided_slice %518 {offsets = [0, 256], sizes = [8, 128], strides = [1, 1]} : vector<8x384xf32> to vector<8x128xf32>
    %537 = arith.addf %536, %319 : vector<8x128xf32>
    %538 = arith.mulf %526, %537 : vector<8x128xf32>
    %539 = arith.addf %535, %538 : vector<8x128xf32>
    %540 = math.tanh %539 : vector<8x128xf32>
    %cst_176 = arith.constant 1.000000e+00 : f32
    %541 = vector.broadcast %cst_176 : f32 to vector<8x128xf32>
    %542 = arith.subf %541, %534 : vector<8x128xf32>
    %543 = arith.mulf %542, %540 : vector<8x128xf32>
    %544 = arith.mulf %534, %513 : vector<8x128xf32>
    %545 = arith.addf %543, %544 : vector<8x128xf32>
    %c7_i32_177 = arith.constant 7 : i32
    %546 = arith.index_cast %c7_i32_177 : i32 to index
    %c0_178 = arith.constant 0 : index
    %c0_179 = arith.constant 0 : index
    %547 = vector.load %arg15[%546, %c0_178, %c0_179] : memref<8x8x384xf32, #tpu.memory_space<vmem>>, vector<1x8x384xf32>
    %548 = vector.shape_cast %547 : vector<1x8x384xf32> to vector<8x384xf32>
    %c0_180 = arith.constant 0 : index
    %c0_181 = arith.constant 0 : index
    %549 = vector.load %arg8[%c0_180, %c0_181] : memref<128x384xf32, #tpu.memory_space<vmem>>, vector<128x384xf32>
    %cst_182 = arith.constant dense<0.000000e+00> : vector<8x384xf32>
    %550 = tpu.matmul %545, %549, %cst_182 {dimension_numbers = #tpu.dot_dimension_numbers<[1], [0], [0], [1], [0, 0, 1, 1], [], []>} : vector<8x128xf32>, vector<128x384xf32>, vector<8x384xf32> -> vector<8x384xf32>
    %551 = vector.extract_strided_slice %548 {offsets = [0, 0], sizes = [8, 128], strides = [1, 1]} : vector<8x384xf32> to vector<8x128xf32>
    %552 = vector.extract_strided_slice %550 {offsets = [0, 0], sizes = [8, 128], strides = [1, 1]} : vector<8x384xf32> to vector<8x128xf32>
    %553 = arith.addf %551, %552 : vector<8x128xf32>
    %554 = arith.negf %553 : vector<8x128xf32>
    %555 = math.exp %554 : vector<8x128xf32>
    %cst_183 = arith.constant 1.000000e+00 : f32
    %556 = vector.broadcast %cst_183 : f32 to vector<8x128xf32>
    %557 = arith.addf %556, %555 : vector<8x128xf32>
    %558 = arith.divf %556, %557 : vector<8x128xf32>
    %559 = vector.extract_strided_slice %548 {offsets = [0, 128], sizes = [8, 128], strides = [1, 1]} : vector<8x384xf32> to vector<8x128xf32>
    %560 = vector.extract_strided_slice %550 {offsets = [0, 128], sizes = [8, 128], strides = [1, 1]} : vector<8x384xf32> to vector<8x128xf32>
    %561 = arith.addf %559, %560 : vector<8x128xf32>
    %562 = arith.negf %561 : vector<8x128xf32>
    %563 = math.exp %562 : vector<8x128xf32>
    %cst_184 = arith.constant 1.000000e+00 : f32
    %564 = vector.broadcast %cst_184 : f32 to vector<8x128xf32>
    %565 = arith.addf %564, %563 : vector<8x128xf32>
    %566 = arith.divf %564, %565 : vector<8x128xf32>
    %567 = vector.extract_strided_slice %548 {offsets = [0, 256], sizes = [8, 128], strides = [1, 1]} : vector<8x384xf32> to vector<8x128xf32>
    %568 = vector.extract_strided_slice %550 {offsets = [0, 256], sizes = [8, 128], strides = [1, 1]} : vector<8x384xf32> to vector<8x128xf32>
    %569 = arith.addf %568, %319 : vector<8x128xf32>
    %570 = arith.mulf %558, %569 : vector<8x128xf32>
    %571 = arith.addf %567, %570 : vector<8x128xf32>
    %572 = math.tanh %571 : vector<8x128xf32>
    %cst_185 = arith.constant 1.000000e+00 : f32
    %573 = vector.broadcast %cst_185 : f32 to vector<8x128xf32>
    %574 = arith.subf %573, %566 : vector<8x128xf32>
    %575 = arith.mulf %574, %572 : vector<8x128xf32>
    %576 = arith.mulf %566, %545 : vector<8x128xf32>
    %577 = arith.addf %575, %576 : vector<8x128xf32>
    %c8_i32_186 = arith.constant 8 : i32
    %c1_187 = arith.constant 1 : index
    %c0_188 = arith.constant 0 : index
    %c0_189 = arith.constant 0 : index
    %578 = vector.load %arg13[%c1_187, %c0_188, %c0_189] : memref<2x8x128xf32, #tpu.memory_space<vmem>>, vector<1x8x128xf32>
    %579 = vector.shape_cast %578 : vector<1x8x128xf32> to vector<8x128xf32>
    %580 = vector.shape_cast %577 : vector<8x128xf32> to vector<1x8x128xf32>
    tpu.vector_store %arg13[%c1_187, %c0_188, %c0_189], %580 {strides = array<i32>} : memref<2x8x128xf32, #tpu.memory_space<vmem>>, vector<1x8x128xf32>,
    %c0_i32_190 = arith.constant 0 : i32
    %581 = arith.cmpi eq, %arg0, %c0_i32_190 : i32
    %582 = arith.extui %581 : i1 to i32
    %c0_i32_191 = arith.constant 0 : i32
    %583 = arith.cmpi ne, %582, %c0_i32_191 : i32
    scf.if %583 {
      %c1_192 = arith.constant 1 : index
      %c0_193 = arith.constant 0 : index
      %c0_194 = arith.constant 0 : index
      %584 = vector.load %arg13[%c1_192, %c0_193, %c0_194] : memref<2x8x128xf32, #tpu.memory_space<vmem>>, vector<1x8x128xf32>
      %585 = vector.shape_cast %584 : vector<1x8x128xf32> to vector<8x128xf32>
      %c0_195 = arith.constant 0 : index
      %c0_196 = arith.constant 0 : index
      %586 = vector.load %arg10[%c0_195, %c0_196] : memref<128x128xf32, #tpu.memory_space<vmem>>, vector<128x128xf32>
      %cst_197 = arith.constant dense<0.000000e+00> : vector<8x128xf32>
      %587 = tpu.matmul %585, %586, %cst_197 {dimension_numbers = #tpu.dot_dimension_numbers<[1], [0], [0], [1], [0, 0, 1, 1], [], []>} : vector<8x128xf32>, vector<128x128xf32>, vector<8x128xf32> -> vector<8x128xf32>
      %c0_198 = arith.constant 0 : index
      %c0_199 = arith.constant 0 : index
      %588 = vector.load %arg11[%c0_198, %c0_199] : memref<1x128xf32, #tpu.memory_space<vmem>>, vector<1x128xf32>
      %589 = vector.broadcast %588 : vector<1x128xf32> to vector<8x128xf32>
      %590 = arith.addf %587, %589 : vector<8x128xf32>
      %c0_200 = arith.constant 0 : index
      %c0_201 = arith.constant 0 : index
      %591 = vector.load %arg12[%c0_200, %c0_201] : memref<8x128xf32, #tpu.memory_space<vmem>>, vector<8x128xf32>
      tpu.vector_store %arg12[%c0_200, %c0_201], %590 {strides = array<i32>} : memref<8x128xf32, #tpu.memory_space<vmem>>, vector<8x128xf32>,
    } else {
    }
    return
  }
  func.func @transform_0(%arg0: i32) -> (i32, i32, i32) {
    %c0_i32 = arith.constant 0 : i32
    %c0_i32_0 = arith.constant 0 : i32
    %c0_i32_1 = arith.constant 0 : i32
    return %arg0, %c0_i32, %c0_i32_0 : i32, i32, i32
  }
  func.func @transform_1(%arg0: i32) -> (i32, i32) {
    %c0_i32 = arith.constant 0 : i32
    %c0_i32_0 = arith.constant 0 : i32
    %c0_i32_1 = arith.constant 0 : i32
    return %c0_i32, %c0_i32_0 : i32, i32
  }
  func.func @transform_2(%arg0: i32) -> (i32, i32) {
    %c0_i32 = arith.constant 0 : i32
    %c0_i32_0 = arith.constant 0 : i32
    %c0_i32_1 = arith.constant 0 : i32
    return %c0_i32, %c0_i32_0 : i32, i32
  }
  func.func @transform_3(%arg0: i32) -> (i32, i32) {
    %c0_i32 = arith.constant 0 : i32
    %c0_i32_0 = arith.constant 0 : i32
    %c0_i32_1 = arith.constant 0 : i32
    return %c0_i32, %c0_i32_0 : i32, i32
  }
  func.func @transform_4(%arg0: i32) -> (i32, i32) {
    %c0_i32 = arith.constant 0 : i32
    %c0_i32_0 = arith.constant 0 : i32
    %c0_i32_1 = arith.constant 0 : i32
    return %c0_i32, %c0_i32_0 : i32, i32
  }
  func.func @transform_5(%arg0: i32) -> (i32, i32) {
    %c0_i32 = arith.constant 0 : i32
    %c0_i32_0 = arith.constant 0 : i32
    %c0_i32_1 = arith.constant 0 : i32
    return %c0_i32, %c0_i32_0 : i32, i32
  }
  func.func @transform_6(%arg0: i32) -> (i32, i32) {
    %c0_i32 = arith.constant 0 : i32
    %c0_i32_0 = arith.constant 0 : i32
    %c0_i32_1 = arith.constant 0 : i32
    return %c0_i32, %c0_i32_0 : i32, i32
  }
  func.func @transform_7(%arg0: i32) -> (i32, i32) {
    %c0_i32 = arith.constant 0 : i32
    %c0_i32_0 = arith.constant 0 : i32
    %c0_i32_1 = arith.constant 0 : i32
    return %c0_i32, %c0_i32_0 : i32, i32
  }
  func.func @transform_8(%arg0: i32) -> (i32, i32) {
    %c0_i32 = arith.constant 0 : i32
    %c0_i32_0 = arith.constant 0 : i32
    %c0_i32_1 = arith.constant 0 : i32
    return %c0_i32, %c0_i32_0 : i32, i32
  }
  func.func @transform_9(%arg0: i32) -> (i32, i32) {
    %c0_i32 = arith.constant 0 : i32
    %c0_i32_0 = arith.constant 0 : i32
    %c0_i32_1 = arith.constant 0 : i32
    return %c0_i32, %c0_i32_0 : i32, i32
  }
  func.func @transform_10(%arg0: i32) -> (i32, i32) {
    %c0_i32 = arith.constant 0 : i32
    %c0_i32_0 = arith.constant 0 : i32
    %c0_i32_1 = arith.constant 0 : i32
    return %c0_i32, %c0_i32_0 : i32, i32
  }
  func.func @transform_11(%arg0: i32) -> (i32, i32) {
    %c0_i32 = arith.constant 0 : i32
    %c0_i32_0 = arith.constant 0 : i32
    %c0_i32_1 = arith.constant 0 : i32
    return %c0_i32, %c0_i32_0 : i32, i32
  }
}

</mosaic_0001>

<llo_original>
// kernel: tpu_custom_call.1
$region0: #{tpu_custom_call.1}
  #allocation0 [shape = 'u32[]', space=smem, size = 0x4, offset = 0x4, fixed_abs, tag = 'smem constant byte address 0x4 - core index']
  #allocation1 [shape = 'u32[144,128]{1,0:T(1,128)}', space=vmem, size = 0x12000, scoped, tag = 'internal scratch']
  #allocation2 [shape = 'f32[2,8,128]{2,1,0:T(8,128)}', space=vmem, size = 0x2000, scoped, tag = 'scratch operand']
  #allocation3 [shape = 'f32[8,8,128]{2,1,0:T(8,128)}', space=vmem, size = 0x8000, scoped, tag = 'scratch operand']
  #allocation4 [shape = 'f32[8,8,384]{2,1,0:T(8,128)}', space=vmem, size = 0x18000, scoped, tag = 'scratch operand']
  %s0 = inlined_call_operand.hbm [shape: f32[8,8,128], index: 0, kind: input, shape index: {}]
  %s1 = inlined_call_operand.hbm [shape: f32[128,384], index: 1, kind: input, shape index: {}]
  %s2 = inlined_call_operand.vmem [shape: f32[1,384], index: 2, kind: input, shape index: {}]
  %s3 = inlined_call_operand.hbm [shape: f32[128,384], index: 3, kind: input, shape index: {}]
  %s4 = inlined_call_operand.vmem [shape: f32[1,128], index: 4, kind: input, shape index: {}]
  %s5 = inlined_call_operand.hbm [shape: f32[128,384], index: 5, kind: input, shape index: {}]
  %s6 = inlined_call_operand.vmem [shape: f32[1,384], index: 6, kind: input, shape index: {}]
  %s7 = inlined_call_operand.hbm [shape: f32[128,384], index: 7, kind: input, shape index: {}]
  %s8 = inlined_call_operand.vmem [shape: f32[1,128], index: 8, kind: input, shape index: {}]
  %s9 = inlined_call_operand.hbm [shape: f32[128,128], index: 9, kind: input, shape index: {}]
  %s10 = inlined_call_operand.vmem [shape: f32[1,128], index: 10, kind: input, shape index: {}]
  %s11 = inlined_call_operand.hbm [shape: f32[8,128], index: 11, kind: output, shape index: {}]
  %s12 = sld [smem:[#allocation0]]
  $region86: #{tpu_custom_call.1} parent=0
    _
  %s14 = ssub.s32 1, %s12
  %s15 = scalar_select 0, %s14, %s12
  $region1: #{tpu_custom_call.1} parent=0
    #allocation5 [shape = 'u8[32768]{0}', space=vmem, size = 0x8000, scoped, tag = 'input window, operand 0, single buffered']
    #allocation6 [shape = 's32[1]{0}', space=sflag, size = 0x4, scoped, tag = 'scoped memory for tpu_custom_call.1']
    #allocation7 [shape = 's32[1]{0}', space=sflag, size = 0x4, scoped, tag = 'scoped memory for tpu_custom_call.1']
    #allocation8 [shape = 'u8[196608]{0}', space=vmem, size = 0x30000, scoped, tag = 'input window, operand 1, single buffered']
    #allocation9 [shape = 's32[1]{0}', space=sflag, size = 0x4, scoped, tag = 'scoped memory for tpu_custom_call.1']
    #allocation10 [shape = 'u8[196608]{0}', space=vmem, size = 0x30000, scoped, tag = 'input window, operand 3, single buffered']
    #allocation11 [shape = 'u8[196608]{0}', space=vmem, size = 0x30000, scoped, tag = 'input window, operand 5, single buffered']
    #allocation12 [shape = 's32[1]{0}', space=sflag, size = 0x4, scoped, tag = 'scoped memory for tpu_custom_call.1']
    #allocation13 [shape = 'u8[196608]{0}', space=vmem, size = 0x30000, scoped, tag = 'input window, operand 7, single buffered']
    #allocation14 [shape = 'u8[65536]{0}', space=vmem, size = 0x10000, scoped, tag = 'input window, operand 9, single buffered']
    #allocation15 [shape = 's32[1]{0}', space=sflag, size = 0x4, scoped, tag = 'scoped memory for tpu_custom_call.1']
    #allocation16 [shape = 'u8[4096]{0}', space=vmem, size = 0x1000, scoped, tag = 'output window, operand 0, single buffered']
    %16 = vsyncpa [#allocation6], 0
    %17 = vsyncpa [#allocation9], 0
    %18 = vsyncpa [#allocation12], 0
    %19 = vsyncpa [#allocation15], 0
    %20 = vsyncpa [#allocation7], 0
    // Predicated region
    $region2: #{tpu_custom_call.1} parent=1 // pred_check
      _
    $region3: #{tpu_custom_call.1} parent=1 // pred_check_branch
      %22 = sbr.rel (0) target = $region5
    $region4: #{tpu_custom_call.1} parent=1 // pred_region
      %s24 = ssub.s32 1024, 1024
      %25 = vsyncadd [#allocation6], %s24
      %s26 = sshll.u32 [#allocation5], 4
      %s27 = int_to_ptr.vmem [resolvable:$true] %s26
      %32 = dma.hbm_to_vmem [thread:$0]  %s0, 1024, %s27, [#allocation6], 128, 128, 8
    $region5: #{tpu_custom_call.1} parent=1 // pred_fallthru
      _
    // Predicated region
    $region6: #{tpu_custom_call.1} parent=1 // pred_check
      _
    $region7: #{tpu_custom_call.1} parent=1 // pred_check_branch
      %34 = sbr.rel (0) target = $region9
    $region8: #{tpu_custom_call.1} parent=1 // pred_region
      %s36 = ssub.s32 6144, 6144
      %37 = vsyncadd [#allocation9], %s36
      %s38 = sshll.u32 [#allocation8], 4
      %s39 = int_to_ptr.vmem [resolvable:$true] %s38
      %44 = dma.hbm_to_vmem [thread:$0]  %s1, 6144, %s39, [#allocation9], 384, 384, 24
    $region9: #{tpu_custom_call.1} parent=1 // pred_fallthru
      _
    // Predicated region
    $region10: #{tpu_custom_call.1} parent=1 // pred_check
      _
    $region11: #{tpu_custom_call.1} parent=1 // pred_check_branch
      %46 = sbr.rel (0) target = $region13
    $region12: #{tpu_custom_call.1} parent=1 // pred_region
      _
    $region13: #{tpu_custom_call.1} parent=1 // pred_fallthru
      _
    // Predicated region
    $region14: #{tpu_custom_call.1} parent=1 // pred_check
      _
    $region15: #{tpu_custom_call.1} parent=1 // pred_check_branch
      %48 = sbr.rel (0) target = $region17
    $region16: #{tpu_custom_call.1} parent=1 // pred_region
      %s50 = ssub.s32 6144, 6144
      %51 = vsyncadd [#allocation9], %s50
      %s52 = sshll.u32 [#allocation10], 4
      %s53 = int_to_ptr.vmem [resolvable:$true] %s52
      %58 = dma.hbm_to_vmem [thread:$0]  %s3, 6144, %s53, [#allocation9], 384, 384, 24
    $region17: #{tpu_custom_call.1} parent=1 // pred_fallthru
      _
    // Predicated region
    $region18: #{tpu_custom_call.1} parent=1 // pred_check
      _
    $region19: #{tpu_custom_call.1} parent=1 // pred_check_branch
      %60 = sbr.rel (0) target = $region21
    $region20: #{tpu_custom_call.1} parent=1 // pred_region
      _
    $region21: #{tpu_custom_call.1} parent=1 // pred_fallthru
      _
    // Predicated region
    $region22: #{tpu_custom_call.1} parent=1 // pred_check
      _
    $region23: #{tpu_custom_call.1} parent=1 // pred_check_branch
      %62 = sbr.rel (0) target = $region25
    $region24: #{tpu_custom_call.1} parent=1 // pred_region
      %s64 = ssub.s32 6144, 6144
      %65 = vsyncadd [#allocation12], %s64
      %s66 = sshll.u32 [#allocation11], 4
      %s67 = int_to_ptr.vmem [resolvable:$true] %s66
      %72 = dma.hbm_to_vmem [thread:$0]  %s5, 6144, %s67, [#allocation12], 384, 384, 24
    $region25: #{tpu_custom_call.1} parent=1 // pred_fallthru
      _
    // Predicated region
    $region26: #{tpu_custom_call.1} parent=1 // pred_check
      _
    $region27: #{tpu_custom_call.1} parent=1 // pred_check_branch
      %74 = sbr.rel (0) target = $region29
    $region28: #{tpu_custom_call.1} parent=1 // pred_region
      _
    $region29: #{tpu_custom_call.1} parent=1 // pred_fallthru
      _
    // Predicated region
    $region30: #{tpu_custom_call.1} parent=1 // pred_check
      _
    $region31: #{tpu_custom_call.1} parent=1 // pred_check_branch
      %76 = sbr.rel (0) target = $region33
    $region32: #{tpu_custom_call.1} parent=1 // pred_region
      %s78 = ssub.s32 6144, 6144
      %79 = vsyncadd [#allocation12], %s78
      %s80 = sshll.u32 [#allocation13], 4
      %s81 = int_to_ptr.vmem [resolvable:$true] %s80
      %86 = dma.hbm_to_vmem [thread:$0]  %s7, 6144, %s81, [#allocation12], 384, 384, 24
    $region33: #{tpu_custom_call.1} parent=1 // pred_fallthru
      _
    // Predicated region
    $region34: #{tpu_custom_call.1} parent=1 // pred_check
      _
    $region35: #{tpu_custom_call.1} parent=1 // pred_check_branch
      %88 = sbr.rel (0) target = $region37
    $region36: #{tpu_custom_call.1} parent=1 // pred_region
      _
    $region37: #{tpu_custom_call.1} parent=1 // pred_fallthru
      _
    // Predicated region
    $region38: #{tpu_custom_call.1} parent=1 // pred_check
      _
    $region39: #{tpu_custom_call.1} parent=1 // pred_check_branch
      %90 = sbr.rel (0) target = $region41
    $region40: #{tpu_custom_call.1} parent=1 // pred_region
      %s92 = ssub.s32 2048, 2048
      %93 = vsyncadd [#allocation15], %s92
      %s94 = sshll.u32 [#allocation14], 4
      %s95 = int_to_ptr.vmem [resolvable:$true] %s94
      %100 = dma.hbm_to_vmem [thread:$0]  %s9, 2048, %s95, [#allocation15], 128, 128, 8
    $region41: #{tpu_custom_call.1} parent=1 // pred_fallthru
      _
    // Predicated region
    $region42: #{tpu_custom_call.1} parent=1 // pred_check
      _
    $region43: #{tpu_custom_call.1} parent=1 // pred_check_branch
      %102 = sbr.rel (0) target = $region45
    $region44: #{tpu_custom_call.1} parent=1 // pred_region
      _
    $region45: #{tpu_custom_call.1} parent=1 // pred_fallthru
      _
    // Predicated region
    $region46: #{tpu_custom_call.1} parent=1 // pred_check
      _
    $region47: #{tpu_custom_call.1} parent=1 // pred_check_branch
      %104 = sbr.rel (0) target = $region49
    $region48: #{tpu_custom_call.1} parent=1 // pred_region
      %105 = dma.done [#allocation6], 1024
    $region49: #{tpu_custom_call.1} parent=1 // pred_fallthru
      _
    // Predicated region
    $region50: #{tpu_custom_call.1} parent=1 // pred_check
      _
    $region51: #{tpu_custom_call.1} parent=1 // pred_check_branch
      %107 = sbr.rel (0) target = $region53
    $region52: #{tpu_custom_call.1} parent=1 // pred_region
      %108 = dma.done [#allocation9], 6144
    $region53: #{tpu_custom_call.1} parent=1 // pred_fallthru
      _
    // Predicated region
    $region54: #{tpu_custom_call.1} parent=1 // pred_check
      _
    $region55: #{tpu_custom_call.1} parent=1 // pred_check_branch
      %110 = sbr.rel (0) target = $region57
    $region56: #{tpu_custom_call.1} parent=1 // pred_region
      %111 = dma.done [#allocation9], 6144
    $region57: #{tpu_custom_call.1} parent=1 // pred_fallthru
      _
    // Predicated region
    $region58: #{tpu_custom_call.1} parent=1 // pred_check
      _
    $region59: #{tpu_custom_call.1} parent=1 // pred_check_branch
      %113 = sbr.rel (0) target = $region61
    $region60: #{tpu_custom_call.1} parent=1 // pred_region
      %114 = dma.done [#allocation12], 6144
    $region61: #{tpu_custom_call.1} parent=1 // pred_fallthru
      _
    // Predicated region
    $region62: #{tpu_custom_call.1} parent=1 // pred_check
      _
    $region63: #{tpu_custom_call.1} parent=1 // pred_check_branch
      %116 = sbr.rel (0) target = $region65
    $region64: #{tpu_custom_call.1} parent=1 // pred_region
      %117 = dma.done [#allocation12], 6144
    $region65: #{tpu_custom_call.1} parent=1 // pred_fallthru
      _
    // Predicated region
    $region66: #{tpu_custom_call.1} parent=1 // pred_check
      _
    $region67: #{tpu_custom_call.1} parent=1 // pred_check_branch
      %119 = sbr.rel (0) target = $region69
    $region68: #{tpu_custom_call.1} parent=1 // pred_region
      %120 = dma.done [#allocation15], 2048
    $region69: #{tpu_custom_call.1} parent=1 // pred_fallthru
      _
    %p121 = scmp.eq.s32.totalorder 0, 0
    // Predicated region
    $region70: #{tpu_custom_call.1} parent=1 // pred_check
      %p122 = pneg %p121
    $region71: #{tpu_custom_call.1} parent=1 // pred_check_branch
      %124 = sbr.rel (%p122) target = $region73
    $region72: #{tpu_custom_call.1} parent=1 // pred_region
      %125 = vst [vmem:[#allocation2] sm:$0xff] 0.0
      %126 = vst [vmem:[#allocation2 + $0x8] sm:$0xff] 0.0
    $region73: #{tpu_custom_call.1} parent=1 // pred_fallthru
      _
    %v127 = vld [vmem:[#allocation5] sm:$0xff]
    %v128 = vld [vmem:[#allocation5 + $0x8] sm:$0xff]
    %v129 = vld [vmem:[#allocation5 + $0x10] sm:$0xff]
    %v130 = vld [vmem:[#allocation5 + $0x18] sm:$0xff]
    %v131 = vld [vmem:[#allocation5 + $0x20] sm:$0xff]
    %v132 = vld [vmem:[#allocation5 + $0x28] sm:$0xff]
    %v133 = vld [vmem:[#allocation5 + $0x30] sm:$0xff]
    %v134 = vld [vmem:[#allocation5 + $0x38] sm:$0xff]
    %v135 = vld [vmem:[#allocation8] sm:$0xff]
    %v136 = vld [vmem:[#allocation8 + $0x8] sm:$0xff]
    %v137 = vld [vmem:[#allocation8 + $0x10] sm:$0xff]
    %v138 = vld [vmem:[#allocation8 + $0x18] sm:$0xff]
    %v139 = vld [vmem:[#allocation8 + $0x20] sm:$0xff]
    %v140 = vld [vmem:[#allocation8 + $0x28] sm:$0xff]
    %v141 = vld [vmem:[#allocation8 + $0x30] sm:$0xff]
    %v142 = vld [vmem:[#allocation8 + $0x38] sm:$0xff]
    %v143 = vld [vmem:[#allocation8 + $0x40] sm:$0xff]
    %v144 = vld [vmem:[#allocation8 + $0x48] sm:$0xff]
    %v145 = vld [vmem:[#allocation8 + $0x50] sm:$0xff]
    %v146 = vld [vmem:[#allocation8 + $0x58] sm:$0xff]
    %v147 = vld [vmem:[#allocation8 + $0x60] sm:$0xff]
    %v148 = vld [vmem:[#allocation8 + $0x68] sm:$0xff]
    %v149 = vld [vmem:[#allocation8 + $0x70] sm:$0xff]
    %v150 = vld [vmem:[#allocation8 + $0x78] sm:$0xff]
    %v151 = vld [vmem:[#allocation8 + $0x80] sm:$0xff]
    %v152 = vld [vmem:[#allocation8 + $0x88] sm:$0xff]
    %v153 = vld [vmem:[#allocation8 + $0x90] sm:$0xff]
    %v154 = vld [vmem:[#allocation8 + $0x98] sm:$0xff]
    %v155 = vld [vmem:[#allocation8 + $0xa0] sm:$0xff]
    %v156 = vld [vmem:[#allocation8 + $0xa8] sm:$0xff]
    %v157 = vld [vmem:[#allocation8 + $0xb0] sm:$0xff]
    %v158 = vld [vmem:[#allocation8 + $0xb8] sm:$0xff]
    %v159 = vld [vmem:[#allocation8 + $0xc0] sm:$0xff]
    %v160 = vld [vmem:[#allocation8 + $0xc8] sm:$0xff]
    %v161 = vld [vmem:[#allocation8 + $0xd0] sm:$0xff]
    %v162 = vld [vmem:[#allocation8 + $0xd8] sm:$0xff]
    %v163 = vld [vmem:[#allocation8 + $0xe0] sm:$0xff]
    %v164 = vld [vmem:[#allocation8 + $0xe8] sm:$0xff]
    %v165 = vld [vmem:[#allocation8 + $0xf0] sm:$0xff]
    %v166 = vld [vmem:[#allocation8 + $0xf8] sm:$0xff]
    %v167 = vld [vmem:[#allocation8 + $0x100] sm:$0xff]
    %v168 = vld [vmem:[#allocation8 + $0x108] sm:$0xff]
    %v169 = vld [vmem:[#allocation8 + $0x110] sm:$0xff]
    %v170 = vld [vmem:[#allocation8 + $0x118] sm:$0xff]
    %v171 = vld [vmem:[#allocation8 + $0x120] sm:$0xff]
    %v172 = vld [vmem:[#allocation8 + $0x128] sm:$0xff]
    %v173 = vld [vmem:[#allocation8 + $0x130] sm:$0xff]
    %v174 = vld [vmem:[#allocation8 + $0x138] sm:$0xff]
    %v175 = vld [vmem:[#allocation8 + $0x140] sm:$0xff]
    %v176 = vld [vmem:[#allocation8 + $0x148] sm:$0xff]
    %v177 = vld [vmem:[#allocation8 + $0x150] sm:$0xff]
    %v178 = vld [vmem:[#allocation8 + $0x158] sm:$0xff]
    %v179 = vld [vmem:[#allocation8 + $0x160] sm:$0xff]
    %v180 = vld [vmem:[#allocation8 + $0x168] sm:$0xff]
    %v181 = vld [vmem:[#allocation8 + $0x170] sm:$0xff]
    %v182 = vld [vmem:[#allocation8 + $0x178] sm:$0xff]
    %v183 = vld [vmem:[%s2] sm:$0x7]
    %v185 = vlaneseq
    %v186 = vshrl.u32 %v185, 7
    %v187 = vsub.s32 0, %v186
    %v188 = vrot.slane %v183, %v187
    %v189 = vlaneseq
    %v190 = vshrl.u32 %v189, 7
    %v191 = vsub.s32 1, %v190
    %v192 = vrot.slane %v183, %v191
    %v193 = vlaneseq
    %v194 = vshrl.u32 %v193, 7
    %v195 = vsub.s32 2, %v194
    %v196 = vrot.slane %v183, %v195
    %200 = vmatprep.subr.mxu0 %v136
    %201 = vmatpush1.msra.mxu0 %v135
    %202 = vmatprep.subr.mxu0 %v139
    %203 = vmatpush1.msra.mxu0 %v138
    %204 = vmatprep.subr.mxu0 %v142
    %205 = vmatpush1.msra.mxu0 %v141
    %206 = vmatprep.subr.mxu0 %v145
    %207 = vmatpush1.msra.mxu0 %v144
    %208 = vmatprep.subr.mxu0 %v148
    %209 = vmatpush1.msra.mxu0 %v147
    %210 = vmatprep.subr.mxu0 %v151
    %211 = vmatpush1.msra.mxu0 %v150
    %212 = vmatprep.subr.mxu0 %v154
    %213 = vmatpush1.msra.mxu0 %v153
    %214 = vmatprep.subr.mxu0 %v157
    %215 = vmatpush1.msra.mxu0 %v156
    %216 = vmatprep.subr.mxu0 %v160
    %217 = vmatpush1.msra.mxu0 %v159
    %218 = vmatprep.subr.mxu0 %v163
    %219 = vmatpush1.msra.mxu0 %v162
    %220 = vmatprep.subr.mxu0 %v166
    %221 = vmatpush1.msra.mxu0 %v165
    %222 = vmatprep.subr.mxu0 %v169
    %223 = vmatpush1.msra.mxu0 %v168
    %224 = vmatprep.subr.mxu0 %v172
    %225 = vmatpush1.msra.mxu0 %v171
    %226 = vmatprep.subr.mxu0 %v175
    %227 = vmatpush1.msra.mxu0 %v174
    %228 = vmatprep.subr.mxu0 %v178
    %229 = vmatpush1.msra.mxu0 %v177
    %230 = vmatprep.subr.mxu0 %v181
    %231 = vmatpush1.msra.mxu0 %v180
    %232 = vmatprep.subr.mxu0 0.0
    %233 = vmatpush1.msra.mxu0 0.0
    %234 = vmatprep.subr.mxu0 0.0
    %235 = vmatpush1.msra.mxu0 0.0
    %236 = vmatprep.subr.mxu0 0.0
    %237 = vmatpush1.msra.mxu0 0.0
    %238 = vmatprep.subr.mxu0 0.0
    %239 = vmatpush1.msra.mxu0 0.0
    %240 = vmatprep.subr.mxu0 0.0
    %241 = vmatpush1.msra.mxu0 0.0
    %242 = vmatprep.subr.mxu0 0.0
    %243 = vmatpush1.msra.mxu0 0.0
    %244 = vmatprep.subr.mxu0 0.0
    %245 = vmatpush1.msra.mxu0 0.0
    %246 = vmatprep.subr.mxu0 0.0
    %247 = vmatpush1.msra.mxu0 0.0
    %248 = vmatprep.subr.mxu0 0.0
    %249 = vmatpush1.msra.mxu0 0.0
    %250 = vmatprep.subr.mxu0 0.0
    %251 = vmatpush1.msra.mxu0 0.0
    %252 = vmatprep.subr.mxu0 0.0
    %253 = vmatpush1.msra.mxu0 0.0
    %254 = vmatprep.subr.mxu0 0.0
    %255 = vmatpush1.msra.mxu0 0.0
    %256 = vmatprep.subr.mxu0 0.0
    %257 = vmatpush1.msra.mxu0 0.0
    %258 = vmatprep.subr.mxu0 0.0
    %259 = vmatpush1.msra.mxu0 0.0
    %260 = vmatprep.subr.mxu0 0.0
    %261 = vmatpush1.msra.mxu0 0.0
    %262 = vmatprep.subr.mxu0 0.0
    %263 = vmatpush1.msra.mxu0 0.0
    %264 = vmatprep.mubr.f32.mxu0 0.0
    %265 = vmatmul.mubr.f32.gmra.mrb[0].mxu0 %v127
    %v266 = vpop.f32.mrb[0].mxu0
    %v267 = vadd.f32 %v188, %v266
    %v268 = vpop.f32.mrb[0].mxu0
    %v269 = vadd.f32 %v192, %v268
    %270 = vmatprep.mubr.f32.mxu0 0.0
    %271 = vmatmul.mubr.f32.gmra.mrb[0].mxu0 %v128
    %v272 = vpop.f32.mrb[0].mxu0
    %v273 = vadd.f32 %v188, %v272
    %v274 = vpop.f32.mrb[0].mxu0
    %v275 = vadd.f32 %v192, %v274
    %276 = vmatprep.mubr.f32.mxu0 0.0
    %277 = vmatmul.mubr.f32.gmra.mrb[0].mxu0 %v129
    %v278 = vpop.f32.mrb[0].mxu0
    %v279 = vadd.f32 %v188, %v278
    %v280 = vpop.f32.mrb[0].mxu0
    %v281 = vadd.f32 %v192, %v280
    %282 = vmatprep.mubr.f32.mxu0 0.0
    %283 = vmatmul.mubr.f32.gmra.mrb[0].mxu0 %v130
    %v284 = vpop.f32.mrb[0].mxu0
    %v285 = vadd.f32 %v188, %v284
    %v286 = vpop.f32.mrb[0].mxu0
    %v287 = vadd.f32 %v192, %v286
    %288 = vmatprep.mubr.f32.mxu0 0.0
    %289 = vmatmul.mubr.f32.gmra.mrb[0].mxu0 %v131
    %v290 = vpop.f32.mrb[0].mxu0
    %v291 = vadd.f32 %v188, %v290
    %v292 = vpop.f32.mrb[0].mxu0
    %v293 = vadd.f32 %v192, %v292
    %294 = vmatprep.mubr.f32.mxu0 0.0
    %295 = vmatmul.mubr.f32.gmra.mrb[0].mxu0 %v132
    %v296 = vpop.f32.mrb[0].mxu0
    %v297 = vadd.f32 %v188, %v296
    %v298 = vpop.f32.mrb[0].mxu0
    %v299 = vadd.f32 %v192, %v298
    %300 = vmatprep.mubr.f32.mxu0 0.0
    %301 = vmatmul.mubr.f32.gmra.mrb[0].mxu0 %v133
    %v302 = vpop.f32.mrb[0].mxu0
    %v303 = vadd.f32 %v188, %v302
    %v304 = vpop.f32.mrb[0].mxu0
    %v305 = vadd.f32 %v192, %v304
    %306 = vmatprep.mubr.f32.mxu0 0.0
    %307 = vmatmul.mubr.f32.gmra.mrb[0].mxu0 %v134
    %v308 = vpop.f32.mrb[0].mxu0
    %v309 = vadd.f32 %v188, %v308
    %v310 = vpop.f32.mrb[0].mxu0
    %v311 = vadd.f32 %v192, %v310
    %312 = vdwg.mxu0
    %313 = vmatprep.subr.mxu0 0.0
    %314 = vmatpush1.msra.mxu0 %v137
    %315 = vmatprep.subr.mxu0 0.0
    %316 = vmatpush1.msra.mxu0 %v140
    %317 = vmatprep.subr.mxu0 0.0
    %318 = vmatpush1.msra.mxu0 %v143
    %319 = vmatprep.subr.mxu0 0.0
    %320 = vmatpush1.msra.mxu0 %v146
    %321 = vmatprep.subr.mxu0 0.0
    %322 = vmatpush1.msra.mxu0 %v149
    %323 = vmatprep.subr.mxu0 0.0
    %324 = vmatpush1.msra.mxu0 %v152
    %325 = vmatprep.subr.mxu0 0.0
    %326 = vmatpush1.msra.mxu0 %v155
    %327 = vmatprep.subr.mxu0 0.0
    %328 = vmatpush1.msra.mxu0 %v158
    %329 = vmatprep.subr.mxu0 0.0
    %330 = vmatpush1.msra.mxu0 %v161
    %331 = vmatprep.subr.mxu0 0.0
    %332 = vmatpush1.msra.mxu0 %v164
    %333 = vmatprep.subr.mxu0 0.0
    %334 = vmatpush1.msra.mxu0 %v167
    %335 = vmatprep.subr.mxu0 0.0
    %336 = vmatpush1.msra.mxu0 %v170
    %337 = vmatprep.subr.mxu0 0.0
    %338 = vmatpush1.msra.mxu0 %v173
    %339 = vmatprep.subr.mxu0 0.0
    %340 = vmatpush1.msra.mxu0 %v176
    %341 = vmatprep.subr.mxu0 0.0
    %342 = vmatpush1.msra.mxu0 %v179
    %343 = vmatprep.subr.mxu0 0.0
    %344 = vmatpush1.msra.mxu0 %v182
    %345 = vmatprep.subr.mxu0 0.0
    %346 = vmatpush1.msra.mxu0 0.0
    %347 = vmatprep.subr.mxu0 0.0
    %348 = vmatpush1.msra.mxu0 0.0
    %349 = vmatprep.subr.mxu0 0.0
    %350 = vmatpush1.msra.mxu0 0.0
    %351 = vmatprep.subr.mxu0 0.0
    %352 = vmatpush1.msra.mxu0 0.0
    %353 = vmatprep.subr.mxu0 0.0
    %354 = vmatpush1.msra.mxu0 0.0
    %355 = vmatprep.subr.mxu0 0.0
    %356 = vmatpush1.msra.mxu0 0.0
    %357 = vmatprep.subr.mxu0 0.0
    %358 = vmatpush1.msra.mxu0 0.0
    %359 = vmatprep.subr.mxu0 0.0
    %360 = vmatpush1.msra.mxu0 0.0
    %361 = vmatprep.subr.mxu0 0.0
    %362 = vmatpush1.msra.mxu0 0.0
    %363 = vmatprep.subr.mxu0 0.0
    %364 = vmatpush1.msra.mxu0 0.0
    %365 = vmatprep.subr.mxu0 0.0
    %366 = vmatpush1.msra.mxu0 0.0
    %367 = vmatprep.subr.mxu0 0.0
    %368 = vmatpush1.msra.mxu0 0.0
    %369 = vmatprep.subr.mxu0 0.0
    %370 = vmatpush1.msra.mxu0 0.0
    %371 = vmatprep.subr.mxu0 0.0
    %372 = vmatpush1.msra.mxu0 0.0
    %373 = vmatprep.subr.mxu0 0.0
    %374 = vmatpush1.msra.mxu0 0.0
    %375 = vmatprep.subr.mxu0 0.0
    %376 = vmatpush1.msra.mxu0 0.0
    %377 = vmatprep.mubr.f32.mxu0 0.0
    %378 = vmatmul.mubr.f32.gmra.mrb[0].mxu0 %v127
    %v379 = vpop.f32.mrb[0].mxu0
    %v380 = vadd.f32 %v196, %v379
    %v381 = vpop.f32.mrb[0].mxu0
    %382 = vmatprep.mubr.f32.mxu0 0.0
    %383 = vmatmul.mubr.f32.gmra.mrb[0].mxu0 %v128
    %v384 = vpop.f32.mrb[0].mxu0
    %v385 = vadd.f32 %v196, %v384
    %v386 = vpop.f32.mrb[0].mxu0
    %387 = vmatprep.mubr.f32.mxu0 0.0
    %388 = vmatmul.mubr.f32.gmra.mrb[0].mxu0 %v129
    %v389 = vpop.f32.mrb[0].mxu0
    %v390 = vadd.f32 %v196, %v389
    %v391 = vpop.f32.mrb[0].mxu0
    %392 = vmatprep.mubr.f32.mxu0 0.0
    %393 = vmatmul.mubr.f32.gmra.mrb[0].mxu0 %v130
    %v394 = vpop.f32.mrb[0].mxu0
    %v395 = vadd.f32 %v196, %v394
    %v396 = vpop.f32.mrb[0].mxu0
    %397 = vmatprep.mubr.f32.mxu0 0.0
    %398 = vmatmul.mubr.f32.gmra.mrb[0].mxu0 %v131
    %v399 = vpop.f32.mrb[0].mxu0
    %v400 = vadd.f32 %v196, %v399
    %v401 = vpop.f32.mrb[0].mxu0
    %402 = vmatprep.mubr.f32.mxu0 0.0
    %403 = vmatmul.mubr.f32.gmra.mrb[0].mxu0 %v132
    %v404 = vpop.f32.mrb[0].mxu0
    %v405 = vadd.f32 %v196, %v404
    %v406 = vpop.f32.mrb[0].mxu0
    %407 = vmatprep.mubr.f32.mxu0 0.0
    %408 = vmatmul.mubr.f32.gmra.mrb[0].mxu0 %v133
    %v409 = vpop.f32.mrb[0].mxu0
    %v410 = vadd.f32 %v196, %v409
    %v411 = vpop.f32.mrb[0].mxu0
    %412 = vmatprep.mubr.f32.mxu0 0.0
    %413 = vmatmul.mubr.f32.gmra.mrb[0].mxu0 %v134
    %v414 = vpop.f32.mrb[0].mxu0
    %v415 = vadd.f32 %v196, %v414
    %v416 = vpop.f32.mrb[0].mxu0
    %417 = vdwg.mxu0
    %418 = vst [vmem:[#allocation4] sm:$0xff] %v267
    %419 = vst [vmem:[#allocation4 + $0x8] sm:$0xff] %v269
    %420 = vst [vmem:[#allocation4 + $0x10] sm:$0xff] %v380
    %421 = vst [vmem:[#allocation4 + $0x18] sm:$0xff] %v273
    %422 = vst [vmem:[#allocation4 + $0x20] sm:$0xff] %v275
    %423 = vst [vmem:[#allocation4 + $0x28] sm:$0xff] %v385
    %424 = vst [vmem:[#allocation4 + $0x30] sm:$0xff] %v279
    %425 = vst [vmem:[#allocation4 + $0x38] sm:$0xff] %v281
    %426 = vst [vmem:[#allocation4 + $0x40] sm:$0xff] %v390
    %427 = vst [vmem:[#allocation4 + $0x48] sm:$0xff] %v285
    %428 = vst [vmem:[#allocation4 + $0x50] sm:$0xff] %v287
    %429 = vst [vmem:[#allocation4 + $0x58] sm:$0xff] %v395
    %430 = vst [vmem:[#allocation4 + $0x60] sm:$0xff] %v291
    %431 = vst [vmem:[#allocation4 + $0x68] sm:$0xff] %v293
    %432 = vst [vmem:[#allocation4 + $0x70] sm:$0xff] %v400
    %433 = vst [vmem:[#allocation4 + $0x78] sm:$0xff] %v297
    %434 = vst [vmem:[#allocation4 + $0x80] sm:$0xff] %v299
    %435 = vst [vmem:[#allocation4 + $0x88] sm:$0xff] %v405
    %436 = vst [vmem:[#allocation4 + $0x90] sm:$0xff] %v303
    %437 = vst [vmem:[#allocation4 + $0x98] sm:$0xff] %v305
    %438 = vst [vmem:[#allocation4 + $0xa0] sm:$0xff] %v410
    %439 = vst [vmem:[#allocation4 + $0xa8] sm:$0xff] %v309
    %440 = vst [vmem:[#allocation4 + $0xb0] sm:$0xff] %v311
    %441 = vst [vmem:[#allocation4 + $0xb8] sm:$0xff] %v415
    %v442 = vld [vmem:[%s4] sm:$0x1]
    %v444 = vlaneseq
    %v445 = vshrl.u32 %v444, 7
    %v446 = vsub.s32 0, %v445
    %v447 = vrot.slane %v442, %v446
    %v449 = vld [vmem:[#allocation2] sm:$0xff]
    %v450 = vld [vmem:[#allocation4] sm:$0xff]
    %v451 = vld [vmem:[#allocation4 + $0x8] sm:$0xff]
    %v452 = vld [vmem:[#allocation4 + $0x10] sm:$0xff]
    %v453 = vld [vmem:[#allocation10] sm:$0xff]
    %v454 = vld [vmem:[#allocation10 + $0x8] sm:$0xff]
    %v455 = vld [vmem:[#allocation10 + $0x10] sm:$0xff]
    %v456 = vld [vmem:[#allocation10 + $0x18] sm:$0xff]
    %v457 = vld [vmem:[#allocation10 + $0x20] sm:$0xff]
    %v458 = vld [vmem:[#allocation10 + $0x28] sm:$0xff]
    %v459 = vld [vmem:[#allocation10 + $0x30] sm:$0xff]
    %v460 = vld [vmem:[#allocation10 + $0x38] sm:$0xff]
    %v461 = vld [vmem:[#allocation10 + $0x40] sm:$0xff]
    %v462 = vld [vmem:[#allocation10 + $0x48] sm:$0xff]
    %v463 = vld [vmem:[#allocation10 + $0x50] sm:$0xff]
    %v464 = vld [vmem:[#allocation10 + $0x58] sm:$0xff]
    %v465 = vld [vmem:[#allocation10 + $0x60] sm:$0xff]
    %v466 = vld [vmem:[#allocation10 + $0x68] sm:$0xff]
    %v467 = vld [vmem:[#allocation10 + $0x70] sm:$0xff]
    %v468 = vld [vmem:[#allocation10 + $0x78] sm:$0xff]
    %v469 = vld [vmem:[#allocation10 + $0x80] sm:$0xff]
    %v470 = vld [vmem:[#allocation10 + $0x88] sm:$0xff]
    %v471 = vld [vmem:[#allocation10 + $0x90] sm:$0xff]
    %v472 = vld [vmem:[#allocation10 + $0x98] sm:$0xff]
    %v473 = vld [vmem:[#allocation10 + $0xa0] sm:$0xff]
    %v474 = vld [vmem:[#allocation10 + $0xa8] sm:$0xff]
    %v475 = vld [vmem:[#allocation10 + $0xb0] sm:$0xff]
    %v476 = vld [vmem:[#allocation10 + $0xb8] sm:$0xff]
    %v477 = vld [vmem:[#allocation10 + $0xc0] sm:$0xff]
    %v478 = vld [vmem:[#allocation10 + $0xc8] sm:$0xff]
    %v479 = vld [vmem:[#allocation10 + $0xd0] sm:$0xff]
    %v480 = vld [vmem:[#allocation10 + $0xd8] sm:$0xff]
    %v481 = vld [vmem:[#allocation10 + $0xe0] sm:$0xff]
    %v482 = vld [vmem:[#allocation10 + $0xe8] sm:$0xff]
    %v483 = vld [vmem:[#allocation10 + $0xf0] sm:$0xff]
    %v484 = vld [vmem:[#allocation10 + $0xf8] sm:$0xff]
    %v485 = vld [vmem:[#allocation10 + $0x100] sm:$0xff]
    %v486 = vld [vmem:[#allocation10 + $0x108] sm:$0xff]
    %v487 = vld [vmem:[#allocation10 + $0x110] sm:$0xff]
    %v488 = vld [vmem:[#allocation10 + $0x118] sm:$0xff]
    %v489 = vld [vmem:[#allocation10 + $0x120] sm:$0xff]
    %v490 = vld [vmem:[#allocation10 + $0x128] sm:$0xff]
    %v491 = vld [vmem:[#allocation10 + $0x130] sm:$0xff]
    %v492 = vld [vmem:[#allocation10 + $0x138] sm:$0xff]
    %v493 = vld [vmem:[#allocation10 + $0x140] sm:$0xff]
    %v494 = vld [vmem:[#allocation10 + $0x148] sm:$0xff]
    %v495 = vld [vmem:[#allocation10 + $0x150] sm:$0xff]
    %v496 = vld [vmem:[#allocation10 + $0x158] sm:$0xff]
    %v497 = vld [vmem:[#allocation10 + $0x160] sm:$0xff]
    %v498 = vld [vmem:[#allocation10 + $0x168] sm:$0xff]
    %v499 = vld [vmem:[#allocation10 + $0x170] sm:$0xff]
    %v500 = vld [vmem:[#allocation10 + $0x178] sm:$0xff]
    %501 = vmatprep.subr.mxu0 %v454
    %502 = vmatpush1.msra.mxu0 %v453
    %503 = vmatprep.subr.mxu0 %v457
    %504 = vmatpush1.msra.mxu0 %v456
    %505 = vmatprep.subr.mxu0 %v460
    %506 = vmatpush1.msra.mxu0 %v459
    %507 = vmatprep.subr.mxu0 %v463
    %508 = vmatpush1.msra.mxu0 %v462
    %509 = vmatprep.subr.mxu0 %v466
    %510 = vmatpush1.msra.mxu0 %v465
    %511 = vmatprep.subr.mxu0 %v469
    %512 = vmatpush1.msra.mxu0 %v468
    %513 = vmatprep.subr.mxu0 %v472
    %514 = vmatpush1.msra.mxu0 %v471
    %515 = vmatprep.subr.mxu0 %v475
    %516 = vmatpush1.msra.mxu0 %v474
    %517 = vmatprep.subr.mxu0 %v478
    %518 = vmatpush1.msra.mxu0 %v477
    %519 = vmatprep.subr.mxu0 %v481
    %520 = vmatpush1.msra.mxu0 %v480
    %521 = vmatprep.subr.mxu0 %v484
    %522 = vmatpush1.msra.mxu0 %v483
    %523 = vmatprep.subr.mxu0 %v487
    %524 = vmatpush1.msra.mxu0 %v486
    %525 = vmatprep.subr.mxu0 %v490
    %526 = vmatpush1.msra.mxu0 %v489
    %527 = vmatprep.subr.mxu0 %v493
    %528 = vmatpush1.msra.mxu0 %v492
    %529 = vmatprep.subr.mxu0 %v496
    %530 = vmatpush1.msra.mxu0 %v495
    %531 = vmatprep.subr.mxu0 %v499
    %532 = vmatpush1.msra.mxu0 %v498
    %533 = vmatprep.subr.mxu0 0.0
    %534 = vmatpush1.msra.mxu0 0.0
    %535 = vmatprep.subr.mxu0 0.0
    %536 = vmatpush1.msra.mxu0 0.0
    %537 = vmatprep.subr.mxu0 0.0
    %538 = vmatpush1.msra.mxu0 0.0
    %539 = vmatprep.subr.mxu0 0.0
    %540 = vmatpush1.msra.mxu0 0.0
    %541 = vmatprep.subr.mxu0 0.0
    %542 = vmatpush1.msra.mxu0 0.0
    %543 = vmatprep.subr.mxu0 0.0
    %544 = vmatpush1.msra.mxu0 0.0
    %545 = vmatprep.subr.mxu0 0.0
    %546 = vmatpush1.msra.mxu0 0.0
    %547 = vmatprep.subr.mxu0 0.0
    %548 = vmatpush1.msra.mxu0 0.0
    %549 = vmatprep.subr.mxu0 0.0
    %550 = vmatpush1.msra.mxu0 0.0
    %551 = vmatprep.subr.mxu0 0.0
    %552 = vmatpush1.msra.mxu0 0.0
    %553 = vmatprep.subr.mxu0 0.0
    %554 = vmatpush1.msra.mxu0 0.0
    %555 = vmatprep.subr.mxu0 0.0
    %556 = vmatpush1.msra.mxu0 0.0
    %557 = vmatprep.subr.mxu0 0.0
    %558 = vmatpush1.msra.mxu0 0.0
    %559 = vmatprep.subr.mxu0 0.0
    %560 = vmatpush1.msra.mxu0 0.0
    %561 = vmatprep.subr.mxu0 0.0
    %562 = vmatpush1.msra.mxu0 0.0
    %563 = vmatprep.subr.mxu0 0.0
    %564 = vmatpush1.msra.mxu0 0.0
    %565 = vmatprep.mubr.f32.mxu0 0.0
    %566 = vmatmul.mubr.f32.gmra.mrb[0].mxu0 %v449
    %v567 = vpop.f32.mrb[0].mxu0
    %v568 = vadd.f32 0.0, %v567
    %v569 = vpop.f32.mrb[0].mxu0
    %v570 = vadd.f32 0.0, %v569
    %571 = vdwg.mxu0
    %572 = vmatprep.subr.mxu0 0.0
    %573 = vmatpush1.msra.mxu0 %v455
    %574 = vmatprep.subr.mxu0 0.0
    %575 = vmatpush1.msra.mxu0 %v458
    %576 = vmatprep.subr.mxu0 0.0
    %577 = vmatpush1.msra.mxu0 %v461
    %578 = vmatprep.subr.mxu0 0.0
    %579 = vmatpush1.msra.mxu0 %v464
    %580 = vmatprep.subr.mxu0 0.0
    %581 = vmatpush1.msra.mxu0 %v467
    %582 = vmatprep.subr.mxu0 0.0
    %583 = vmatpush1.msra.mxu0 %v470
    %584 = vmatprep.subr.mxu0 0.0
    %585 = vmatpush1.msra.mxu0 %v473
    %586 = vmatprep.subr.mxu0 0.0
    %587 = vmatpush1.msra.mxu0 %v476
    %588 = vmatprep.subr.mxu0 0.0
    %589 = vmatpush1.msra.mxu0 %v479
    %590 = vmatprep.subr.mxu0 0.0
    %591 = vmatpush1.msra.mxu0 %v482
    %592 = vmatprep.subr.mxu0 0.0
    %593 = vmatpush1.msra.mxu0 %v485
    %594 = vmatprep.subr.mxu0 0.0
    %595 = vmatpush1.msra.mxu0 %v488
    %596 = vmatprep.subr.mxu0 0.0
    %597 = vmatpush1.msra.mxu0 %v491
    %598 = vmatprep.subr.mxu0 0.0
    %599 = vmatpush1.msra.mxu0 %v494
    %600 = vmatprep.subr.mxu0 0.0
    %601 = vmatpush1.msra.mxu0 %v497
    %602 = vmatprep.subr.mxu0 0.0
    %603 = vmatpush1.msra.mxu0 %v500
    %604 = vmatprep.subr.mxu0 0.0
    %605 = vmatpush1.msra.mxu0 0.0
    %606 = vmatprep.subr.mxu0 0.0
    %607 = vmatpush1.msra.mxu0 0.0
    %608 = vmatprep.subr.mxu0 0.0
    %609 = vmatpush1.msra.mxu0 0.0
    %610 = vmatprep.subr.mxu0 0.0
    %611 = vmatpush1.msra.mxu0 0.0
    %612 = vmatprep.subr.mxu0 0.0
    %613 = vmatpush1.msra.mxu0 0.0
    %614 = vmatprep.subr.mxu0 0.0
    %615 = vmatpush1.msra.mxu0 0.0
    %616 = vmatprep.subr.mxu0 0.0
    %617 = vmatpush1.msra.mxu0 0.0
    %618 = vmatprep.subr.mxu0 0.0
    %619 = vmatpush1.msra.mxu0 0.0
    %620 = vmatprep.subr.mxu0 0.0
    %621 = vmatpush1.msra.mxu0 0.0
    %622 = vmatprep.subr.mxu0 0.0
    %623 = vmatpush1.msra.mxu0 0.0
    %624 = vmatprep.subr.mxu0 0.0
    %625 = vmatpush1.msra.mxu0 0.0
    %626 = vmatprep.subr.mxu0 0.0
    %627 = vmatpush1.msra.mxu0 0.0
    %628 = vmatprep.subr.mxu0 0.0
    %629 = vmatpush1.msra.mxu0 0.0
    %630 = vmatprep.subr.mxu0 0.0
    %631 = vmatpush1.msra.mxu0 0.0
    %632 = vmatprep.subr.mxu0 0.0
    %633 = vmatpush1.msra.mxu0 0.0
    %634 = vmatprep.subr.mxu0 0.0
    %635 = vmatpush1.msra.mxu0 0.0
    %636 = vmatprep.mubr.f32.mxu0 0.0
    %637 = vmatmul.mubr.f32.gmra.mrb[0].mxu0 %v449
    %v638 = vpop.f32.mrb[0].mxu0
    %v639 = vadd.f32 0.0, %v638
    %v640 = vpop.f32.mrb[0].mxu0
    %641 = vdwg.mxu0
    %v642 = vadd.f32 %v450, %v568
    %v643 = vxor.u32 %v642, 2147483648
    %v644 = vmul.f32 %v643, 1.442695
    %v645 = vpow.pop %v644
    %v646 = vadd.f32 %v645, 1.0
    %v647 = vrcp.pop %v646
    %v648 = vmul.f32 1.0, %v647
    %v649 = vadd.f32 %v451, %v570
    %v650 = vxor.u32 %v649, 2147483648
    %v651 = vmul.f32 %v650, 1.442695
    %v652 = vpow.pop %v651
    %v653 = vadd.f32 %v652, 1.0
    %v654 = vrcp.pop %v653
    %v655 = vmul.f32 1.0, %v654
    %v656 = vadd.f32 %v639, %v447
    %v657 = vmul.f32 %v648, %v656
    %v658 = vadd.f32 %v452, %v657
    %v659 = vtanh.pop %v658
    %v660 = vsub.f32 1.0, %v655
    %v661 = vmul.f32 %v660, %v659
    %v662 = vmul.f32 %v655, %v449
    %v663 = vadd.f32 %v661, %v662
    %664 = vst [vmem:[#allocation3] sm:$0xff] %v663
    %s665 = scalar_lea.vmem [#allocation4], 24
    %v666 = vld [vmem:[%s665] sm:$0xff]
    %v667 = vld [vmem:[%s665 + $0x8] sm:$0xff]
    %v668 = vld [vmem:[%s665 + $0x10] sm:$0xff]
    %v669 = vld [vmem:[#allocation10] sm:$0xff]
    %v670 = vld [vmem:[#allocation10 + $0x8] sm:$0xff]
    %v671 = vld [vmem:[#allocation10 + $0x10] sm:$0xff]
    %v672 = vld [vmem:[#allocation10 + $0x18] sm:$0xff]
    %v673 = vld [vmem:[#allocation10 + $0x20] sm:$0xff]
    %v674 = vld [vmem:[#allocation10 + $0x28] sm:$0xff]
    %v675 = vld [vmem:[#allocation10 + $0x30] sm:$0xff]
    %v676 = vld [vmem:[#allocation10 + $0x38] sm:$0xff]
    %v677 = vld [vmem:[#allocation10 + $0x40] sm:$0xff]
    %v678 = vld [vmem:[#allocation10 + $0x48] sm:$0xff]
    %v679 = vld [vmem:[#allocation10 + $0x50] sm:$0xff]
    %v680 = vld [vmem:[#allocation10 + $0x58] sm:$0xff]
    %v681 = vld [vmem:[#allocation10 + $0x60] sm:$0xff]
    %v682 = vld [vmem:[#allocation10 + $0x68] sm:$0xff]
    %v683 = vld [vmem:[#allocation10 + $0x70] sm:$0xff]
    %v684 = vld [vmem:[#allocation10 + $0x78] sm:$0xff]
    %v685 = vld [vmem:[#allocation10 + $0x80] sm:$0xff]
    %v686 = vld [vmem:[#allocation10 + $0x88] sm:$0xff]
    %v687 = vld [vmem:[#allocation10 + $0x90] sm:$0xff]
    %v688 = vld [vmem:[#allocation10 + $0x98] sm:$0xff]
    %v689 = vld [vmem:[#allocation10 + $0xa0] sm:$0xff]
    %v690 = vld [vmem:[#allocation10 + $0xa8] sm:$0xff]
    %v691 = vld [vmem:[#allocation10 + $0xb0] sm:$0xff]
    %v692 = vld [vmem:[#allocation10 + $0xb8] sm:$0xff]
    %v693 = vld [vmem:[#allocation10 + $0xc0] sm:$0xff]
    %v694 = vld [vmem:[#allocation10 + $0xc8] sm:$0xff]
    %v695 = vld [vmem:[#allocation10 + $0xd0] sm:$0xff]
    %v696 = vld [vmem:[#allocation10 + $0xd8] sm:$0xff]
    %v697 = vld [vmem:[#allocation10 + $0xe0] sm:$0xff]
    %v698 = vld [vmem:[#allocation10 + $0xe8] sm:$0xff]
    %v699 = vld [vmem:[#allocation10 + $0xf0] sm:$0xff]
    %v700 = vld [vmem:[#allocation10 + $0xf8] sm:$0xff]
    %v701 = vld [vmem:[#allocation10 + $0x100] sm:$0xff]
    %v702 = vld [vmem:[#allocation10 + $0x108] sm:$0xff]
    %v703 = vld [vmem:[#allocation10 + $0x110] sm:$0xff]
    %v704 = vld [vmem:[#allocation10 + $0x118] sm:$0xff]
    %v705 = vld [vmem:[#allocation10 + $0x120] sm:$0xff]
    %v706 = vld [vmem:[#allocation10 + $0x128] sm:$0xff]
    %v707 = vld [vmem:[#allocation10 + $0x130] sm:$0xff]
    %v708 = vld [vmem:[#allocation10 + $0x138] sm:$0xff]
    %v709 = vld [vmem:[#allocation10 + $0x140] sm:$0xff]
    %v710 = vld [vmem:[#allocation10 + $0x148] sm:$0xff]
    %v711 = vld [vmem:[#allocation10 + $0x150] sm:$0xff]
    %v712 = vld [vmem:[#allocation10 + $0x158] sm:$0xff]
    %v713 = vld [vmem:[#allocation10 + $0x160] sm:$0xff]
    %v714 = vld [vmem:[#allocation10 + $0x168] sm:$0xff]
    %v715 = vld [vmem:[#allocation10 + $0x170] sm:$0xff]
    %v716 = vld [vmem:[#allocation10 + $0x178] sm:$0xff]
    %717 = vmatprep.subr.mxu0 %v670
    %718 = vmatpush1.msra.mxu0 %v669
    %719 = vmatprep.subr.mxu0 %v673
    %720 = vmatpush1.msra.mxu0 %v672
    %721 = vmatprep.subr.mxu0 %v676
    %722 = vmatpush1.msra.mxu0 %v675
    %723 = vmatprep.subr.mxu0 %v679
    %724 = vmatpush1.msra.mxu0 %v678
    %725 = vmatprep.subr.mxu0 %v682
    %726 = vmatpush1.msra.mxu0 %v681
    %727 = vmatprep.subr.mxu0 %v685
    %728 = vmatpush1.msra.mxu0 %v684
    %729 = vmatprep.subr.mxu0 %v688
    %730 = vmatpush1.msra.mxu0 %v687
    %731 = vmatprep.subr.mxu0 %v691
    %732 = vmatpush1.msra.mxu0 %v690
    %733 = vmatprep.subr.mxu0 %v694
    %734 = vmatpush1.msra.mxu0 %v693
    %735 = vmatprep.subr.mxu0 %v697
    %736 = vmatpush1.msra.mxu0 %v696
    %737 = vmatprep.subr.mxu0 %v700
    %738 = vmatpush1.msra.mxu0 %v699
    %739 = vmatprep.subr.mxu0 %v703
    %740 = vmatpush1.msra.mxu0 %v702
    %741 = vmatprep.subr.mxu0 %v706
    %742 = vmatpush1.msra.mxu0 %v705
    %743 = vmatprep.subr.mxu0 %v709
    %744 = vmatpush1.msra.mxu0 %v708
    %745 = vmatprep.subr.mxu0 %v712
    %746 = vmatpush1.msra.mxu0 %v711
    %747 = vmatprep.subr.mxu0 %v715
    %748 = vmatpush1.msra.mxu0 %v714
    %749 = vmatprep.subr.mxu0 0.0
    %750 = vmatpush1.msra.mxu0 0.0
    %751 = vmatprep.subr.mxu0 0.0
    %752 = vmatpush1.msra.mxu0 0.0
    %753 = vmatprep.subr.mxu0 0.0
    %754 = vmatpush1.msra.mxu0 0.0
    %755 = vmatprep.subr.mxu0 0.0
    %756 = vmatpush1.msra.mxu0 0.0
    %757 = vmatprep.subr.mxu0 0.0
    %758 = vmatpush1.msra.mxu0 0.0
    %759 = vmatprep.subr.mxu0 0.0
    %760 = vmatpush1.msra.mxu0 0.0
    %761 = vmatprep.subr.mxu0 0.0
    %762 = vmatpush1.msra.mxu0 0.0
    %763 = vmatprep.subr.mxu0 0.0
    %764 = vmatpush1.msra.mxu0 0.0
    %765 = vmatprep.subr.mxu0 0.0
    %766 = vmatpush1.msra.mxu0 0.0
    %767 = vmatprep.subr.mxu0 0.0
    %768 = vmatpush1.msra.mxu0 0.0
    %769 = vmatprep.subr.mxu0 0.0
    %770 = vmatpush1.msra.mxu0 0.0
    %771 = vmatprep.subr.mxu0 0.0
    %772 = vmatpush1.msra.mxu0 0.0
    %773 = vmatprep.subr.mxu0 0.0
    %774 = vmatpush1.msra.mxu0 0.0
    %775 = vmatprep.subr.mxu0 0.0
    %776 = vmatpush1.msra.mxu0 0.0
    %777 = vmatprep.subr.mxu0 0.0
    %778 = vmatpush1.msra.mxu0 0.0
    %779 = vmatprep.subr.mxu0 0.0
    %780 = vmatpush1.msra.mxu0 0.0
    %781 = vmatprep.mubr.f32.mxu0 0.0
    %782 = vmatmul.mubr.f32.gmra.mrb[0].mxu0 %v663
    %v783 = vpop.f32.mrb[0].mxu0
    %v784 = vadd.f32 0.0, %v783
    %v785 = vpop.f32.mrb[0].mxu0
    %v786 = vadd.f32 0.0, %v785
    %787 = vdwg.mxu0
    %788 = vmatprep.subr.mxu0 0.0
    %789 = vmatpush1.msra.mxu0 %v671
    %790 = vmatprep.subr.mxu0 0.0
    %791 = vmatpush1.msra.mxu0 %v674
    %792 = vmatprep.subr.mxu0 0.0
    %793 = vmatpush1.msra.mxu0 %v677
    %794 = vmatprep.subr.mxu0 0.0
    %795 = vmatpush1.msra.mxu0 %v680
    %796 = vmatprep.subr.mxu0 0.0
    %797 = vmatpush1.msra.mxu0 %v683
    %798 = vmatprep.subr.mxu0 0.0
    %799 = vmatpush1.msra.mxu0 %v686
    %800 = vmatprep.subr.mxu0 0.0
    %801 = vmatpush1.msra.mxu0 %v689
    %802 = vmatprep.subr.mxu0 0.0
    %803 = vmatpush1.msra.mxu0 %v692
    %804 = vmatprep.subr.mxu0 0.0
    %805 = vmatpush1.msra.mxu0 %v695
    %806 = vmatprep.subr.mxu0 0.0
    %807 = vmatpush1.msra.mxu0 %v698
    %808 = vmatprep.subr.mxu0 0.0
    %809 = vmatpush1.msra.mxu0 %v701
    %810 = vmatprep.subr.mxu0 0.0
    %811 = vmatpush1.msra.mxu0 %v704
    %812 = vmatprep.subr.mxu0 0.0
    %813 = vmatpush1.msra.mxu0 %v707
    %814 = vmatprep.subr.mxu0 0.0
    %815 = vmatpush1.msra.mxu0 %v710
    %816 = vmatprep.subr.mxu0 0.0
    %817 = vmatpush1.msra.mxu0 %v713
    %818 = vmatprep.subr.mxu0 0.0
    %819 = vmatpush1.msra.mxu0 %v716
    %820 = vmatprep.subr.mxu0 0.0
    %821 = vmatpush1.msra.mxu0 0.0
    %822 = vmatprep.subr.mxu0 0.0
    %823 = vmatpush1.msra.mxu0 0.0
    %824 = vmatprep.subr.mxu0 0.0
    %825 = vmatpush1.msra.mxu0 0.0
    %826 = vmatprep.subr.mxu0 0.0
    %827 = vmatpush1.msra.mxu0 0.0
    %828 = vmatprep.subr.mxu0 0.0
    %829 = vmatpush1.msra.mxu0 0.0
    %830 = vmatprep.subr.mxu0 0.0
    %831 = vmatpush1.msra.mxu0 0.0
    %832 = vmatprep.subr.mxu0 0.0
    %833 = vmatpush1.msra.mxu0 0.0
    %834 = vmatprep.subr.mxu0 0.0
    %835 = vmatpush1.msra.mxu0 0.0
    %836 = vmatprep.subr.mxu0 0.0
    %837 = vmatpush1.msra.mxu0 0.0
    %838 = vmatprep.subr.mxu0 0.0
    %839 = vmatpush1.msra.mxu0 0.0
    %840 = vmatprep.subr.mxu0 0.0
    %841 = vmatpush1.msra.mxu0 0.0
    %842 = vmatprep.subr.mxu0 0.0
    %843 = vmatpush1.msra.mxu0 0.0
    %844 = vmatprep.subr.mxu0 0.0
    %845 = vmatpush1.msra.mxu0 0.0
    %846 = vmatprep.subr.mxu0 0.0
    %847 = vmatpush1.msra.mxu0 0.0
    %848 = vmatprep.subr.mxu0 0.0
    %849 = vmatpush1.msra.mxu0 0.0
    %850 = vmatprep.subr.mxu0 0.0
    %851 = vmatpush1.msra.mxu0 0.0
    %852 = vmatprep.mubr.f32.mxu0 0.0
    %853 = vmatmul.mubr.f32.gmra.mrb[0].mxu0 %v663
    %v854 = vpop.f32.mrb[0].mxu0
    %v855 = vadd.f32 0.0, %v854
    %v856 = vpop.f32.mrb[0].mxu0
    %857 = vdwg.mxu0
    %v858 = vadd.f32 %v666, %v784
    %v859 = vxor.u32 %v858, 2147483648
    %v860 = vmul.f32 %v859, 1.442695
    %v861 = vpow.pop %v860
    %v862 = vadd.f32 %v861, 1.0
    %v863 = vrcp.pop %v862
    %v864 = vmul.f32 1.0, %v863
    %v865 = vadd.f32 %v667, %v786
    %v866 = vxor.u32 %v865, 2147483648
    %v867 = vmul.f32 %v866, 1.442695
    %v868 = vpow.pop %v867
    %v869 = vadd.f32 %v868, 1.0
    %v870 = vrcp.pop %v869
    %v871 = vmul.f32 1.0, %v870
    %v872 = vadd.f32 %v855, %v447
    %v873 = vmul.f32 %v864, %v872
    %v874 = vadd.f32 %v668, %v873
    %v875 = vtanh.pop %v874
    %v876 = vsub.f32 1.0, %v871
    %v877 = vmul.f32 %v876, %v875
    %v878 = vmul.f32 %v871, %v663
    %v879 = vadd.f32 %v877, %v878
    %s880 = scalar_lea.vmem [#allocation3], 8
    %881 = vst [vmem:[%s880] sm:$0xff] %v879
    %s882 = scalar_lea.vmem [#allocation4], 48
    %v883 = vld [vmem:[%s882] sm:$0xff]
    %v884 = vld [vmem:[%s882 + $0x8] sm:$0xff]
    %v885 = vld [vmem:[%s882 + $0x10] sm:$0xff]
    %v886 = vld [vmem:[#allocation10] sm:$0xff]
    %v887 = vld [vmem:[#allocation10 + $0x8] sm:$0xff]
    %v888 = vld [vmem:[#allocation10 + $0x10] sm:$0xff]
    %v889 = vld [vmem:[#allocation10 + $0x18] sm:$0xff]
    %v890 = vld [vmem:[#allocation10 + $0x20] sm:$0xff]
    %v891 = vld [vmem:[#allocation10 + $0x28] sm:$0xff]
    %v892 = vld [vmem:[#allocation10 + $0x30] sm:$0xff]
    %v893 = vld [vmem:[#allocation10 + $0x38] sm:$0xff]
    %v894 = vld [vmem:[#allocation10 + $0x40] sm:$0xff]
    %v895 = vld [vmem:[#allocation10 + $0x48] sm:$0xff]
    %v896 = vld [vmem:[#allocation10 + $0x50] sm:$0xff]
    %v897 = vld [vmem:[#allocation10 + $0x58] sm:$0xff]
    %v898 = vld [vmem:[#allocation10 + $0x60] sm:$0xff]
    %v899 = vld [vmem:[#allocation10 + $0x68] sm:$0xff]
    %v900 = vld [vmem:[#allocation10 + $0x70] sm:$0xff]
    %v901 = vld [vmem:[#allocation10 + $0x78] sm:$0xff]
    %v902 = vld [vmem:[#allocation10 + $0x80] sm:$0xff]
    %v903 = vld [vmem:[#allocation10 + $0x88] sm:$0xff]
    %v904 = vld [vmem:[#allocation10 + $0x90] sm:$0xff]
    %v905 = vld [vmem:[#allocation10 + $0x98] sm:$0xff]
    %v906 = vld [vmem:[#allocation10 + $0xa0] sm:$0xff]
    %v907 = vld [vmem:[#allocation10 + $0xa8] sm:$0xff]
    %v908 = vld [vmem:[#allocation10 + $0xb0] sm:$0xff]
    %v909 = vld [vmem:[#allocation10 + $0xb8] sm:$0xff]
    %v910 = vld [vmem:[#allocation10 + $0xc0] sm:$0xff]
    %v911 = vld [vmem:[#allocation10 + $0xc8] sm:$0xff]
    %v912 = vld [vmem:[#allocation10 + $0xd0] sm:$0xff]
    %v913 = vld [vmem:[#allocation10 + $0xd8] sm:$0xff]
    %v914 = vld [vmem:[#allocation10 + $0xe0] sm:$0xff]
    %v915 = vld [vmem:[#allocation10 + $0xe8] sm:$0xff]
    %v916 = vld [vmem:[#allocation10 + $0xf0] sm:$0xff]
    %v917 = vld [vmem:[#allocation10 + $0xf8] sm:$0xff]
    %v918 = vld [vmem:[#allocation10 + $0x100] sm:$0xff]
    %v919 = vld [vmem:[#allocation10 + $0x108] sm:$0xff]
    %v920 = vld [vmem:[#allocation10 + $0x110] sm:$0xff]
    %v921 = vld [vmem:[#allocation10 + $0x118] sm:$0xff]
    %v922 = vld [vmem:[#allocation10 + $0x120] sm:$0xff]
    %v923 = vld [vmem:[#allocation10 + $0x128] sm:$0xff]
    %v924 = vld [vmem:[#allocation10 + $0x130] sm:$0xff]
    %v925 = vld [vmem:[#allocation10 + $0x138] sm:$0xff]
    %v926 = vld [vmem:[#allocation10 + $0x140] sm:$0xff]
    %v927 = vld [vmem:[#allocation10 + $0x148] sm:$0xff]
    %v928 = vld [vmem:[#allocation10 + $0x150] sm:$0xff]
    %v929 = vld [vmem:[#allocation10 + $0x158] sm:$0xff]
    %v930 = vld [vmem:[#allocation10 + $0x160] sm:$0xff]
    %v931 = vld [vmem:[#allocation10 + $0x168] sm:$0xff]
    %v932 = vld [vmem:[#allocation10 + $0x170] sm:$0xff]
    %v933 = vld [vmem:[#allocation10 + $0x178] sm:$0xff]
    %934 = vmatprep.subr.mxu0 %v887
    %935 = vmatpush1.msra.mxu0 %v886
    %936 = vmatprep.subr.mxu0 %v890
    %937 = vmatpush1.msra.mxu0 %v889
    %938 = vmatprep.subr.mxu0 %v893
    %939 = vmatpush1.msra.mxu0 %v892
    %940 = vmatprep.subr.mxu0 %v896
    %941 = vmatpush1.msra.mxu0 %v895
    %942 = vmatprep.subr.mxu0 %v899
    %943 = vmatpush1.msra.mxu0 %v898
    %944 = vmatprep.subr.mxu0 %v902
    %945 = vmatpush1.msra.mxu0 %v901
    %946 = vmatprep.subr.mxu0 %v905
    %947 = vmatpush1.msra.mxu0 %v904
    %948 = vmatprep.subr.mxu0 %v908
    %949 = vmatpush1.msra.mxu0 %v907
    %950 = vmatprep.subr.mxu0 %v911
    %951 = vmatpush1.msra.mxu0 %v910
    %952 = vmatprep.subr.mxu0 %v914
    %953 = vmatpush1.msra.mxu0 %v913
    %954 = vmatprep.subr.mxu0 %v917
    %955 = vmatpush1.msra.mxu0 %v916
    %956 = vmatprep.subr.mxu0 %v920
    %957 = vmatpush1.msra.mxu0 %v919
    %958 = vmatprep.subr.mxu0 %v923
    %959 = vmatpush1.msra.mxu0 %v922
    %960 = vmatprep.subr.mxu0 %v926
    %961 = vmatpush1.msra.mxu0 %v925
    %962 = vmatprep.subr.mxu0 %v929
    %963 = vmatpush1.msra.mxu0 %v928
    %964 = vmatprep.subr.mxu0 %v932
    %965 = vmatpush1.msra.mxu0 %v931
    %966 = vmatprep.subr.mxu0 0.0
    %967 = vmatpush1.msra.mxu0 0.0
    %968 = vmatprep.subr.mxu0 0.0
    %969 = vmatpush1.msra.mxu0 0.0
    %970 = vmatprep.subr.mxu0 0.0
    %971 = vmatpush1.msra.mxu0 0.0
    %972 = vmatprep.subr.mxu0 0.0
    %973 = vmatpush1.msra.mxu0 0.0
    %974 = vmatprep.subr.mxu0 0.0
    %975 = vmatpush1.msra.mxu0 0.0
    %976 = vmatprep.subr.mxu0 0.0
    %977 = vmatpush1.msra.mxu0 0.0
    %978 = vmatprep.subr.mxu0 0.0
    %979 = vmatpush1.msra.mxu0 0.0
    %980 = vmatprep.subr.mxu0 0.0
    %981 = vmatpush1.msra.mxu0 0.0
    %982 = vmatprep.subr.mxu0 0.0
    %983 = vmatpush1.msra.mxu0 0.0
    %984 = vmatprep.subr.mxu0 0.0
    %985 = vmatpush1.msra.mxu0 0.0
    %986 = vmatprep.subr.mxu0 0.0
    %987 = vmatpush1.msra.mxu0 0.0
    %988 = vmatprep.subr.mxu0 0.0
    %989 = vmatpush1.msra.mxu0 0.0
    %990 = vmatprep.subr.mxu0 0.0
    %991 = vmatpush1.msra.mxu0 0.0
    %992 = vmatprep.subr.mxu0 0.0
    %993 = vmatpush1.msra.mxu0 0.0
    %994 = vmatprep.subr.mxu0 0.0
    %995 = vmatpush1.msra.mxu0 0.0
    %996 = vmatprep.subr.mxu0 0.0
    %997 = vmatpush1.msra.mxu0 0.0
    %998 = vmatprep.mubr.f32.mxu0 0.0
    %999 = vmatmul.mubr.f32.gmra.mrb[0].mxu0 %v879
    %v1000 = vpop.f32.mrb[0].mxu0
    %v1001 = vadd.f32 0.0, %v1000
    %v1002 = vpop.f32.mrb[0].mxu0
    %v1003 = vadd.f32 0.0, %v1002
    %1004 = vdwg.mxu0
    %1005 = vmatprep.subr.mxu0 0.0
    %1006 = vmatpush1.msra.mxu0 %v888
    %1007 = vmatprep.subr.mxu0 0.0
    %1008 = vmatpush1.msra.mxu0 %v891
    %1009 = vmatprep.subr.mxu0 0.0
    %1010 = vmatpush1.msra.mxu0 %v894
    %1011 = vmatprep.subr.mxu0 0.0
    %1012 = vmatpush1.msra.mxu0 %v897
    %1013 = vmatprep.subr.mxu0 0.0
    %1014 = vmatpush1.msra.mxu0 %v900
    %1015 = vmatprep.subr.mxu0 0.0
    %1016 = vmatpush1.msra.mxu0 %v903
    %1017 = vmatprep.subr.mxu0 0.0
    %1018 = vmatpush1.msra.mxu0 %v906
    %1019 = vmatprep.subr.mxu0 0.0
    %1020 = vmatpush1.msra.mxu0 %v909
    %1021 = vmatprep.subr.mxu0 0.0
    %1022 = vmatpush1.msra.mxu0 %v912
    %1023 = vmatprep.subr.mxu0 0.0
    %1024 = vmatpush1.msra.mxu0 %v915
    %1025 = vmatprep.subr.mxu0 0.0
    %1026 = vmatpush1.msra.mxu0 %v918
    %1027 = vmatprep.subr.mxu0 0.0
    %1028 = vmatpush1.msra.mxu0 %v921
    %1029 = vmatprep.subr.mxu0 0.0
    %1030 = vmatpush1.msra.mxu0 %v924
    %1031 = vmatprep.subr.mxu0 0.0
    %1032 = vmatpush1.msra.mxu0 %v927
    %1033 = vmatprep.subr.mxu0 0.0
    %1034 = vmatpush1.msra.mxu0 %v930
    %1035 = vmatprep.subr.mxu0 0.0
    %1036 = vmatpush1.msra.mxu0 %v933
    %1037 = vmatprep.subr.mxu0 0.0
    %1038 = vmatpush1.msra.mxu0 0.0
    %1039 = vmatprep.subr.mxu0 0.0
    %1040 = vmatpush1.msra.mxu0 0.0
    %1041 = vmatprep.subr.mxu0 0.0
    %1042 = vmatpush1.msra.mxu0 0.0
    %1043 = vmatprep.subr.mxu0 0.0
    %1044 = vmatpush1.msra.mxu0 0.0
    %1045 = vmatprep.subr.mxu0 0.0
    %1046 = vmatpush1.msra.mxu0 0.0
    %1047 = vmatprep.subr.mxu0 0.0
    %1048 = vmatpush1.msra.mxu0 0.0
    %1049 = vmatprep.subr.mxu0 0.0
    %1050 = vmatpush1.msra.mxu0 0.0
    %1051 = vmatprep.subr.mxu0 0.0
    %1052 = vmatpush1.msra.mxu0 0.0
    %1053 = vmatprep.subr.mxu0 0.0
    %1054 = vmatpush1.msra.mxu0 0.0
    %1055 = vmatprep.subr.mxu0 0.0
    %1056 = vmatpush1.msra.mxu0 0.0
    %1057 = vmatprep.subr.mxu0 0.0
    %1058 = vmatpush1.msra.mxu0 0.0
    %1059 = vmatprep.subr.mxu0 0.0
    %1060 = vmatpush1.msra.mxu0 0.0
    %1061 = vmatprep.subr.mxu0 0.0
    %1062 = vmatpush1.msra.mxu0 0.0
    %1063 = vmatprep.subr.mxu0 0.0
    %1064 = vmatpush1.msra.mxu0 0.0
    %1065 = vmatprep.subr.mxu0 0.0
    %1066 = vmatpush1.msra.mxu0 0.0
    %1067 = vmatprep.subr.mxu0 0.0
    %1068 = vmatpush1.msra.mxu0 0.0
    %1069 = vmatprep.mubr.f32.mxu0 0.0
    %1070 = vmatmul.mubr.f32.gmra.mrb[0].mxu0 %v879
    %v1071 = vpop.f32.mrb[0].mxu0
    %v1072 = vadd.f32 0.0, %v1071
    %v1073 = vpop.f32.mrb[0].mxu0
    %1074 = vdwg.mxu0
    %v1075 = vadd.f32 %v883, %v1001
    %v1076 = vxor.u32 %v1075, 2147483648
    %v1077 = vmul.f32 %v1076, 1.442695
    %v1078 = vpow.pop %v1077
    %v1079 = vadd.f32 %v1078, 1.0
    %v1080 = vrcp.pop %v1079
    %v1081 = vmul.f32 1.0, %v1080
    %v1082 = vadd.f32 %v884, %v1003
    %v1083 = vxor.u32 %v1082, 2147483648
    %v1084 = vmul.f32 %v1083, 1.442695
    %v1085 = vpow.pop %v1084
    %v1086 = vadd.f32 %v1085, 1.0
    %v1087 = vrcp.pop %v1086
    %v1088 = vmul.f32 1.0, %v1087
    %v1089 = vadd.f32 %v1072, %v447
    %v1090 = vmul.f32 %v1081, %v1089
    %v1091 = vadd.f32 %v885, %v1090
    %v1092 = vtanh.pop %v1091
    %v1093 = vsub.f32 1.0, %v1088
    %v1094 = vmul.f32 %v1093, %v1092
    %v1095 = vmul.f32 %v1088, %v879
    %v1096 = vadd.f32 %v1094, %v1095
    %s1097 = scalar_lea.vmem [#allocation3], 16
    %1098 = vst [vmem:[%s1097] sm:$0xff] %v1096
    %s1099 = scalar_lea.vmem [#allocation4], 72
    %v1100 = vld [vmem:[%s1099] sm:$0xff]
    %v1101 = vld [vmem:[%s1099 + $0x8] sm:$0xff]
    %v1102 = vld [vmem:[%s1099 + $0x10] sm:$0xff]
    %v1103 = vld [vmem:[#allocation10] sm:$0xff]
    %v1104 = vld [vmem:[#allocation10 + $0x8] sm:$0xff]
    %v1105 = vld [vmem:[#allocation10 + $0x10] sm:$0xff]
    %v1106 = vld [vmem:[#allocation10 + $0x18] sm:$0xff]
    %v1107 = vld [vmem:[#allocation10 + $0x20] sm:$0xff]
    %v1108 = vld [vmem:[#allocation10 + $0x28] sm:$0xff]
    %v1109 = vld [vmem:[#allocation10 + $0x30] sm:$0xff]
    %v1110 = vld [vmem:[#allocation10 + $0x38] sm:$0xff]
    %v1111 = vld [vmem:[#allocation10 + $0x40] sm:$0xff]
    %v1112 = vld [vmem:[#allocation10 + $0x48] sm:$0xff]
    %v1113 = vld [vmem:[#allocation10 + $0x50] sm:$0xff]
    %v1114 = vld [vmem:[#allocation10 + $0x58] sm:$0xff]
    %v1115 = vld [vmem:[#allocation10 + $0x60] sm:$0xff]
    %v1116 = vld [vmem:[#allocation10 + $0x68] sm:$0xff]
    %v1117 = vld [vmem:[#allocation10 + $0x70] sm:$0xff]
    %v1118 = vld [vmem:[#allocation10 + $0x78] sm:$0xff]
    %v1119 = vld [vmem:[#allocation10 + $0x80] sm:$0xff]
    %v1120 = vld [vmem:[#allocation10 + $0x88] sm:$0xff]
    %v1121 = vld [vmem:[#allocation10 + $0x90] sm:$0xff]
    %v1122 = vld [vmem:[#allocation10 + $0x98] sm:$0xff]
    %v1123 = vld [vmem:[#allocation10 + $0xa0] sm:$0xff]
    %v1124 = vld [vmem:[#allocation10 + $0xa8] sm:$0xff]
    %v1125 = vld [vmem:[#allocation10 + $0xb0] sm:$0xff]
    %v1126 = vld [vmem:[#allocation10 + $0xb8] sm:$0xff]
    %v1127 = vld [vmem:[#allocation10 + $0xc0] sm:$0xff]
    %v1128 = vld [vmem:[#allocation10 + $0xc8] sm:$0xff]
    %v1129 = vld [vmem:[#allocation10 + $0xd0] sm:$0xff]
    %v1130 = vld [vmem:[#allocation10 + $0xd8] sm:$0xff]
    %v1131 = vld [vmem:[#allocation10 + $0xe0] sm:$0xff]
    %v1132 = vld [vmem:[#allocation10 + $0xe8] sm:$0xff]
    %v1133 = vld [vmem:[#allocation10 + $0xf0] sm:$0xff]
    %v1134 = vld [vmem:[#allocation10 + $0xf8] sm:$0xff]
    %v1135 = vld [vmem:[#allocation10 + $0x100] sm:$0xff]
    %v1136 = vld [vmem:[#allocation10 + $0x108] sm:$0xff]
    %v1137 = vld [vmem:[#allocation10 + $0x110] sm:$0xff]
    %v1138 = vld [vmem:[#allocation10 + $0x118] sm:$0xff]
    %v1139 = vld [vmem:[#allocation10 + $0x120] sm:$0xff]
    %v1140 = vld [vmem:[#allocation10 + $0x128] sm:$0xff]
    %v1141 = vld [vmem:[#allocation10 + $0x130] sm:$0xff]
    %v1142 = vld [vmem:[#allocation10 + $0x138] sm:$0xff]
    %v1143 = vld [vmem:[#allocation10 + $0x140] sm:$0xff]
    %v1144 = vld [vmem:[#allocation10 + $0x148] sm:$0xff]
    %v1145 = vld [vmem:[#allocation10 + $0x150] sm:$0xff]
    %v1146 = vld [vmem:[#allocation10 + $0x158] sm:$0xff]
    %v1147 = vld [vmem:[#allocation10 + $0x160] sm:$0xff]
    %v1148 = vld [vmem:[#allocation10 + $0x168] sm:$0xff]
    %v1149 = vld [vmem:[#allocation10 + $0x170] sm:$0xff]
    %v1150 = vld [vmem:[#allocation10 + $0x178] sm:$0xff]
    %1151 = vmatprep.subr.mxu0 %v1104
    %1152 = vmatpush1.msra.mxu0 %v1103
    %1153 = vmatprep.subr.mxu0 %v1107
    %1154 = vmatpush1.msra.mxu0 %v1106
    %1155 = vmatprep.subr.mxu0 %v1110
    %1156 = vmatpush1.msra.mxu0 %v1109
    %1157 = vmatprep.subr.mxu0 %v1113
    %1158 = vmatpush1.msra.mxu0 %v1112
    %1159 = vmatprep.subr.mxu0 %v1116
    %1160 = vmatpush1.msra.mxu0 %v1115
    %1161 = vmatprep.subr.mxu0 %v1119
    %1162 = vmatpush1.msra.mxu0 %v1118
    %1163 = vmatprep.subr.mxu0 %v1122
    %1164 = vmatpush1.msra.mxu0 %v1121
    %1165 = vmatprep.subr.mxu0 %v1125
    %1166 = vmatpush1.msra.mxu0 %v1124
    %1167 = vmatprep.subr.mxu0 %v1128
    %1168 = vmatpush1.msra.mxu0 %v1127
    %1169 = vmatprep.subr.mxu0 %v1131
    %1170 = vmatpush1.msra.mxu0 %v1130
    %1171 = vmatprep.subr.mxu0 %v1134
    %1172 = vmatpush1.msra.mxu0 %v1133
    %1173 = vmatprep.subr.mxu0 %v1137
    %1174 = vmatpush1.msra.mxu0 %v1136
    %1175 = vmatprep.subr.mxu0 %v1140
    %1176 = vmatpush1.msra.mxu0 %v1139
    %1177 = vmatprep.subr.mxu0 %v1143
    %1178 = vmatpush1.msra.mxu0 %v1142
    %1179 = vmatprep.subr.mxu0 %v1146
    %1180 = vmatpush1.msra.mxu0 %v1145
    %1181 = vmatprep.subr.mxu0 %v1149
    %1182 = vmatpush1.msra.mxu0 %v1148
    %1183 = vmatprep.subr.mxu0 0.0
    %1184 = vmatpush1.msra.mxu0 0.0
    %1185 = vmatprep.subr.mxu0 0.0
    %1186 = vmatpush1.msra.mxu0 0.0
    %1187 = vmatprep.subr.mxu0 0.0
    %1188 = vmatpush1.msra.mxu0 0.0
    %1189 = vmatprep.subr.mxu0 0.0
    %1190 = vmatpush1.msra.mxu0 0.0
    %1191 = vmatprep.subr.mxu0 0.0
    %1192 = vmatpush1.msra.mxu0 0.0
    %1193 = vmatprep.subr.mxu0 0.0
    %1194 = vmatpush1.msra.mxu0 0.0
    %1195 = vmatprep.subr.mxu0 0.0
    %1196 = vmatpush1.msra.mxu0 0.0
    %1197 = vmatprep.subr.mxu0 0.0
    %1198 = vmatpush1.msra.mxu0 0.0
    %1199 = vmatprep.subr.mxu0 0.0
    %1200 = vmatpush1.msra.mxu0 0.0
    %1201 = vmatprep.subr.mxu0 0.0
    %1202 = vmatpush1.msra.mxu0 0.0
    %1203 = vmatprep.subr.mxu0 0.0
    %1204 = vmatpush1.msra.mxu0 0.0
    %1205 = vmatprep.subr.mxu0 0.0
    %1206 = vmatpush1.msra.mxu0 0.0
    %1207 = vmatprep.subr.mxu0 0.0
    %1208 = vmatpush1.msra.mxu0 0.0
    %1209 = vmatprep.subr.mxu0 0.0
    %1210 = vmatpush1.msra.mxu0 0.0
    %1211 = vmatprep.subr.mxu0 0.0
    %1212 = vmatpush1.msra.mxu0 0.0
    %1213 = vmatprep.subr.mxu0 0.0
    %1214 = vmatpush1.msra.mxu0 0.0
    %1215 = vmatprep.mubr.f32.mxu0 0.0
    %1216 = vmatmul.mubr.f32.gmra.mrb[0].mxu0 %v1096
    %v1217 = vpop.f32.mrb[0].mxu0
    %v1218 = vadd.f32 0.0, %v1217
    %v1219 = vpop.f32.mrb[0].mxu0
    %v1220 = vadd.f32 0.0, %v1219
    %1221 = vdwg.mxu0
    %1222 = vmatprep.subr.mxu0 0.0
    %1223 = vmatpush1.msra.mxu0 %v1105
    %1224 = vmatprep.subr.mxu0 0.0
    %1225 = vmatpush1.msra.mxu0 %v1108
    %1226 = vmatprep.subr.mxu0 0.0
    %1227 = vmatpush1.msra.mxu0 %v1111
    %1228 = vmatprep.subr.mxu0 0.0
    %1229 = vmatpush1.msra.mxu0 %v1114
    %1230 = vmatprep.subr.mxu0 0.0
    %1231 = vmatpush1.msra.mxu0 %v1117
    %1232 = vmatprep.subr.mxu0 0.0
    %1233 = vmatpush1.msra.mxu0 %v1120
    %1234 = vmatprep.subr.mxu0 0.0
    %1235 = vmatpush1.msra.mxu0 %v1123
    %1236 = vmatprep.subr.mxu0 0.0
    %1237 = vmatpush1.msra.mxu0 %v1126
    %1238 = vmatprep.subr.mxu0 0.0
    %1239 = vmatpush1.msra.mxu0 %v1129
    %1240 = vmatprep.subr.mxu0 0.0
    %1241 = vmatpush1.msra.mxu0 %v1132
    %1242 = vmatprep.subr.mxu0 0.0
    %1243 = vmatpush1.msra.mxu0 %v1135
    %1244 = vmatprep.subr.mxu0 0.0
    %1245 = vmatpush1.msra.mxu0 %v1138
    %1246 = vmatprep.subr.mxu0 0.0
    %1247 = vmatpush1.msra.mxu0 %v1141
    %1248 = vmatprep.subr.mxu0 0.0
    %1249 = vmatpush1.msra.mxu0 %v1144
    %1250 = vmatprep.subr.mxu0 0.0
    %1251 = vmatpush1.msra.mxu0 %v1147
    %1252 = vmatprep.subr.mxu0 0.0
    %1253 = vmatpush1.msra.mxu0 %v1150
    %1254 = vmatprep.subr.mxu0 0.0
    %1255 = vmatpush1.msra.mxu0 0.0
    %1256 = vmatprep.subr.mxu0 0.0
    %1257 = vmatpush1.msra.mxu0 0.0
    %1258 = vmatprep.subr.mxu0 0.0
    %1259 = vmatpush1.msra.mxu0 0.0
    %1260 = vmatprep.subr.mxu0 0.0
    %1261 = vmatpush1.msra.mxu0 0.0
    %1262 = vmatprep.subr.mxu0 0.0
    %1263 = vmatpush1.msra.mxu0 0.0
    %1264 = vmatprep.subr.mxu0 0.0
    %1265 = vmatpush1.msra.mxu0 0.0
    %1266 = vmatprep.subr.mxu0 0.0
    %1267 = vmatpush1.msra.mxu0 0.0
    %1268 = vmatprep.subr.mxu0 0.0
    %1269 = vmatpush1.msra.mxu0 0.0
    %1270 = vmatprep.subr.mxu0 0.0
    %1271 = vmatpush1.msra.mxu0 0.0
    %1272 = vmatprep.subr.mxu0 0.0
    %1273 = vmatpush1.msra.mxu0 0.0
    %1274 = vmatprep.subr.mxu0 0.0
    %1275 = vmatpush1.msra.mxu0 0.0
    %1276 = vmatprep.subr.mxu0 0.0
    %1277 = vmatpush1.msra.mxu0 0.0
    %1278 = vmatprep.subr.mxu0 0.0
    %1279 = vmatpush1.msra.mxu0 0.0
    %1280 = vmatprep.subr.mxu0 0.0
    %1281 = vmatpush1.msra.mxu0 0.0
    %1282 = vmatprep.subr.mxu0 0.0
    %1283 = vmatpush1.msra.mxu0 0.0
    %1284 = vmatprep.subr.mxu0 0.0
    %1285 = vmatpush1.msra.mxu0 0.0
    %1286 = vmatprep.mubr.f32.mxu0 0.0
    %1287 = vmatmul.mubr.f32.gmra.mrb[0].mxu0 %v1096
    %v1288 = vpop.f32.mrb[0].mxu0
    %v1289 = vadd.f32 0.0, %v1288
    %v1290 = vpop.f32.mrb[0].mxu0
    %1291 = vdwg.mxu0
    %v1292 = vadd.f32 %v1100, %v1218
    %v1293 = vxor.u32 %v1292, 2147483648
    %v1294 = vmul.f32 %v1293, 1.442695
    %v1295 = vpow.pop %v1294
    %v1296 = vadd.f32 %v1295, 1.0
    %v1297 = vrcp.pop %v1296
    %v1298 = vmul.f32 1.0, %v1297
    %v1299 = vadd.f32 %v1101, %v1220
    %v1300 = vxor.u32 %v1299, 2147483648
    %v1301 = vmul.f32 %v1300, 1.442695
    %v1302 = vpow.pop %v1301
    %v1303 = vadd.f32 %v1302, 1.0
    %v1304 = vrcp.pop %v1303
    %v1305 = vmul.f32 1.0, %v1304
    %v1306 = vadd.f32 %v1289, %v447
    %v1307 = vmul.f32 %v1298, %v1306
    %v1308 = vadd.f32 %v1102, %v1307
    %v1309 = vtanh.pop %v1308
    %v1310 = vsub.f32 1.0, %v1305
    %v1311 = vmul.f32 %v1310, %v1309
    %v1312 = vmul.f32 %v1305, %v1096
    %v1313 = vadd.f32 %v1311, %v1312
    %s1314 = scalar_lea.vmem [#allocation3], 24
    %1315 = vst [vmem:[%s1314] sm:$0xff] %v1313
    %s1316 = scalar_lea.vmem [#allocation4], 96
    %v1317 = vld [vmem:[%s1316] sm:$0xff]
    %v1318 = vld [vmem:[%s1316 + $0x8] sm:$0xff]
    %v1319 = vld [vmem:[%s1316 + $0x10] sm:$0xff]
    %v1320 = vld [vmem:[#allocation10] sm:$0xff]
    %v1321 = vld [vmem:[#allocation10 + $0x8] sm:$0xff]
    %v1322 = vld [vmem:[#allocation10 + $0x10] sm:$0xff]
    %v1323 = vld [vmem:[#allocation10 + $0x18] sm:$0xff]
    %v1324 = vld [vmem:[#allocation10 + $0x20] sm:$0xff]
    %v1325 = vld [vmem:[#allocation10 + $0x28] sm:$0xff]
    %v1326 = vld [vmem:[#allocation10 + $0x30] sm:$0xff]
    %v1327 = vld [vmem:[#allocation10 + $0x38] sm:$0xff]
    %v1328 = vld [vmem:[#allocation10 + $0x40] sm:$0xff]
    %v1329 = vld [vmem:[#allocation10 + $0x48] sm:$0xff]
    %v1330 = vld [vmem:[#allocation10 + $0x50] sm:$0xff]
    %v1331 = vld [vmem:[#allocation10 + $0x58] sm:$0xff]
    %v1332 = vld [vmem:[#allocation10 + $0x60] sm:$0xff]
    %v1333 = vld [vmem:[#allocation10 + $0x68] sm:$0xff]
    %v1334 = vld [vmem:[#allocation10 + $0x70] sm:$0xff]
    %v1335 = vld [vmem:[#allocation10 + $0x78] sm:$0xff]
    %v1336 = vld [vmem:[#allocation10 + $0x80] sm:$0xff]
    %v1337 = vld [vmem:[#allocation10 + $0x88] sm:$0xff]
    %v1338 = vld [vmem:[#allocation10 + $0x90] sm:$0xff]
    %v1339 = vld [vmem:[#allocation10 + $0x98] sm:$0xff]
    %v1340 = vld [vmem:[#allocation10 + $0xa0] sm:$0xff]
    %v1341 = vld [vmem:[#allocation10 + $0xa8] sm:$0xff]
    %v1342 = vld [vmem:[#allocation10 + $0xb0] sm:$0xff]
    %v1343 = vld [vmem:[#allocation10 + $0xb8] sm:$0xff]
    %v1344 = vld [vmem:[#allocation10 + $0xc0] sm:$0xff]
    %v1345 = vld [vmem:[#allocation10 + $0xc8] sm:$0xff]
    %v1346 = vld [vmem:[#allocation10 + $0xd0] sm:$0xff]
    %v1347 = vld [vmem:[#allocation10 + $0xd8] sm:$0xff]
    %v1348 = vld [vmem:[#allocation10 + $0xe0] sm:$0xff]
    %v1349 = vld [vmem:[#allocation10 + $0xe8] sm:$0xff]
    %v1350 = vld [vmem:[#allocation10 + $0xf0] sm:$0xff]
    %v1351 = vld [vmem:[#allocation10 + $0xf8] sm:$0xff]
    %v1352 = vld [vmem:[#allocation10 + $0x100] sm:$0xff]
    %v1353 = vld [vmem:[#allocation10 + $0x108] sm:$0xff]
    %v1354 = vld [vmem:[#allocation10 + $0x110] sm:$0xff]
    %v1355 = vld [vmem:[#allocation10 + $0x118] sm:$0xff]
    %v1356 = vld [vmem:[#allocation10 + $0x120] sm:$0xff]
    %v1357 = vld [vmem:[#allocation10 + $0x128] sm:$0xff]
    %v1358 = vld [vmem:[#allocation10 + $0x130] sm:$0xff]
    %v1359 = vld [vmem:[#allocation10 + $0x138] sm:$0xff]
    %v1360 = vld [vmem:[#allocation10 + $0x140] sm:$0xff]
    %v1361 = vld [vmem:[#allocation10 + $0x148] sm:$0xff]
    %v1362 = vld [vmem:[#allocation10 + $0x150] sm:$0xff]
    %v1363 = vld [vmem:[#allocation10 + $0x158] sm:$0xff]
    %v1364 = vld [vmem:[#allocation10 + $0x160] sm:$0xff]
    %v1365 = vld [vmem:[#allocation10 + $0x168] sm:$0xff]
    %v1366 = vld [vmem:[#allocation10 + $0x170] sm:$0xff]
    %v1367 = vld [vmem:[#allocation10 + $0x178] sm:$0xff]
    %1368 = vmatprep.subr.mxu0 %v1321
    %1369 = vmatpush1.msra.mxu0 %v1320
    %1370 = vmatprep.subr.mxu0 %v1324
    %1371 = vmatpush1.msra.mxu0 %v1323
    %1372 = vmatprep.subr.mxu0 %v1327
    %1373 = vmatpush1.msra.mxu0 %v1326
    %1374 = vmatprep.subr.mxu0 %v1330
    %1375 = vmatpush1.msra.mxu0 %v1329
    %1376 = vmatprep.subr.mxu0 %v1333
    %1377 = vmatpush1.msra.mxu0 %v1332
    %1378 = vmatprep.subr.mxu0 %v1336
    %1379 = vmatpush1.msra.mxu0 %v1335
    %1380 = vmatprep.subr.mxu0 %v1339
    %1381 = vmatpush1.msra.mxu0 %v1338
    %1382 = vmatprep.subr.mxu0 %v1342
    %1383 = vmatpush1.msra.mxu0 %v1341
    %1384 = vmatprep.subr.mxu0 %v1345
    %1385 = vmatpush1.msra.mxu0 %v1344
    %1386 = vmatprep.subr.mxu0 %v1348
    %1387 = vmatpush1.msra.mxu0 %v1347
    %1388 = vmatprep.subr.mxu0 %v1351
    %1389 = vmatpush1.msra.mxu0 %v1350
    %1390 = vmatprep.subr.mxu0 %v1354
    %1391 = vmatpush1.msra.mxu0 %v1353
    %1392 = vmatprep.subr.mxu0 %v1357
    %1393 = vmatpush1.msra.mxu0 %v1356
    %1394 = vmatprep.subr.mxu0 %v1360
    %1395 = vmatpush1.msra.mxu0 %v1359
    %1396 = vmatprep.subr.mxu0 %v1363
    %1397 = vmatpush1.msra.mxu0 %v1362
    %1398 = vmatprep.subr.mxu0 %v1366
    %1399 = vmatpush1.msra.mxu0 %v1365
    %1400 = vmatprep.subr.mxu0 0.0
    %1401 = vmatpush1.msra.mxu0 0.0
    %1402 = vmatprep.subr.mxu0 0.0
    %1403 = vmatpush1.msra.mxu0 0.0
    %1404 = vmatprep.subr.mxu0 0.0
    %1405 = vmatpush1.msra.mxu0 0.0
    %1406 = vmatprep.subr.mxu0 0.0
    %1407 = vmatpush1.msra.mxu0 0.0
    %1408 = vmatprep.subr.mxu0 0.0
    %1409 = vmatpush1.msra.mxu0 0.0
    %1410 = vmatprep.subr.mxu0 0.0
    %1411 = vmatpush1.msra.mxu0 0.0
    %1412 = vmatprep.subr.mxu0 0.0
    %1413 = vmatpush1.msra.mxu0 0.0
    %1414 = vmatprep.subr.mxu0 0.0
    %1415 = vmatpush1.msra.mxu0 0.0
    %1416 = vmatprep.subr.mxu0 0.0
    %1417 = vmatpush1.msra.mxu0 0.0
    %1418 = vmatprep.subr.mxu0 0.0
    %1419 = vmatpush1.msra.mxu0 0.0
    %1420 = vmatprep.subr.mxu0 0.0
    %1421 = vmatpush1.msra.mxu0 0.0
    %1422 = vmatprep.subr.mxu0 0.0
    %1423 = vmatpush1.msra.mxu0 0.0
    %1424 = vmatprep.subr.mxu0 0.0
    %1425 = vmatpush1.msra.mxu0 0.0
    %1426 = vmatprep.subr.mxu0 0.0
    %1427 = vmatpush1.msra.mxu0 0.0
    %1428 = vmatprep.subr.mxu0 0.0
    %1429 = vmatpush1.msra.mxu0 0.0
    %1430 = vmatprep.subr.mxu0 0.0
    %1431 = vmatpush1.msra.mxu0 0.0
    %1432 = vmatprep.mubr.f32.mxu0 0.0
    %1433 = vmatmul.mubr.f32.gmra.mrb[0].mxu0 %v1313
    %v1434 = vpop.f32.mrb[0].mxu0
    %v1435 = vadd.f32 0.0, %v1434
    %v1436 = vpop.f32.mrb[0].mxu0
    %v1437 = vadd.f32 0.0, %v1436
    %1438 = vdwg.mxu0
    %1439 = vmatprep.subr.mxu0 0.0
    %1440 = vmatpush1.msra.mxu0 %v1322
    %1441 = vmatprep.subr.mxu0 0.0
    %1442 = vmatpush1.msra.mxu0 %v1325
    %1443 = vmatprep.subr.mxu0 0.0
    %1444 = vmatpush1.msra.mxu0 %v1328
    %1445 = vmatprep.subr.mxu0 0.0
    %1446 = vmatpush1.msra.mxu0 %v1331
    %1447 = vmatprep.subr.mxu0 0.0
    %1448 = vmatpush1.msra.mxu0 %v1334
    %1449 = vmatprep.subr.mxu0 0.0
    %1450 = vmatpush1.msra.mxu0 %v1337
    %1451 = vmatprep.subr.mxu0 0.0
    %1452 = vmatpush1.msra.mxu0 %v1340
    %1453 = vmatprep.subr.mxu0 0.0
    %1454 = vmatpush1.msra.mxu0 %v1343
    %1455 = vmatprep.subr.mxu0 0.0
    %1456 = vmatpush1.msra.mxu0 %v1346
    %1457 = vmatprep.subr.mxu0 0.0
    %1458 = vmatpush1.msra.mxu0 %v1349
    %1459 = vmatprep.subr.mxu0 0.0
    %1460 = vmatpush1.msra.mxu0 %v1352
    %1461 = vmatprep.subr.mxu0 0.0
    %1462 = vmatpush1.msra.mxu0 %v1355
    %1463 = vmatprep.subr.mxu0 0.0
    %1464 = vmatpush1.msra.mxu0 %v1358
    %1465 = vmatprep.subr.mxu0 0.0
    %1466 = vmatpush1.msra.mxu0 %v1361
    %1467 = vmatprep.subr.mxu0 0.0
    %1468 = vmatpush1.msra.mxu0 %v1364
    %1469 = vmatprep.subr.mxu0 0.0
    %1470 = vmatpush1.msra.mxu0 %v1367
    %1471 = vmatprep.subr.mxu0 0.0
    %1472 = vmatpush1.msra.mxu0 0.0
    %1473 = vmatprep.subr.mxu0 0.0
    %1474 = vmatpush1.msra.mxu0 0.0
    %1475 = vmatprep.subr.mxu0 0.0
    %1476 = vmatpush1.msra.mxu0 0.0
    %1477 = vmatprep.subr.mxu0 0.0
    %1478 = vmatpush1.msra.mxu0 0.0
    %1479 = vmatprep.subr.mxu0 0.0
    %1480 = vmatpush1.msra.mxu0 0.0
    %1481 = vmatprep.subr.mxu0 0.0
    %1482 = vmatpush1.msra.mxu0 0.0
    %1483 = vmatprep.subr.mxu0 0.0
    %1484 = vmatpush1.msra.mxu0 0.0
    %1485 = vmatprep.subr.mxu0 0.0
    %1486 = vmatpush1.msra.mxu0 0.0
    %1487 = vmatprep.subr.mxu0 0.0
    %1488 = vmatpush1.msra.mxu0 0.0
    %1489 = vmatprep.subr.mxu0 0.0
    %1490 = vmatpush1.msra.mxu0 0.0
    %1491 = vmatprep.subr.mxu0 0.0
    %1492 = vmatpush1.msra.mxu0 0.0
    %1493 = vmatprep.subr.mxu0 0.0
    %1494 = vmatpush1.msra.mxu0 0.0
    %1495 = vmatprep.subr.mxu0 0.0
    %1496 = vmatpush1.msra.mxu0 0.0
    %1497 = vmatprep.subr.mxu0 0.0
    %1498 = vmatpush1.msra.mxu0 0.0
    %1499 = vmatprep.subr.mxu0 0.0
    %1500 = vmatpush1.msra.mxu0 0.0
    %1501 = vmatprep.subr.mxu0 0.0
    %1502 = vmatpush1.msra.mxu0 0.0
    %1503 = vmatprep.mubr.f32.mxu0 0.0
    %1504 = vmatmul.mubr.f32.gmra.mrb[0].mxu0 %v1313
    %v1505 = vpop.f32.mrb[0].mxu0
    %v1506 = vadd.f32 0.0, %v1505
    %v1507 = vpop.f32.mrb[0].mxu0
    %1508 = vdwg.mxu0
    %v1509 = vadd.f32 %v1317, %v1435
    %v1510 = vxor.u32 %v1509, 2147483648
    %v1511 = vmul.f32 %v1510, 1.442695
    %v1512 = vpow.pop %v1511
    %v1513 = vadd.f32 %v1512, 1.0
    %v1514 = vrcp.pop %v1513
    %v1515 = vmul.f32 1.0, %v1514
    %v1516 = vadd.f32 %v1318, %v1437
    %v1517 = vxor.u32 %v1516, 2147483648
    %v1518 = vmul.f32 %v1517, 1.442695
    %v1519 = vpow.pop %v1518
    %v1520 = vadd.f32 %v1519, 1.0
    %v1521 = vrcp.pop %v1520
    %v1522 = vmul.f32 1.0, %v1521
    %v1523 = vadd.f32 %v1506, %v447
    %v1524 = vmul.f32 %v1515, %v1523
    %v1525 = vadd.f32 %v1319, %v1524
    %v1526 = vtanh.pop %v1525
    %v1527 = vsub.f32 1.0, %v1522
    %v1528 = vmul.f32 %v1527, %v1526
    %v1529 = vmul.f32 %v1522, %v1313
    %v1530 = vadd.f32 %v1528, %v1529
    %s1531 = scalar_lea.vmem [#allocation3], 32
    %1532 = vst [vmem:[%s1531] sm:$0xff] %v1530
    %s1533 = scalar_lea.vmem [#allocation4], 120
    %v1534 = vld [vmem:[%s1533] sm:$0xff]
    %v1535 = vld [vmem:[%s1533 + $0x8] sm:$0xff]
    %v1536 = vld [vmem:[%s1533 + $0x10] sm:$0xff]
    %v1537 = vld [vmem:[#allocation10] sm:$0xff]
    %v1538 = vld [vmem:[#allocation10 + $0x8] sm:$0xff]
    %v1539 = vld [vmem:[#allocation10 + $0x10] sm:$0xff]
    %v1540 = vld [vmem:[#allocation10 + $0x18] sm:$0xff]
    %v1541 = vld [vmem:[#allocation10 + $0x20] sm:$0xff]
    %v1542 = vld [vmem:[#allocation10 + $0x28] sm:$0xff]
    %v1543 = vld [vmem:[#allocation10 + $0x30] sm:$0xff]
    %v1544 = vld [vmem:[#allocation10 + $0x38] sm:$0xff]
    %v1545 = vld [vmem:[#allocation10 + $0x40] sm:$0xff]
    %v1546 = vld [vmem:[#allocation10 + $0x48] sm:$0xff]
    %v1547 = vld [vmem:[#allocation10 + $0x50] sm:$0xff]
    %v1548 = vld [vmem:[#allocation10 + $0x58] sm:$0xff]
    %v1549 = vld [vmem:[#allocation10 + $0x60] sm:$0xff]
    %v1550 = vld [vmem:[#allocation10 + $0x68] sm:$0xff]
    %v1551 = vld [vmem:[#allocation10 + $0x70] sm:$0xff]
    %v1552 = vld [vmem:[#allocation10 + $0x78] sm:$0xff]
    %v1553 = vld [vmem:[#allocation10 + $0x80] sm:$0xff]
    %v1554 = vld [vmem:[#allocation10 + $0x88] sm:$0xff]
    %v1555 = vld [vmem:[#allocation10 + $0x90] sm:$0xff]
    %v1556 = vld [vmem:[#allocation10 + $0x98] sm:$0xff]
    %v1557 = vld [vmem:[#allocation10 + $0xa0] sm:$0xff]
    %v1558 = vld [vmem:[#allocation10 + $0xa8] sm:$0xff]
    %v1559 = vld [vmem:[#allocation10 + $0xb0] sm:$0xff]
    %v1560 = vld [vmem:[#allocation10 + $0xb8] sm:$0xff]
    %v1561 = vld [vmem:[#allocation10 + $0xc0] sm:$0xff]
    %v1562 = vld [vmem:[#allocation10 + $0xc8] sm:$0xff]
    %v1563 = vld [vmem:[#allocation10 + $0xd0] sm:$0xff]
    %v1564 = vld [vmem:[#allocation10 + $0xd8] sm:$0xff]
    %v1565 = vld [vmem:[#allocation10 + $0xe0] sm:$0xff]
    %v1566 = vld [vmem:[#allocation10 + $0xe8] sm:$0xff]
    %v1567 = vld [vmem:[#allocation10 + $0xf0] sm:$0xff]
    %v1568 = vld [vmem:[#allocation10 + $0xf8] sm:$0xff]
    %v1569 = vld [vmem:[#allocation10 + $0x100] sm:$0xff]
    %v1570 = vld [vmem:[#allocation10 + $0x108] sm:$0xff]
    %v1571 = vld [vmem:[#allocation10 + $0x110] sm:$0xff]
    %v1572 = vld [vmem:[#allocation10 + $0x118] sm:$0xff]
    %v1573 = vld [vmem:[#allocation10 + $0x120] sm:$0xff]
    %v1574 = vld [vmem:[#allocation10 + $0x128] sm:$0xff]
    %v1575 = vld [vmem:[#allocation10 + $0x130] sm:$0xff]
    %v1576 = vld [vmem:[#allocation10 + $0x138] sm:$0xff]
    %v1577 = vld [vmem:[#allocation10 + $0x140] sm:$0xff]
    %v1578 = vld [vmem:[#allocation10 + $0x148] sm:$0xff]
    %v1579 = vld [vmem:[#allocation10 + $0x150] sm:$0xff]
    %v1580 = vld [vmem:[#allocation10 + $0x158] sm:$0xff]
    %v1581 = vld [vmem:[#allocation10 + $0x160] sm:$0xff]
    %v1582 = vld [vmem:[#allocation10 + $0x168] sm:$0xff]
    %v1583 = vld [vmem:[#allocation10 + $0x170] sm:$0xff]
    %v1584 = vld [vmem:[#allocation10 + $0x178] sm:$0xff]
    %1585 = vmatprep.subr.mxu0 %v1538
    %1586 = vmatpush1.msra.mxu0 %v1537
    %1587 = vmatprep.subr.mxu0 %v1541
    %1588 = vmatpush1.msra.mxu0 %v1540
    %1589 = vmatprep.subr.mxu0 %v1544
    %1590 = vmatpush1.msra.mxu0 %v1543
    %1591 = vmatprep.subr.mxu0 %v1547
    %1592 = vmatpush1.msra.mxu0 %v1546
    %1593 = vmatprep.subr.mxu0 %v1550
    %1594 = vmatpush1.msra.mxu0 %v1549
    %1595 = vmatprep.subr.mxu0 %v1553
    %1596 = vmatpush1.msra.mxu0 %v1552
    %1597 = vmatprep.subr.mxu0 %v1556
    %1598 = vmatpush1.msra.mxu0 %v1555
    %1599 = vmatprep.subr.mxu0 %v1559
    %1600 = vmatpush1.msra.mxu0 %v1558
    %1601 = vmatprep.subr.mxu0 %v1562
    %1602 = vmatpush1.msra.mxu0 %v1561
    %1603 = vmatprep.subr.mxu0 %v1565
    %1604 = vmatpush1.msra.mxu0 %v1564
    %1605 = vmatprep.subr.mxu0 %v1568
    %1606 = vmatpush1.msra.mxu0 %v1567
    %1607 = vmatprep.subr.mxu0 %v1571
    %1608 = vmatpush1.msra.mxu0 %v1570
    %1609 = vmatprep.subr.mxu0 %v1574
    %1610 = vmatpush1.msra.mxu0 %v1573
    %1611 = vmatprep.subr.mxu0 %v1577
    %1612 = vmatpush1.msra.mxu0 %v1576
    %1613 = vmatprep.subr.mxu0 %v1580
    %1614 = vmatpush1.msra.mxu0 %v1579
    %1615 = vmatprep.subr.mxu0 %v1583
    %1616 = vmatpush1.msra.mxu0 %v1582
    %1617 = vmatprep.subr.mxu0 0.0
    %1618 = vmatpush1.msra.mxu0 0.0
    %1619 = vmatprep.subr.mxu0 0.0
    %1620 = vmatpush1.msra.mxu0 0.0
    %1621 = vmatprep.subr.mxu0 0.0
    %1622 = vmatpush1.msra.mxu0 0.0
    %1623 = vmatprep.subr.mxu0 0.0
    %1624 = vmatpush1.msra.mxu0 0.0
    %1625 = vmatprep.subr.mxu0 0.0
    %1626 = vmatpush1.msra.mxu0 0.0
    %1627 = vmatprep.subr.mxu0 0.0
    %1628 = vmatpush1.msra.mxu0 0.0
    %1629 = vmatprep.subr.mxu0 0.0
    %1630 = vmatpush1.msra.mxu0 0.0
    %1631 = vmatprep.subr.mxu0 0.0
    %1632 = vmatpush1.msra.mxu0 0.0
    %1633 = vmatprep.subr.mxu0 0.0
    %1634 = vmatpush1.msra.mxu0 0.0
    %1635 = vmatprep.subr.mxu0 0.0
    %1636 = vmatpush1.msra.mxu0 0.0
    %1637 = vmatprep.subr.mxu0 0.0
    %1638 = vmatpush1.msra.mxu0 0.0
    %1639 = vmatprep.subr.mxu0 0.0
    %1640 = vmatpush1.msra.mxu0 0.0
    %1641 = vmatprep.subr.mxu0 0.0
    %1642 = vmatpush1.msra.mxu0 0.0
    %1643 = vmatprep.subr.mxu0 0.0
    %1644 = vmatpush1.msra.mxu0 0.0
    %1645 = vmatprep.subr.mxu0 0.0
    %1646 = vmatpush1.msra.mxu0 0.0
    %1647 = vmatprep.subr.mxu0 0.0
    %1648 = vmatpush1.msra.mxu0 0.0
    %1649 = vmatprep.mubr.f32.mxu0 0.0
    %1650 = vmatmul.mubr.f32.gmra.mrb[0].mxu0 %v1530
    %v1651 = vpop.f32.mrb[0].mxu0
    %v1652 = vadd.f32 0.0, %v1651
    %v1653 = vpop.f32.mrb[0].mxu0
    %v1654 = vadd.f32 0.0, %v1653
    %1655 = vdwg.mxu0
    %1656 = vmatprep.subr.mxu0 0.0
    %1657 = vmatpush1.msra.mxu0 %v1539
    %1658 = vmatprep.subr.mxu0 0.0
    %1659 = vmatpush1.msra.mxu0 %v1542
    %1660 = vmatprep.subr.mxu0 0.0
    %1661 = vmatpush1.msra.mxu0 %v1545
    %1662 = vmatprep.subr.mxu0 0.0
    %1663 = vmatpush1.msra.mxu0 %v1548
    %1664 = vmatprep.subr.mxu0 0.0
    %1665 = vmatpush1.msra.mxu0 %v1551
    %1666 = vmatprep.subr.mxu0 0.0
    %1667 = vmatpush1.msra.mxu0 %v1554
    %1668 = vmatprep.subr.mxu0 0.0
    %1669 = vmatpush1.msra.mxu0 %v1557
    %1670 = vmatprep.subr.mxu0 0.0
    %1671 = vmatpush1.msra.mxu0 %v1560
    %1672 = vmatprep.subr.mxu0 0.0
    %1673 = vmatpush1.msra.mxu0 %v1563
    %1674 = vmatprep.subr.mxu0 0.0
    %1675 = vmatpush1.msra.mxu0 %v1566
    %1676 = vmatprep.subr.mxu0 0.0
    %1677 = vmatpush1.msra.mxu0 %v1569
    %1678 = vmatprep.subr.mxu0 0.0
    %1679 = vmatpush1.msra.mxu0 %v1572
    %1680 = vmatprep.subr.mxu0 0.0
    %1681 = vmatpush1.msra.mxu0 %v1575
    %1682 = vmatprep.subr.mxu0 0.0
    %1683 = vmatpush1.msra.mxu0 %v1578
    %1684 = vmatprep.subr.mxu0 0.0
    %1685 = vmatpush1.msra.mxu0 %v1581
    %1686 = vmatprep.subr.mxu0 0.0
    %1687 = vmatpush1.msra.mxu0 %v1584
    %1688 = vmatprep.subr.mxu0 0.0
    %1689 = vmatpush1.msra.mxu0 0.0
    %1690 = vmatprep.subr.mxu0 0.0
    %1691 = vmatpush1.msra.mxu0 0.0
    %1692 = vmatprep.subr.mxu0 0.0
    %1693 = vmatpush1.msra.mxu0 0.0
    %1694 = vmatprep.subr.mxu0 0.0
    %1695 = vmatpush1.msra.mxu0 0.0
    %1696 = vmatprep.subr.mxu0 0.0
    %1697 = vmatpush1.msra.mxu0 0.0
    %1698 = vmatprep.subr.mxu0 0.0
    %1699 = vmatpush1.msra.mxu0 0.0
    %1700 = vmatprep.subr.mxu0 0.0
    %1701 = vmatpush1.msra.mxu0 0.0
    %1702 = vmatprep.subr.mxu0 0.0
    %1703 = vmatpush1.msra.mxu0 0.0
    %1704 = vmatprep.subr.mxu0 0.0
    %1705 = vmatpush1.msra.mxu0 0.0
    %1706 = vmatprep.subr.mxu0 0.0
    %1707 = vmatpush1.msra.mxu0 0.0
    %1708 = vmatprep.subr.mxu0 0.0
    %1709 = vmatpush1.msra.mxu0 0.0
    %1710 = vmatprep.subr.mxu0 0.0
    %1711 = vmatpush1.msra.mxu0 0.0
    %1712 = vmatprep.subr.mxu0 0.0
    %1713 = vmatpush1.msra.mxu0 0.0
    %1714 = vmatprep.subr.mxu0 0.0
    %1715 = vmatpush1.msra.mxu0 0.0
    %1716 = vmatprep.subr.mxu0 0.0
    %1717 = vmatpush1.msra.mxu0 0.0
    %1718 = vmatprep.subr.mxu0 0.0
    %1719 = vmatpush1.msra.mxu0 0.0
    %1720 = vmatprep.mubr.f32.mxu0 0.0
    %1721 = vmatmul.mubr.f32.gmra.mrb[0].mxu0 %v1530
    %v1722 = vpop.f32.mrb[0].mxu0
    %v1723 = vadd.f32 0.0, %v1722
    %v1724 = vpop.f32.mrb[0].mxu0
    %1725 = vdwg.mxu0
    %v1726 = vadd.f32 %v1534, %v1652
    %v1727 = vxor.u32 %v1726, 2147483648
    %v1728 = vmul.f32 %v1727, 1.442695
    %v1729 = vpow.pop %v1728
    %v1730 = vadd.f32 %v1729, 1.0
    %v1731 = vrcp.pop %v1730
    %v1732 = vmul.f32 1.0, %v1731
    %v1733 = vadd.f32 %v1535, %v1654
    %v1734 = vxor.u32 %v1733, 2147483648
    %v1735 = vmul.f32 %v1734, 1.442695
    %v1736 = vpow.pop %v1735
    %v1737 = vadd.f32 %v1736, 1.0
    %v1738 = vrcp.pop %v1737
    %v1739 = vmul.f32 1.0, %v1738
    %v1740 = vadd.f32 %v1723, %v447
    %v1741 = vmul.f32 %v1732, %v1740
    %v1742 = vadd.f32 %v1536, %v1741
    %v1743 = vtanh.pop %v1742
    %v1744 = vsub.f32 1.0, %v1739
    %v1745 = vmul.f32 %v1744, %v1743
    %v1746 = vmul.f32 %v1739, %v1530
    %v1747 = vadd.f32 %v1745, %v1746
    %s1748 = scalar_lea.vmem [#allocation3], 40
    %1749 = vst [vmem:[%s1748] sm:$0xff] %v1747
    %s1750 = scalar_lea.vmem [#allocation4], 144
    %v1751 = vld [vmem:[%s1750] sm:$0xff]
    %v1752 = vld [vmem:[%s1750 + $0x8] sm:$0xff]
    %v1753 = vld [vmem:[%s1750 + $0x10] sm:$0xff]
    %v1754 = vld [vmem:[#allocation10] sm:$0xff]
    %v1755 = vld [vmem:[#allocation10 + $0x8] sm:$0xff]
    %v1756 = vld [vmem:[#allocation10 + $0x10] sm:$0xff]
    %v1757 = vld [vmem:[#allocation10 + $0x18] sm:$0xff]
    %v1758 = vld [vmem:[#allocation10 + $0x20] sm:$0xff]
    %v1759 = vld [vmem:[#allocation10 + $0x28] sm:$0xff]
    %v1760 = vld [vmem:[#allocation10 + $0x30] sm:$0xff]
    %v1761 = vld [vmem:[#allocation10 + $0x38] sm:$0xff]
    %v1762 = vld [vmem:[#allocation10 + $0x40] sm:$0xff]
    %v1763 = vld [vmem:[#allocation10 + $0x48] sm:$0xff]
    %v1764 = vld [vmem:[#allocation10 + $0x50] sm:$0xff]
    %v1765 = vld [vmem:[#allocation10 + $0x58] sm:$0xff]
    %v1766 = vld [vmem:[#allocation10 + $0x60] sm:$0xff]
    %v1767 = vld [vmem:[#allocation10 + $0x68] sm:$0xff]
    %v1768 = vld [vmem:[#allocation10 + $0x70] sm:$0xff]
    %v1769 = vld [vmem:[#allocation10 + $0x78] sm:$0xff]
    %v1770 = vld [vmem:[#allocation10 + $0x80] sm:$0xff]
    %v1771 = vld [vmem:[#allocation10 + $0x88] sm:$0xff]
    %v1772 = vld [vmem:[#allocation10 + $0x90] sm:$0xff]
    %v1773 = vld [vmem:[#allocation10 + $0x98] sm:$0xff]
    %v1774 = vld [vmem:[#allocation10 + $0xa0] sm:$0xff]
    %v1775 = vld [vmem:[#allocation10 + $0xa8] sm:$0xff]
    %v1776 = vld [vmem:[#allocation10 + $0xb0] sm:$0xff]
    %v1777 = vld [vmem:[#allocation10 + $0xb8] sm:$0xff]
    %v1778 = vld [vmem:[#allocation10 + $0xc0] sm:$0xff]
    %v1779 = vld [vmem:[#allocation10 + $0xc8] sm:$0xff]
    %v1780 = vld [vmem:[#allocation10 + $0xd0] sm:$0xff]
    %v1781 = vld [vmem:[#allocation10 + $0xd8] sm:$0xff]
    %v1782 = vld [vmem:[#allocation10 + $0xe0] sm:$0xff]
    %v1783 = vld [vmem:[#allocation10 + $0xe8] sm:$0xff]
    %v1784 = vld [vmem:[#allocation10 + $0xf0] sm:$0xff]
    %v1785 = vld [vmem:[#allocation10 + $0xf8] sm:$0xff]
    %v1786 = vld [vmem:[#allocation10 + $0x100] sm:$0xff]
    %v1787 = vld [vmem:[#allocation10 + $0x108] sm:$0xff]
    %v1788 = vld [vmem:[#allocation10 + $0x110] sm:$0xff]
    %v1789 = vld [vmem:[#allocation10 + $0x118] sm:$0xff]
    %v1790 = vld [vmem:[#allocation10 + $0x120] sm:$0xff]
    %v1791 = vld [vmem:[#allocation10 + $0x128] sm:$0xff]
    %v1792 = vld [vmem:[#allocation10 + $0x130] sm:$0xff]
    %v1793 = vld [vmem:[#allocation10 + $0x138] sm:$0xff]
    %v1794 = vld [vmem:[#allocation10 + $0x140] sm:$0xff]
    %v1795 = vld [vmem:[#allocation10 + $0x148] sm:$0xff]
    %v1796 = vld [vmem:[#allocation10 + $0x150] sm:$0xff]
    %v1797 = vld [vmem:[#allocation10 + $0x158] sm:$0xff]
    %v1798 = vld [vmem:[#allocation10 + $0x160] sm:$0xff]
    %v1799 = vld [vmem:[#allocation10 + $0x168] sm:$0xff]
    %v1800 = vld [vmem:[#allocation10 + $0x170] sm:$0xff]
    %v1801 = vld [vmem:[#allocation10 + $0x178] sm:$0xff]
    %1802 = vmatprep.subr.mxu0 %v1755
    %1803 = vmatpush1.msra.mxu0 %v1754
    %1804 = vmatprep.subr.mxu0 %v1758
    %1805 = vmatpush1.msra.mxu0 %v1757
    %1806 = vmatprep.subr.mxu0 %v1761
    %1807 = vmatpush1.msra.mxu0 %v1760
    %1808 = vmatprep.subr.mxu0 %v1764
    %1809 = vmatpush1.msra.mxu0 %v1763
    %1810 = vmatprep.subr.mxu0 %v1767
    %1811 = vmatpush1.msra.mxu0 %v1766
    %1812 = vmatprep.subr.mxu0 %v1770
    %1813 = vmatpush1.msra.mxu0 %v1769
    %1814 = vmatprep.subr.mxu0 %v1773
    %1815 = vmatpush1.msra.mxu0 %v1772
    %1816 = vmatprep.subr.mxu0 %v1776
    %1817 = vmatpush1.msra.mxu0 %v1775
    %1818 = vmatprep.subr.mxu0 %v1779
    %1819 = vmatpush1.msra.mxu0 %v1778
    %1820 = vmatprep.subr.mxu0 %v1782
    %1821 = vmatpush1.msra.mxu0 %v1781
    %1822 = vmatprep.subr.mxu0 %v1785
    %1823 = vmatpush1.msra.mxu0 %v1784
    %1824 = vmatprep.subr.mxu0 %v1788
    %1825 = vmatpush1.msra.mxu0 %v1787
    %1826 = vmatprep.subr.mxu0 %v1791
    %1827 = vmatpush1.msra.mxu0 %v1790
    %1828 = vmatprep.subr.mxu0 %v1794
    %1829 = vmatpush1.msra.mxu0 %v1793
    %1830 = vmatprep.subr.mxu0 %v1797
    %1831 = vmatpush1.msra.mxu0 %v1796
    %1832 = vmatprep.subr.mxu0 %v1800
    %1833 = vmatpush1.msra.mxu0 %v1799
    %1834 = vmatprep.subr.mxu0 0.0
    %1835 = vmatpush1.msra.mxu0 0.0
    %1836 = vmatprep.subr.mxu0 0.0
    %1837 = vmatpush1.msra.mxu0 0.0
    %1838 = vmatprep.subr.mxu0 0.0
    %1839 = vmatpush1.msra.mxu0 0.0
    %1840 = vmatprep.subr.mxu0 0.0
    %1841 = vmatpush1.msra.mxu0 0.0
    %1842 = vmatprep.subr.mxu0 0.0
    %1843 = vmatpush1.msra.mxu0 0.0
    %1844 = vmatprep.subr.mxu0 0.0
    %1845 = vmatpush1.msra.mxu0 0.0
    %1846 = vmatprep.subr.mxu0 0.0
    %1847 = vmatpush1.msra.mxu0 0.0
    %1848 = vmatprep.subr.mxu0 0.0
    %1849 = vmatpush1.msra.mxu0 0.0
    %1850 = vmatprep.subr.mxu0 0.0
    %1851 = vmatpush1.msra.mxu0 0.0
    %1852 = vmatprep.subr.mxu0 0.0
    %1853 = vmatpush1.msra.mxu0 0.0
    %1854 = vmatprep.subr.mxu0 0.0
    %1855 = vmatpush1.msra.mxu0 0.0
    %1856 = vmatprep.subr.mxu0 0.0
    %1857 = vmatpush1.msra.mxu0 0.0
    %1858 = vmatprep.subr.mxu0 0.0
    %1859 = vmatpush1.msra.mxu0 0.0
    %1860 = vmatprep.subr.mxu0 0.0
    %1861 = vmatpush1.msra.mxu0 0.0
    %1862 = vmatprep.subr.mxu0 0.0
    %1863 = vmatpush1.msra.mxu0 0.0
    %1864 = vmatprep.subr.mxu0 0.0
    %1865 = vmatpush1.msra.mxu0 0.0
    %1866 = vmatprep.mubr.f32.mxu0 0.0
    %1867 = vmatmul.mubr.f32.gmra.mrb[0].mxu0 %v1747
    %v1868 = vpop.f32.mrb[0].mxu0
    %v1869 = vadd.f32 0.0, %v1868
    %v1870 = vpop.f32.mrb[0].mxu0
    %v1871 = vadd.f32 0.0, %v1870
    %1872 = vdwg.mxu0
    %1873 = vmatprep.subr.mxu0 0.0
    %1874 = vmatpush1.msra.mxu0 %v1756
    %1875 = vmatprep.subr.mxu0 0.0
    %1876 = vmatpush1.msra.mxu0 %v1759
    %1877 = vmatprep.subr.mxu0 0.0
    %1878 = vmatpush1.msra.mxu0 %v1762
    %1879 = vmatprep.subr.mxu0 0.0
    %1880 = vmatpush1.msra.mxu0 %v1765
    %1881 = vmatprep.subr.mxu0 0.0
    %1882 = vmatpush1.msra.mxu0 %v1768
    %1883 = vmatprep.subr.mxu0 0.0
    %1884 = vmatpush1.msra.mxu0 %v1771
    %1885 = vmatprep.subr.mxu0 0.0
    %1886 = vmatpush1.msra.mxu0 %v1774
    %1887 = vmatprep.subr.mxu0 0.0
    %1888 = vmatpush1.msra.mxu0 %v1777
    %1889 = vmatprep.subr.mxu0 0.0
    %1890 = vmatpush1.msra.mxu0 %v1780
    %1891 = vmatprep.subr.mxu0 0.0
    %1892 = vmatpush1.msra.mxu0 %v1783
    %1893 = vmatprep.subr.mxu0 0.0
    %1894 = vmatpush1.msra.mxu0 %v1786
    %1895 = vmatprep.subr.mxu0 0.0
    %1896 = vmatpush1.msra.mxu0 %v1789
    %1897 = vmatprep.subr.mxu0 0.0
    %1898 = vmatpush1.msra.mxu0 %v1792
    %1899 = vmatprep.subr.mxu0 0.0
    %1900 = vmatpush1.msra.mxu0 %v1795
    %1901 = vmatprep.subr.mxu0 0.0
    %1902 = vmatpush1.msra.mxu0 %v1798
    %1903 = vmatprep.subr.mxu0 0.0
    %1904 = vmatpush1.msra.mxu0 %v1801
    %1905 = vmatprep.subr.mxu0 0.0
    %1906 = vmatpush1.msra.mxu0 0.0
    %1907 = vmatprep.subr.mxu0 0.0
    %1908 = vmatpush1.msra.mxu0 0.0
    %1909 = vmatprep.subr.mxu0 0.0
    %1910 = vmatpush1.msra.mxu0 0.0
    %1911 = vmatprep.subr.mxu0 0.0
    %1912 = vmatpush1.msra.mxu0 0.0
    %1913 = vmatprep.subr.mxu0 0.0
    %1914 = vmatpush1.msra.mxu0 0.0
    %1915 = vmatprep.subr.mxu0 0.0
    %1916 = vmatpush1.msra.mxu0 0.0
    %1917 = vmatprep.subr.mxu0 0.0
    %1918 = vmatpush1.msra.mxu0 0.0
    %1919 = vmatprep.subr.mxu0 0.0
    %1920 = vmatpush1.msra.mxu0 0.0
    %1921 = vmatprep.subr.mxu0 0.0
    %1922 = vmatpush1.msra.mxu0 0.0
    %1923 = vmatprep.subr.mxu0 0.0
    %1924 = vmatpush1.msra.mxu0 0.0
    %1925 = vmatprep.subr.mxu0 0.0
    %1926 = vmatpush1.msra.mxu0 0.0
    %1927 = vmatprep.subr.mxu0 0.0
    %1928 = vmatpush1.msra.mxu0 0.0
    %1929 = vmatprep.subr.mxu0 0.0
    %1930 = vmatpush1.msra.mxu0 0.0
    %1931 = vmatprep.subr.mxu0 0.0
    %1932 = vmatpush1.msra.mxu0 0.0
    %1933 = vmatprep.subr.mxu0 0.0
    %1934 = vmatpush1.msra.mxu0 0.0
    %1935 = vmatprep.subr.mxu0 0.0
    %1936 = vmatpush1.msra.mxu0 0.0
    %1937 = vmatprep.mubr.f32.mxu0 0.0
    %1938 = vmatmul.mubr.f32.gmra.mrb[0].mxu0 %v1747
    %v1939 = vpop.f32.mrb[0].mxu0
    %v1940 = vadd.f32 0.0, %v1939
    %v1941 = vpop.f32.mrb[0].mxu0
    %1942 = vdwg.mxu0
    %v1943 = vadd.f32 %v1751, %v1869
    %v1944 = vxor.u32 %v1943, 2147483648
    %v1945 = vmul.f32 %v1944, 1.442695
    %v1946 = vpow.pop %v1945
    %v1947 = vadd.f32 %v1946, 1.0
    %v1948 = vrcp.pop %v1947
    %v1949 = vmul.f32 1.0, %v1948
    %v1950 = vadd.f32 %v1752, %v1871
    %v1951 = vxor.u32 %v1950, 2147483648
    %v1952 = vmul.f32 %v1951, 1.442695
    %v1953 = vpow.pop %v1952
    %v1954 = vadd.f32 %v1953, 1.0
    %v1955 = vrcp.pop %v1954
    %v1956 = vmul.f32 1.0, %v1955
    %v1957 = vadd.f32 %v1940, %v447
    %v1958 = vmul.f32 %v1949, %v1957
    %v1959 = vadd.f32 %v1753, %v1958
    %v1960 = vtanh.pop %v1959
    %v1961 = vsub.f32 1.0, %v1956
    %v1962 = vmul.f32 %v1961, %v1960
    %v1963 = vmul.f32 %v1956, %v1747
    %v1964 = vadd.f32 %v1962, %v1963
    %s1965 = scalar_lea.vmem [#allocation3], 48
    %1966 = vst [vmem:[%s1965] sm:$0xff] %v1964
    %s1967 = scalar_lea.vmem [#allocation4], 168
    %v1968 = vld [vmem:[%s1967] sm:$0xff]
    %v1969 = vld [vmem:[%s1967 + $0x8] sm:$0xff]
    %v1970 = vld [vmem:[%s1967 + $0x10] sm:$0xff]
    %v1971 = vld [vmem:[#allocation10] sm:$0xff]
    %v1972 = vld [vmem:[#allocation10 + $0x8] sm:$0xff]
    %v1973 = vld [vmem:[#allocation10 + $0x10] sm:$0xff]
    %v1974 = vld [vmem:[#allocation10 + $0x18] sm:$0xff]
    %v1975 = vld [vmem:[#allocation10 + $0x20] sm:$0xff]
    %v1976 = vld [vmem:[#allocation10 + $0x28] sm:$0xff]
    %v1977 = vld [vmem:[#allocation10 + $0x30] sm:$0xff]
    %v1978 = vld [vmem:[#allocation10 + $0x38] sm:$0xff]
    %v1979 = vld [vmem:[#allocation10 + $0x40] sm:$0xff]
    %v1980 = vld [vmem:[#allocation10 + $0x48] sm:$0xff]
    %v1981 = vld [vmem:[#allocation10 + $0x50] sm:$0xff]
    %v1982 = vld [vmem:[#allocation10 + $0x58] sm:$0xff]
    %v1983 = vld [vmem:[#allocation10 + $0x60] sm:$0xff]
    %v1984 = vld [vmem:[#allocation10 + $0x68] sm:$0xff]
    %v1985 = vld [vmem:[#allocation10 + $0x70] sm:$0xff]
    %v1986 = vld [vmem:[#allocation10 + $0x78] sm:$0xff]
    %v1987 = vld [vmem:[#allocation10 + $0x80] sm:$0xff]
    %v1988 = vld [vmem:[#allocation10 + $0x88] sm:$0xff]
    %v1989 = vld [vmem:[#allocation10 + $0x90] sm:$0xff]
    %v1990 = vld [vmem:[#allocation10 + $0x98] sm:$0xff]
    %v1991 = vld [vmem:[#allocation10 + $0xa0] sm:$0xff]
    %v1992 = vld [vmem:[#allocation10 + $0xa8] sm:$0xff]
    %v1993 = vld [vmem:[#allocation10 + $0xb0] sm:$0xff]
    %v1994 = vld [vmem:[#allocation10 + $0xb8] sm:$0xff]
    %v1995 = vld [vmem:[#allocation10 + $0xc0] sm:$0xff]
    %v1996 = vld [vmem:[#allocation10 + $0xc8] sm:$0xff]
    %v1997 = vld [vmem:[#allocation10 + $0xd0] sm:$0xff]
    %v1998 = vld [vmem:[#allocation10 + $0xd8] sm:$0xff]
    %v1999 = vld [vmem:[#allocation10 + $0xe0] sm:$0xff]
    %v2000 = vld [vmem:[#allocation10 + $0xe8] sm:$0xff]
    %v2001 = vld [vmem:[#allocation10 + $0xf0] sm:$0xff]
    %v2002 = vld [vmem:[#allocation10 + $0xf8] sm:$0xff]
    %v2003 = vld [vmem:[#allocation10 + $0x100] sm:$0xff]
    %v2004 = vld [vmem:[#allocation10 + $0x108] sm:$0xff]
    %v2005 = vld [vmem:[#allocation10 + $0x110] sm:$0xff]
    %v2006 = vld [vmem:[#allocation10 + $0x118] sm:$0xff]
    %v2007 = vld [vmem:[#allocation10 + $0x120] sm:$0xff]
    %v2008 = vld [vmem:[#allocation10 + $0x128] sm:$0xff]
    %v2009 = vld [vmem:[#allocation10 + $0x130] sm:$0xff]
    %v2010 = vld [vmem:[#allocation10 + $0x138] sm:$0xff]
    %v2011 = vld [vmem:[#allocation10 + $0x140] sm:$0xff]
    %v2012 = vld [vmem:[#allocation10 + $0x148] sm:$0xff]
    %v2013 = vld [vmem:[#allocation10 + $0x150] sm:$0xff]
    %v2014 = vld [vmem:[#allocation10 + $0x158] sm:$0xff]
    %v2015 = vld [vmem:[#allocation10 + $0x160] sm:$0xff]
    %v2016 = vld [vmem:[#allocation10 + $0x168] sm:$0xff]
    %v2017 = vld [vmem:[#allocation10 + $0x170] sm:$0xff]
    %v2018 = vld [vmem:[#allocation10 + $0x178] sm:$0xff]
    %2019 = vmatprep.subr.mxu0 %v1972
    %2020 = vmatpush1.msra.mxu0 %v1971
    %2021 = vmatprep.subr.mxu0 %v1975
    %2022 = vmatpush1.msra.mxu0 %v1974
    %2023 = vmatprep.subr.mxu0 %v1978
    %2024 = vmatpush1.msra.mxu0 %v1977
    %2025 = vmatprep.subr.mxu0 %v1981
    %2026 = vmatpush1.msra.mxu0 %v1980
    %2027 = vmatprep.subr.mxu0 %v1984
    %2028 = vmatpush1.msra.mxu0 %v1983
    %2029 = vmatprep.subr.mxu0 %v1987
    %2030 = vmatpush1.msra.mxu0 %v1986
    %2031 = vmatprep.subr.mxu0 %v1990
    %2032 = vmatpush1.msra.mxu0 %v1989
    %2033 = vmatprep.subr.mxu0 %v1993
    %2034 = vmatpush1.msra.mxu0 %v1992
    %2035 = vmatprep.subr.mxu0 %v1996
    %2036 = vmatpush1.msra.mxu0 %v1995
    %2037 = vmatprep.subr.mxu0 %v1999
    %2038 = vmatpush1.msra.mxu0 %v1998
    %2039 = vmatprep.subr.mxu0 %v2002
    %2040 = vmatpush1.msra.mxu0 %v2001
    %2041 = vmatprep.subr.mxu0 %v2005
    %2042 = vmatpush1.msra.mxu0 %v2004
    %2043 = vmatprep.subr.mxu0 %v2008
    %2044 = vmatpush1.msra.mxu0 %v2007
    %2045 = vmatprep.subr.mxu0 %v2011
    %2046 = vmatpush1.msra.mxu0 %v2010
    %2047 = vmatprep.subr.mxu0 %v2014
    %2048 = vmatpush1.msra.mxu0 %v2013
    %2049 = vmatprep.subr.mxu0 %v2017
    %2050 = vmatpush1.msra.mxu0 %v2016
    %2051 = vmatprep.subr.mxu0 0.0
    %2052 = vmatpush1.msra.mxu0 0.0
    %2053 = vmatprep.subr.mxu0 0.0
    %2054 = vmatpush1.msra.mxu0 0.0
    %2055 = vmatprep.subr.mxu0 0.0
    %2056 = vmatpush1.msra.mxu0 0.0
    %2057 = vmatprep.subr.mxu0 0.0
    %2058 = vmatpush1.msra.mxu0 0.0
    %2059 = vmatprep.subr.mxu0 0.0
    %2060 = vmatpush1.msra.mxu0 0.0
    %2061 = vmatprep.subr.mxu0 0.0
    %2062 = vmatpush1.msra.mxu0 0.0
    %2063 = vmatprep.subr.mxu0 0.0
    %2064 = vmatpush1.msra.mxu0 0.0
    %2065 = vmatprep.subr.mxu0 0.0
    %2066 = vmatpush1.msra.mxu0 0.0
    %2067 = vmatprep.subr.mxu0 0.0
    %2068 = vmatpush1.msra.mxu0 0.0
    %2069 = vmatprep.subr.mxu0 0.0
    %2070 = vmatpush1.msra.mxu0 0.0
    %2071 = vmatprep.subr.mxu0 0.0
    %2072 = vmatpush1.msra.mxu0 0.0
    %2073 = vmatprep.subr.mxu0 0.0
    %2074 = vmatpush1.msra.mxu0 0.0
    %2075 = vmatprep.subr.mxu0 0.0
    %2076 = vmatpush1.msra.mxu0 0.0
    %2077 = vmatprep.subr.mxu0 0.0
    %2078 = vmatpush1.msra.mxu0 0.0
    %2079 = vmatprep.subr.mxu0 0.0
    %2080 = vmatpush1.msra.mxu0 0.0
    %2081 = vmatprep.subr.mxu0 0.0
    %2082 = vmatpush1.msra.mxu0 0.0
    %2083 = vmatprep.mubr.f32.mxu0 0.0
    %2084 = vmatmul.mubr.f32.gmra.mrb[0].mxu0 %v1964
    %v2085 = vpop.f32.mrb[0].mxu0
    %v2086 = vadd.f32 0.0, %v2085
    %v2087 = vpop.f32.mrb[0].mxu0
    %v2088 = vadd.f32 0.0, %v2087
    %2089 = vdwg.mxu0
    %2090 = vmatprep.subr.mxu0 0.0
    %2091 = vmatpush1.msra.mxu0 %v1973
    %2092 = vmatprep.subr.mxu0 0.0
    %2093 = vmatpush1.msra.mxu0 %v1976
    %2094 = vmatprep.subr.mxu0 0.0
    %2095 = vmatpush1.msra.mxu0 %v1979
    %2096 = vmatprep.subr.mxu0 0.0
    %2097 = vmatpush1.msra.mxu0 %v1982
    %2098 = vmatprep.subr.mxu0 0.0
    %2099 = vmatpush1.msra.mxu0 %v1985
    %2100 = vmatprep.subr.mxu0 0.0
    %2101 = vmatpush1.msra.mxu0 %v1988
    %2102 = vmatprep.subr.mxu0 0.0
    %2103 = vmatpush1.msra.mxu0 %v1991
    %2104 = vmatprep.subr.mxu0 0.0
    %2105 = vmatpush1.msra.mxu0 %v1994
    %2106 = vmatprep.subr.mxu0 0.0
    %2107 = vmatpush1.msra.mxu0 %v1997
    %2108 = vmatprep.subr.mxu0 0.0
    %2109 = vmatpush1.msra.mxu0 %v2000
    %2110 = vmatprep.subr.mxu0 0.0
    %2111 = vmatpush1.msra.mxu0 %v2003
    %2112 = vmatprep.subr.mxu0 0.0
    %2113 = vmatpush1.msra.mxu0 %v2006
    %2114 = vmatprep.subr.mxu0 0.0
    %2115 = vmatpush1.msra.mxu0 %v2009
    %2116 = vmatprep.subr.mxu0 0.0
    %2117 = vmatpush1.msra.mxu0 %v2012
    %2118 = vmatprep.subr.mxu0 0.0
    %2119 = vmatpush1.msra.mxu0 %v2015
    %2120 = vmatprep.subr.mxu0 0.0
    %2121 = vmatpush1.msra.mxu0 %v2018
    %2122 = vmatprep.subr.mxu0 0.0
    %2123 = vmatpush1.msra.mxu0 0.0
    %2124 = vmatprep.subr.mxu0 0.0
    %2125 = vmatpush1.msra.mxu0 0.0
    %2126 = vmatprep.subr.mxu0 0.0
    %2127 = vmatpush1.msra.mxu0 0.0
    %2128 = vmatprep.subr.mxu0 0.0
    %2129 = vmatpush1.msra.mxu0 0.0
    %2130 = vmatprep.subr.mxu0 0.0
    %2131 = vmatpush1.msra.mxu0 0.0
    %2132 = vmatprep.subr.mxu0 0.0
    %2133 = vmatpush1.msra.mxu0 0.0
    %2134 = vmatprep.subr.mxu0 0.0
    %2135 = vmatpush1.msra.mxu0 0.0
    %2136 = vmatprep.subr.mxu0 0.0
    %2137 = vmatpush1.msra.mxu0 0.0
    %2138 = vmatprep.subr.mxu0 0.0
    %2139 = vmatpush1.msra.mxu0 0.0
    %2140 = vmatprep.subr.mxu0 0.0
    %2141 = vmatpush1.msra.mxu0 0.0
    %2142 = vmatprep.subr.mxu0 0.0
    %2143 = vmatpush1.msra.mxu0 0.0
    %2144 = vmatprep.subr.mxu0 0.0
    %2145 = vmatpush1.msra.mxu0 0.0
    %2146 = vmatprep.subr.mxu0 0.0
    %2147 = vmatpush1.msra.mxu0 0.0
    %2148 = vmatprep.subr.mxu0 0.0
    %2149 = vmatpush1.msra.mxu0 0.0
    %2150 = vmatprep.subr.mxu0 0.0
    %2151 = vmatpush1.msra.mxu0 0.0
    %2152 = vmatprep.subr.mxu0 0.0
    %2153 = vmatpush1.msra.mxu0 0.0
    %2154 = vmatprep.mubr.f32.mxu0 0.0
    %2155 = vmatmul.mubr.f32.gmra.mrb[0].mxu0 %v1964
    %v2156 = vpop.f32.mrb[0].mxu0
    %v2157 = vadd.f32 0.0, %v2156
    %v2158 = vpop.f32.mrb[0].mxu0
    %2159 = vdwg.mxu0
    %v2160 = vadd.f32 %v1968, %v2086
    %v2161 = vxor.u32 %v2160, 2147483648
    %v2162 = vmul.f32 %v2161, 1.442695
    %v2163 = vpow.pop %v2162
    %v2164 = vadd.f32 %v2163, 1.0
    %v2165 = vrcp.pop %v2164
    %v2166 = vmul.f32 1.0, %v2165
    %v2167 = vadd.f32 %v1969, %v2088
    %v2168 = vxor.u32 %v2167, 2147483648
    %v2169 = vmul.f32 %v2168, 1.442695
    %v2170 = vpow.pop %v2169
    %v2171 = vadd.f32 %v2170, 1.0
    %v2172 = vrcp.pop %v2171
    %v2173 = vmul.f32 1.0, %v2172
    %v2174 = vadd.f32 %v2157, %v447
    %v2175 = vmul.f32 %v2166, %v2174
    %v2176 = vadd.f32 %v1970, %v2175
    %v2177 = vtanh.pop %v2176
    %v2178 = vsub.f32 1.0, %v2173
    %v2179 = vmul.f32 %v2178, %v2177
    %v2180 = vmul.f32 %v2173, %v1964
    %v2181 = vadd.f32 %v2179, %v2180
    %s2182 = scalar_lea.vmem [#allocation3], 56
    %2183 = vst [vmem:[%s2182] sm:$0xff] %v2181
    %2184 = vst [vmem:[#allocation2] sm:$0xff] %v2181
    %v2185 = vld [vmem:[#allocation3] sm:$0xff]
    %v2186 = vld [vmem:[#allocation3 + $0x8] sm:$0xff]
    %v2187 = vld [vmem:[#allocation3 + $0x10] sm:$0xff]
    %v2188 = vld [vmem:[#allocation3 + $0x18] sm:$0xff]
    %v2189 = vld [vmem:[#allocation3 + $0x20] sm:$0xff]
    %v2190 = vld [vmem:[#allocation3 + $0x28] sm:$0xff]
    %v2191 = vld [vmem:[#allocation3 + $0x30] sm:$0xff]
    %v2192 = vld [vmem:[#allocation3 + $0x38] sm:$0xff]
    %v2193 = vld [vmem:[#allocation11] sm:$0xff]
    %v2194 = vld [vmem:[#allocation11 + $0x8] sm:$0xff]
    %v2195 = vld [vmem:[#allocation11 + $0x10] sm:$0xff]
    %v2196 = vld [vmem:[#allocation11 + $0x18] sm:$0xff]
    %v2197 = vld [vmem:[#allocation11 + $0x20] sm:$0xff]
    %v2198 = vld [vmem:[#allocation11 + $0x28] sm:$0xff]
    %v2199 = vld [vmem:[#allocation11 + $0x30] sm:$0xff]
    %v2200 = vld [vmem:[#allocation11 + $0x38] sm:$0xff]
    %v2201 = vld [vmem:[#allocation11 + $0x40] sm:$0xff]
    %v2202 = vld [vmem:[#allocation11 + $0x48] sm:$0xff]
    %v2203 = vld [vmem:[#allocation11 + $0x50] sm:$0xff]
    %v2204 = vld [vmem:[#allocation11 + $0x58] sm:$0xff]
    %v2205 = vld [vmem:[#allocation11 + $0x60] sm:$0xff]
    %v2206 = vld [vmem:[#allocation11 + $0x68] sm:$0xff]
    %v2207 = vld [vmem:[#allocation11 + $0x70] sm:$0xff]
    %v2208 = vld [vmem:[#allocation11 + $0x78] sm:$0xff]
    %v2209 = vld [vmem:[#allocation11 + $0x80] sm:$0xff]
    %v2210 = vld [vmem:[#allocation11 + $0x88] sm:$0xff]
    %v2211 = vld [vmem:[#allocation11 + $0x90] sm:$0xff]
    %v2212 = vld [vmem:[#allocation11 + $0x98] sm:$0xff]
    %v2213 = vld [vmem:[#allocation11 + $0xa0] sm:$0xff]
    %v2214 = vld [vmem:[#allocation11 + $0xa8] sm:$0xff]
    %v2215 = vld [vmem:[#allocation11 + $0xb0] sm:$0xff]
    %v2216 = vld [vmem:[#allocation11 + $0xb8] sm:$0xff]
    %v2217 = vld [vmem:[#allocation11 + $0xc0] sm:$0xff]
    %v2218 = vld [vmem:[#allocation11 + $0xc8] sm:$0xff]
    %v2219 = vld [vmem:[#allocation11 + $0xd0] sm:$0xff]
    %v2220 = vld [vmem:[#allocation11 + $0xd8] sm:$0xff]
    %v2221 = vld [vmem:[#allocation11 + $0xe0] sm:$0xff]
    %v2222 = vld [vmem:[#allocation11 + $0xe8] sm:$0xff]
    %v2223 = vld [vmem:[#allocation11 + $0xf0] sm:$0xff]
    %v2224 = vld [vmem:[#allocation11 + $0xf8] sm:$0xff]
    %v2225 = vld [vmem:[#allocation11 + $0x100] sm:$0xff]
    %v2226 = vld [vmem:[#allocation11 + $0x108] sm:$0xff]
    %v2227 = vld [vmem:[#allocation11 + $0x110] sm:$0xff]
    %v2228 = vld [vmem:[#allocation11 + $0x118] sm:$0xff]
    %v2229 = vld [vmem:[#allocation11 + $0x120] sm:$0xff]
    %v2230 = vld [vmem:[#allocation11 + $0x128] sm:$0xff]
    %v2231 = vld [vmem:[#allocation11 + $0x130] sm:$0xff]
    %v2232 = vld [vmem:[#allocation11 + $0x138] sm:$0xff]
    %v2233 = vld [vmem:[#allocation11 + $0x140] sm:$0xff]
    %v2234 = vld [vmem:[#allocation11 + $0x148] sm:$0xff]
    %v2235 = vld [vmem:[#allocation11 + $0x150] sm:$0xff]
    %v2236 = vld [vmem:[#allocation11 + $0x158] sm:$0xff]
    %v2237 = vld [vmem:[#allocation11 + $0x160] sm:$0xff]
    %v2238 = vld [vmem:[#allocation11 + $0x168] sm:$0xff]
    %v2239 = vld [vmem:[#allocation11 + $0x170] sm:$0xff]
    %v2240 = vld [vmem:[#allocation11 + $0x178] sm:$0xff]
    %v2241 = vld [vmem:[%s6] sm:$0x7]
    %v2243 = vlaneseq
    %v2244 = vshrl.u32 %v2243, 7
    %v2245 = vsub.s32 0, %v2244
    %v2246 = vrot.slane %v2241, %v2245
    %v2247 = vlaneseq
    %v2248 = vshrl.u32 %v2247, 7
    %v2249 = vsub.s32 1, %v2248
    %v2250 = vrot.slane %v2241, %v2249
    %v2251 = vlaneseq
    %v2252 = vshrl.u32 %v2251, 7
    %v2253 = vsub.s32 2, %v2252
    %v2254 = vrot.slane %v2241, %v2253
    %2258 = vmatprep.subr.mxu0 %v2194
    %2259 = vmatpush1.msra.mxu0 %v2193
    %2260 = vmatprep.subr.mxu0 %v2197
    %2261 = vmatpush1.msra.mxu0 %v2196
    %2262 = vmatprep.subr.mxu0 %v2200
    %2263 = vmatpush1.msra.mxu0 %v2199
    %2264 = vmatprep.subr.mxu0 %v2203
    %2265 = vmatpush1.msra.mxu0 %v2202
    %2266 = vmatprep.subr.mxu0 %v2206
    %2267 = vmatpush1.msra.mxu0 %v2205
    %2268 = vmatprep.subr.mxu0 %v2209
    %2269 = vmatpush1.msra.mxu0 %v2208
    %2270 = vmatprep.subr.mxu0 %v2212
    %2271 = vmatpush1.msra.mxu0 %v2211
    %2272 = vmatprep.subr.mxu0 %v2215
    %2273 = vmatpush1.msra.mxu0 %v2214
    %2274 = vmatprep.subr.mxu0 %v2218
    %2275 = vmatpush1.msra.mxu0 %v2217
    %2276 = vmatprep.subr.mxu0 %v2221
    %2277 = vmatpush1.msra.mxu0 %v2220
    %2278 = vmatprep.subr.mxu0 %v2224
    %2279 = vmatpush1.msra.mxu0 %v2223
    %2280 = vmatprep.subr.mxu0 %v2227
    %2281 = vmatpush1.msra.mxu0 %v2226
    %2282 = vmatprep.subr.mxu0 %v2230
    %2283 = vmatpush1.msra.mxu0 %v2229
    %2284 = vmatprep.subr.mxu0 %v2233
    %2285 = vmatpush1.msra.mxu0 %v2232
    %2286 = vmatprep.subr.mxu0 %v2236
    %2287 = vmatpush1.msra.mxu0 %v2235
    %2288 = vmatprep.subr.mxu0 %v2239
    %2289 = vmatpush1.msra.mxu0 %v2238
    %2290 = vmatprep.subr.mxu0 0.0
    %2291 = vmatpush1.msra.mxu0 0.0
    %2292 = vmatprep.subr.mxu0 0.0
    %2293 = vmatpush1.msra.mxu0 0.0
    %2294 = vmatprep.subr.mxu0 0.0
    %2295 = vmatpush1.msra.mxu0 0.0
    %2296 = vmatprep.subr.mxu0 0.0
    %2297 = vmatpush1.msra.mxu0 0.0
    %2298 = vmatprep.subr.mxu0 0.0
    %2299 = vmatpush1.msra.mxu0 0.0
    %2300 = vmatprep.subr.mxu0 0.0
    %2301 = vmatpush1.msra.mxu0 0.0
    %2302 = vmatprep.subr.mxu0 0.0
    %2303 = vmatpush1.msra.mxu0 0.0
    %2304 = vmatprep.subr.mxu0 0.0
    %2305 = vmatpush1.msra.mxu0 0.0
    %2306 = vmatprep.subr.mxu0 0.0
    %2307 = vmatpush1.msra.mxu0 0.0
    %2308 = vmatprep.subr.mxu0 0.0
    %2309 = vmatpush1.msra.mxu0 0.0
    %2310 = vmatprep.subr.mxu0 0.0
    %2311 = vmatpush1.msra.mxu0 0.0
    %2312 = vmatprep.subr.mxu0 0.0
    %2313 = vmatpush1.msra.mxu0 0.0
    %2314 = vmatprep.subr.mxu0 0.0
    %2315 = vmatpush1.msra.mxu0 0.0
    %2316 = vmatprep.subr.mxu0 0.0
    %2317 = vmatpush1.msra.mxu0 0.0
    %2318 = vmatprep.subr.mxu0 0.0
    %2319 = vmatpush1.msra.mxu0 0.0
    %2320 = vmatprep.subr.mxu0 0.0
    %2321 = vmatpush1.msra.mxu0 0.0
    %2322 = vmatprep.mubr.f32.mxu0 0.0
    %2323 = vmatmul.mubr.f32.gmra.mrb[0].mxu0 %v2185
    %v2324 = vpop.f32.mrb[0].mxu0
    %v2325 = vadd.f32 %v2246, %v2324
    %v2326 = vpop.f32.mrb[0].mxu0
    %v2327 = vadd.f32 %v2250, %v2326
    %2328 = vmatprep.mubr.f32.mxu0 0.0
    %2329 = vmatmul.mubr.f32.gmra.mrb[0].mxu0 %v2186
    %v2330 = vpop.f32.mrb[0].mxu0
    %v2331 = vadd.f32 %v2246, %v2330
    %v2332 = vpop.f32.mrb[0].mxu0
    %v2333 = vadd.f32 %v2250, %v2332
    %2334 = vmatprep.mubr.f32.mxu0 0.0
    %2335 = vmatmul.mubr.f32.gmra.mrb[0].mxu0 %v2187
    %v2336 = vpop.f32.mrb[0].mxu0
    %v2337 = vadd.f32 %v2246, %v2336
    %v2338 = vpop.f32.mrb[0].mxu0
    %v2339 = vadd.f32 %v2250, %v2338
    %2340 = vmatprep.mubr.f32.mxu0 0.0
    %2341 = vmatmul.mubr.f32.gmra.mrb[0].mxu0 %v2188
    %v2342 = vpop.f32.mrb[0].mxu0
    %v2343 = vadd.f32 %v2246, %v2342
    %v2344 = vpop.f32.mrb[0].mxu0
    %v2345 = vadd.f32 %v2250, %v2344
    %2346 = vmatprep.mubr.f32.mxu0 0.0
    %2347 = vmatmul.mubr.f32.gmra.mrb[0].mxu0 %v2189
    %v2348 = vpop.f32.mrb[0].mxu0
    %v2349 = vadd.f32 %v2246, %v2348
    %v2350 = vpop.f32.mrb[0].mxu0
    %v2351 = vadd.f32 %v2250, %v2350
    %2352 = vmatprep.mubr.f32.mxu0 0.0
    %2353 = vmatmul.mubr.f32.gmra.mrb[0].mxu0 %v2190
    %v2354 = vpop.f32.mrb[0].mxu0
    %v2355 = vadd.f32 %v2246, %v2354
    %v2356 = vpop.f32.mrb[0].mxu0
    %v2357 = vadd.f32 %v2250, %v2356
    %2358 = vmatprep.mubr.f32.mxu0 0.0
    %2359 = vmatmul.mubr.f32.gmra.mrb[0].mxu0 %v2191
    %v2360 = vpop.f32.mrb[0].mxu0
    %v2361 = vadd.f32 %v2246, %v2360
    %v2362 = vpop.f32.mrb[0].mxu0
    %v2363 = vadd.f32 %v2250, %v2362
    %2364 = vmatprep.mubr.f32.mxu0 0.0
    %2365 = vmatmul.mubr.f32.gmra.mrb[0].mxu0 %v2192
    %v2366 = vpop.f32.mrb[0].mxu0
    %v2367 = vadd.f32 %v2246, %v2366
    %v2368 = vpop.f32.mrb[0].mxu0
    %v2369 = vadd.f32 %v2250, %v2368
    %2370 = vdwg.mxu0
    %2371 = vmatprep.subr.mxu0 0.0
    %2372 = vmatpush1.msra.mxu0 %v2195
    %2373 = vmatprep.subr.mxu0 0.0
    %2374 = vmatpush1.msra.mxu0 %v2198
    %2375 = vmatprep.subr.mxu0 0.0
    %2376 = vmatpush1.msra.mxu0 %v2201
    %2377 = vmatprep.subr.mxu0 0.0
    %2378 = vmatpush1.msra.mxu0 %v2204
    %2379 = vmatprep.subr.mxu0 0.0
    %2380 = vmatpush1.msra.mxu0 %v2207
    %2381 = vmatprep.subr.mxu0 0.0
    %2382 = vmatpush1.msra.mxu0 %v2210
    %2383 = vmatprep.subr.mxu0 0.0
    %2384 = vmatpush1.msra.mxu0 %v2213
    %2385 = vmatprep.subr.mxu0 0.0
    %2386 = vmatpush1.msra.mxu0 %v2216
    %2387 = vmatprep.subr.mxu0 0.0
    %2388 = vmatpush1.msra.mxu0 %v2219
    %2389 = vmatprep.subr.mxu0 0.0
    %2390 = vmatpush1.msra.mxu0 %v2222
    %2391 = vmatprep.subr.mxu0 0.0
    %2392 = vmatpush1.msra.mxu0 %v2225
    %2393 = vmatprep.subr.mxu0 0.0
    %2394 = vmatpush1.msra.mxu0 %v2228
    %2395 = vmatprep.subr.mxu0 0.0
    %2396 = vmatpush1.msra.mxu0 %v2231
    %2397 = vmatprep.subr.mxu0 0.0
    %2398 = vmatpush1.msra.mxu0 %v2234
    %2399 = vmatprep.subr.mxu0 0.0
    %2400 = vmatpush1.msra.mxu0 %v2237
    %2401 = vmatprep.subr.mxu0 0.0
    %2402 = vmatpush1.msra.mxu0 %v2240
    %2403 = vmatprep.subr.mxu0 0.0
    %2404 = vmatpush1.msra.mxu0 0.0
    %2405 = vmatprep.subr.mxu0 0.0
    %2406 = vmatpush1.msra.mxu0 0.0
    %2407 = vmatprep.subr.mxu0 0.0
    %2408 = vmatpush1.msra.mxu0 0.0
    %2409 = vmatprep.subr.mxu0 0.0
    %2410 = vmatpush1.msra.mxu0 0.0
    %2411 = vmatprep.subr.mxu0 0.0
    %2412 = vmatpush1.msra.mxu0 0.0
    %2413 = vmatprep.subr.mxu0 0.0
    %2414 = vmatpush1.msra.mxu0 0.0
    %2415 = vmatprep.subr.mxu0 0.0
    %2416 = vmatpush1.msra.mxu0 0.0
    %2417 = vmatprep.subr.mxu0 0.0
    %2418 = vmatpush1.msra.mxu0 0.0
    %2419 = vmatprep.subr.mxu0 0.0
    %2420 = vmatpush1.msra.mxu0 0.0
    %2421 = vmatprep.subr.mxu0 0.0
    %2422 = vmatpush1.msra.mxu0 0.0
    %2423 = vmatprep.subr.mxu0 0.0
    %2424 = vmatpush1.msra.mxu0 0.0
    %2425 = vmatprep.subr.mxu0 0.0
    %2426 = vmatpush1.msra.mxu0 0.0
    %2427 = vmatprep.subr.mxu0 0.0
    %2428 = vmatpush1.msra.mxu0 0.0
    %2429 = vmatprep.subr.mxu0 0.0
    %2430 = vmatpush1.msra.mxu0 0.0
    %2431 = vmatprep.subr.mxu0 0.0
    %2432 = vmatpush1.msra.mxu0 0.0
    %2433 = vmatprep.subr.mxu0 0.0
    %2434 = vmatpush1.msra.mxu0 0.0
    %2435 = vmatprep.mubr.f32.mxu0 0.0
    %2436 = vmatmul.mubr.f32.gmra.mrb[0].mxu0 %v2185
    %v2437 = vpop.f32.mrb[0].mxu0
    %v2438 = vadd.f32 %v2254, %v2437
    %v2439 = vpop.f32.mrb[0].mxu0
    %2440 = vmatprep.mubr.f32.mxu0 0.0
    %2441 = vmatmul.mubr.f32.gmra.mrb[0].mxu0 %v2186
    %v2442 = vpop.f32.mrb[0].mxu0
    %v2443 = vadd.f32 %v2254, %v2442
    %v2444 = vpop.f32.mrb[0].mxu0
    %2445 = vmatprep.mubr.f32.mxu0 0.0
    %2446 = vmatmul.mubr.f32.gmra.mrb[0].mxu0 %v2187
    %v2447 = vpop.f32.mrb[0].mxu0
    %v2448 = vadd.f32 %v2254, %v2447
    %v2449 = vpop.f32.mrb[0].mxu0
    %2450 = vmatprep.mubr.f32.mxu0 0.0
    %2451 = vmatmul.mubr.f32.gmra.mrb[0].mxu0 %v2188
    %v2452 = vpop.f32.mrb[0].mxu0
    %v2453 = vadd.f32 %v2254, %v2452
    %v2454 = vpop.f32.mrb[0].mxu0
    %2455 = vmatprep.mubr.f32.mxu0 0.0
    %2456 = vmatmul.mubr.f32.gmra.mrb[0].mxu0 %v2189
    %v2457 = vpop.f32.mrb[0].mxu0
    %v2458 = vadd.f32 %v2254, %v2457
    %v2459 = vpop.f32.mrb[0].mxu0
    %2460 = vmatprep.mubr.f32.mxu0 0.0
    %2461 = vmatmul.mubr.f32.gmra.mrb[0].mxu0 %v2190
    %v2462 = vpop.f32.mrb[0].mxu0
    %v2463 = vadd.f32 %v2254, %v2462
    %v2464 = vpop.f32.mrb[0].mxu0
    %2465 = vmatprep.mubr.f32.mxu0 0.0
    %2466 = vmatmul.mubr.f32.gmra.mrb[0].mxu0 %v2191
    %v2467 = vpop.f32.mrb[0].mxu0
    %v2468 = vadd.f32 %v2254, %v2467
    %v2469 = vpop.f32.mrb[0].mxu0
    %2470 = vmatprep.mubr.f32.mxu0 0.0
    %2471 = vmatmul.mubr.f32.gmra.mrb[0].mxu0 %v2192
    %v2472 = vpop.f32.mrb[0].mxu0
    %v2473 = vadd.f32 %v2254, %v2472
    %v2474 = vpop.f32.mrb[0].mxu0
    %2475 = vdwg.mxu0
    %2476 = vst [vmem:[#allocation4] sm:$0xff] %v2325
    %2477 = vst [vmem:[#allocation4 + $0x8] sm:$0xff] %v2327
    %2478 = vst [vmem:[#allocation4 + $0x10] sm:$0xff] %v2438
    %2479 = vst [vmem:[#allocation4 + $0x18] sm:$0xff] %v2331
    %2480 = vst [vmem:[#allocation4 + $0x20] sm:$0xff] %v2333
    %2481 = vst [vmem:[#allocation4 + $0x28] sm:$0xff] %v2443
    %2482 = vst [vmem:[#allocation4 + $0x30] sm:$0xff] %v2337
    %2483 = vst [vmem:[#allocation4 + $0x38] sm:$0xff] %v2339
    %2484 = vst [vmem:[#allocation4 + $0x40] sm:$0xff] %v2448
    %2485 = vst [vmem:[#allocation4 + $0x48] sm:$0xff] %v2343
    %2486 = vst [vmem:[#allocation4 + $0x50] sm:$0xff] %v2345
    %2487 = vst [vmem:[#allocation4 + $0x58] sm:$0xff] %v2453
    %2488 = vst [vmem:[#allocation4 + $0x60] sm:$0xff] %v2349
    %2489 = vst [vmem:[#allocation4 + $0x68] sm:$0xff] %v2351
    %2490 = vst [vmem:[#allocation4 + $0x70] sm:$0xff] %v2458
    %2491 = vst [vmem:[#allocation4 + $0x78] sm:$0xff] %v2355
    %2492 = vst [vmem:[#allocation4 + $0x80] sm:$0xff] %v2357
    %2493 = vst [vmem:[#allocation4 + $0x88] sm:$0xff] %v2463
    %2494 = vst [vmem:[#allocation4 + $0x90] sm:$0xff] %v2361
    %2495 = vst [vmem:[#allocation4 + $0x98] sm:$0xff] %v2363
    %2496 = vst [vmem:[#allocation4 + $0xa0] sm:$0xff] %v2468
    %2497 = vst [vmem:[#allocation4 + $0xa8] sm:$0xff] %v2367
    %2498 = vst [vmem:[#allocation4 + $0xb0] sm:$0xff] %v2369
    %2499 = vst [vmem:[#allocation4 + $0xb8] sm:$0xff] %v2473
    %v2500 = vld [vmem:[%s8] sm:$0x1]
    %v2502 = vlaneseq
    %v2503 = vshrl.u32 %v2502, 7
    %v2504 = vsub.s32 0, %v2503
    %v2505 = vrot.slane %v2500, %v2504
    %s2507 = scalar_lea.vmem [#allocation2], 8
    %v2508 = vld [vmem:[%s2507] sm:$0xff]
    %v2509 = vld [vmem:[#allocation4] sm:$0xff]
    %v2510 = vld [vmem:[#allocation4 + $0x8] sm:$0xff]
    %v2511 = vld [vmem:[#allocation4 + $0x10] sm:$0xff]
    %v2512 = vld [vmem:[#allocation13] sm:$0xff]
    %v2513 = vld [vmem:[#allocation13 + $0x8] sm:$0xff]
    %v2514 = vld [vmem:[#allocation13 + $0x10] sm:$0xff]
    %v2515 = vld [vmem:[#allocation13 + $0x18] sm:$0xff]
    %v2516 = vld [vmem:[#allocation13 + $0x20] sm:$0xff]
    %v2517 = vld [vmem:[#allocation13 + $0x28] sm:$0xff]
    %v2518 = vld [vmem:[#allocation13 + $0x30] sm:$0xff]
    %v2519 = vld [vmem:[#allocation13 + $0x38] sm:$0xff]
    %v2520 = vld [vmem:[#allocation13 + $0x40] sm:$0xff]
    %v2521 = vld [vmem:[#allocation13 + $0x48] sm:$0xff]
    %v2522 = vld [vmem:[#allocation13 + $0x50] sm:$0xff]
    %v2523 = vld [vmem:[#allocation13 + $0x58] sm:$0xff]
    %v2524 = vld [vmem:[#allocation13 + $0x60] sm:$0xff]
    %v2525 = vld [vmem:[#allocation13 + $0x68] sm:$0xff]
    %v2526 = vld [vmem:[#allocation13 + $0x70] sm:$0xff]
    %v2527 = vld [vmem:[#allocation13 + $0x78] sm:$0xff]
    %v2528 = vld [vmem:[#allocation13 + $0x80] sm:$0xff]
    %v2529 = vld [vmem:[#allocation13 + $0x88] sm:$0xff]
    %v2530 = vld [vmem:[#allocation13 + $0x90] sm:$0xff]
    %v2531 = vld [vmem:[#allocation13 + $0x98] sm:$0xff]
    %v2532 = vld [vmem:[#allocation13 + $0xa0] sm:$0xff]
    %v2533 = vld [vmem:[#allocation13 + $0xa8] sm:$0xff]
    %v2534 = vld [vmem:[#allocation13 + $0xb0] sm:$0xff]
    %v2535 = vld [vmem:[#allocation13 + $0xb8] sm:$0xff]
    %v2536 = vld [vmem:[#allocation13 + $0xc0] sm:$0xff]
    %v2537 = vld [vmem:[#allocation13 + $0xc8] sm:$0xff]
    %v2538 = vld [vmem:[#allocation13 + $0xd0] sm:$0xff]
    %v2539 = vld [vmem:[#allocation13 + $0xd8] sm:$0xff]
    %v2540 = vld [vmem:[#allocation13 + $0xe0] sm:$0xff]
    %v2541 = vld [vmem:[#allocation13 + $0xe8] sm:$0xff]
    %v2542 = vld [vmem:[#allocation13 + $0xf0] sm:$0xff]
    %v2543 = vld [vmem:[#allocation13 + $0xf8] sm:$0xff]
    %v2544 = vld [vmem:[#allocation13 + $0x100] sm:$0xff]
    %v2545 = vld [vmem:[#allocation13 + $0x108] sm:$0xff]
    %v2546 = vld [vmem:[#allocation13 + $0x110] sm:$0xff]
    %v2547 = vld [vmem:[#allocation13 + $0x118] sm:$0xff]
    %v2548 = vld [vmem:[#allocation13 + $0x120] sm:$0xff]
    %v2549 = vld [vmem:[#allocation13 + $0x128] sm:$0xff]
    %v2550 = vld [vmem:[#allocation13 + $0x130] sm:$0xff]
    %v2551 = vld [vmem:[#allocation13 + $0x138] sm:$0xff]
    %v2552 = vld [vmem:[#allocation13 + $0x140] sm:$0xff]
    %v2553 = vld [vmem:[#allocation13 + $0x148] sm:$0xff]
    %v2554 = vld [vmem:[#allocation13 + $0x150] sm:$0xff]
    %v2555 = vld [vmem:[#allocation13 + $0x158] sm:$0xff]
    %v2556 = vld [vmem:[#allocation13 + $0x160] sm:$0xff]
    %v2557 = vld [vmem:[#allocation13 + $0x168] sm:$0xff]
    %v2558 = vld [vmem:[#allocation13 + $0x170] sm:$0xff]
    %v2559 = vld [vmem:[#allocation13 + $0x178] sm:$0xff]
    %2560 = vmatprep.subr.mxu0 %v2513
    %2561 = vmatpush1.msra.mxu0 %v2512
    %2562 = vmatprep.subr.mxu0 %v2516
    %2563 = vmatpush1.msra.mxu0 %v2515
    %2564 = vmatprep.subr.mxu0 %v2519
    %2565 = vmatpush1.msra.mxu0 %v2518
    %2566 = vmatprep.subr.mxu0 %v2522
    %2567 = vmatpush1.msra.mxu0 %v2521
    %2568 = vmatprep.subr.mxu0 %v2525
    %2569 = vmatpush1.msra.mxu0 %v2524
    %2570 = vmatprep.subr.mxu0 %v2528
    %2571 = vmatpush1.msra.mxu0 %v2527
    %2572 = vmatprep.subr.mxu0 %v2531
    %2573 = vmatpush1.msra.mxu0 %v2530
    %2574 = vmatprep.subr.mxu0 %v2534
    %2575 = vmatpush1.msra.mxu0 %v2533
    %2576 = vmatprep.subr.mxu0 %v2537
    %2577 = vmatpush1.msra.mxu0 %v2536
    %2578 = vmatprep.subr.mxu0 %v2540
    %2579 = vmatpush1.msra.mxu0 %v2539
    %2580 = vmatprep.subr.mxu0 %v2543
    %2581 = vmatpush1.msra.mxu0 %v2542
    %2582 = vmatprep.subr.mxu0 %v2546
    %2583 = vmatpush1.msra.mxu0 %v2545
    %2584 = vmatprep.subr.mxu0 %v2549
    %2585 = vmatpush1.msra.mxu0 %v2548
    %2586 = vmatprep.subr.mxu0 %v2552
    %2587 = vmatpush1.msra.mxu0 %v2551
    %2588 = vmatprep.subr.mxu0 %v2555
    %2589 = vmatpush1.msra.mxu0 %v2554
    %2590 = vmatprep.subr.mxu0 %v2558
    %2591 = vmatpush1.msra.mxu0 %v2557
    %2592 = vmatprep.subr.mxu0 0.0
    %2593 = vmatpush1.msra.mxu0 0.0
    %2594 = vmatprep.subr.mxu0 0.0
    %2595 = vmatpush1.msra.mxu0 0.0
    %2596 = vmatprep.subr.mxu0 0.0
    %2597 = vmatpush1.msra.mxu0 0.0
    %2598 = vmatprep.subr.mxu0 0.0
    %2599 = vmatpush1.msra.mxu0 0.0
    %2600 = vmatprep.subr.mxu0 0.0
    %2601 = vmatpush1.msra.mxu0 0.0
    %2602 = vmatprep.subr.mxu0 0.0
    %2603 = vmatpush1.msra.mxu0 0.0
    %2604 = vmatprep.subr.mxu0 0.0
    %2605 = vmatpush1.msra.mxu0 0.0
    %2606 = vmatprep.subr.mxu0 0.0
    %2607 = vmatpush1.msra.mxu0 0.0
    %2608 = vmatprep.subr.mxu0 0.0
    %2609 = vmatpush1.msra.mxu0 0.0
    %2610 = vmatprep.subr.mxu0 0.0
    %2611 = vmatpush1.msra.mxu0 0.0
    %2612 = vmatprep.subr.mxu0 0.0
    %2613 = vmatpush1.msra.mxu0 0.0
    %2614 = vmatprep.subr.mxu0 0.0
    %2615 = vmatpush1.msra.mxu0 0.0
    %2616 = vmatprep.subr.mxu0 0.0
    %2617 = vmatpush1.msra.mxu0 0.0
    %2618 = vmatprep.subr.mxu0 0.0
    %2619 = vmatpush1.msra.mxu0 0.0
    %2620 = vmatprep.subr.mxu0 0.0
    %2621 = vmatpush1.msra.mxu0 0.0
    %2622 = vmatprep.subr.mxu0 0.0
    %2623 = vmatpush1.msra.mxu0 0.0
    %2624 = vmatprep.mubr.f32.mxu0 0.0
    %2625 = vmatmul.mubr.f32.gmra.mrb[0].mxu0 %v2508
    %v2626 = vpop.f32.mrb[0].mxu0
    %v2627 = vadd.f32 0.0, %v2626
    %v2628 = vpop.f32.mrb[0].mxu0
    %v2629 = vadd.f32 0.0, %v2628
    %2630 = vdwg.mxu0
    %2631 = vmatprep.subr.mxu0 0.0
    %2632 = vmatpush1.msra.mxu0 %v2514
    %2633 = vmatprep.subr.mxu0 0.0
    %2634 = vmatpush1.msra.mxu0 %v2517
    %2635 = vmatprep.subr.mxu0 0.0
    %2636 = vmatpush1.msra.mxu0 %v2520
    %2637 = vmatprep.subr.mxu0 0.0
    %2638 = vmatpush1.msra.mxu0 %v2523
    %2639 = vmatprep.subr.mxu0 0.0
    %2640 = vmatpush1.msra.mxu0 %v2526
    %2641 = vmatprep.subr.mxu0 0.0
    %2642 = vmatpush1.msra.mxu0 %v2529
    %2643 = vmatprep.subr.mxu0 0.0
    %2644 = vmatpush1.msra.mxu0 %v2532
    %2645 = vmatprep.subr.mxu0 0.0
    %2646 = vmatpush1.msra.mxu0 %v2535
    %2647 = vmatprep.subr.mxu0 0.0
    %2648 = vmatpush1.msra.mxu0 %v2538
    %2649 = vmatprep.subr.mxu0 0.0
    %2650 = vmatpush1.msra.mxu0 %v2541
    %2651 = vmatprep.subr.mxu0 0.0
    %2652 = vmatpush1.msra.mxu0 %v2544
    %2653 = vmatprep.subr.mxu0 0.0
    %2654 = vmatpush1.msra.mxu0 %v2547
    %2655 = vmatprep.subr.mxu0 0.0
    %2656 = vmatpush1.msra.mxu0 %v2550
    %2657 = vmatprep.subr.mxu0 0.0
    %2658 = vmatpush1.msra.mxu0 %v2553
    %2659 = vmatprep.subr.mxu0 0.0
    %2660 = vmatpush1.msra.mxu0 %v2556
    %2661 = vmatprep.subr.mxu0 0.0
    %2662 = vmatpush1.msra.mxu0 %v2559
    %2663 = vmatprep.subr.mxu0 0.0
    %2664 = vmatpush1.msra.mxu0 0.0
    %2665 = vmatprep.subr.mxu0 0.0
    %2666 = vmatpush1.msra.mxu0 0.0
    %2667 = vmatprep.subr.mxu0 0.0
    %2668 = vmatpush1.msra.mxu0 0.0
    %2669 = vmatprep.subr.mxu0 0.0
    %2670 = vmatpush1.msra.mxu0 0.0
    %2671 = vmatprep.subr.mxu0 0.0
    %2672 = vmatpush1.msra.mxu0 0.0
    %2673 = vmatprep.subr.mxu0 0.0
    %2674 = vmatpush1.msra.mxu0 0.0
    %2675 = vmatprep.subr.mxu0 0.0
    %2676 = vmatpush1.msra.mxu0 0.0
    %2677 = vmatprep.subr.mxu0 0.0
    %2678 = vmatpush1.msra.mxu0 0.0
    %2679 = vmatprep.subr.mxu0 0.0
    %2680 = vmatpush1.msra.mxu0 0.0
    %2681 = vmatprep.subr.mxu0 0.0
    %2682 = vmatpush1.msra.mxu0 0.0
    %2683 = vmatprep.subr.mxu0 0.0
    %2684 = vmatpush1.msra.mxu0 0.0
    %2685 = vmatprep.subr.mxu0 0.0
    %2686 = vmatpush1.msra.mxu0 0.0
    %2687 = vmatprep.subr.mxu0 0.0
    %2688 = vmatpush1.msra.mxu0 0.0
    %2689 = vmatprep.subr.mxu0 0.0
    %2690 = vmatpush1.msra.mxu0 0.0
    %2691 = vmatprep.subr.mxu0 0.0
    %2692 = vmatpush1.msra.mxu0 0.0
    %2693 = vmatprep.subr.mxu0 0.0
    %2694 = vmatpush1.msra.mxu0 0.0
    %2695 = vmatprep.mubr.f32.mxu0 0.0
    %2696 = vmatmul.mubr.f32.gmra.mrb[0].mxu0 %v2508
    %v2697 = vpop.f32.mrb[0].mxu0
    %v2698 = vadd.f32 0.0, %v2697
    %v2699 = vpop.f32.mrb[0].mxu0
    %2700 = vdwg.mxu0
    %v2701 = vadd.f32 %v2509, %v2627
    %v2702 = vxor.u32 %v2701, 2147483648
    %v2703 = vmul.f32 %v2702, 1.442695
    %v2704 = vpow.pop %v2703
    %v2705 = vadd.f32 %v2704, 1.0
    %v2706 = vrcp.pop %v2705
    %v2707 = vmul.f32 1.0, %v2706
    %v2708 = vadd.f32 %v2510, %v2629
    %v2709 = vxor.u32 %v2708, 2147483648
    %v2710 = vmul.f32 %v2709, 1.442695
    %v2711 = vpow.pop %v2710
    %v2712 = vadd.f32 %v2711, 1.0
    %v2713 = vrcp.pop %v2712
    %v2714 = vmul.f32 1.0, %v2713
    %v2715 = vadd.f32 %v2698, %v2505
    %v2716 = vmul.f32 %v2707, %v2715
    %v2717 = vadd.f32 %v2511, %v2716
    %v2718 = vtanh.pop %v2717
    %v2719 = vsub.f32 1.0, %v2714
    %v2720 = vmul.f32 %v2719, %v2718
    %v2721 = vmul.f32 %v2714, %v2508
    %v2722 = vadd.f32 %v2720, %v2721
    %v2723 = vld [vmem:[%s665] sm:$0xff]
    %v2724 = vld [vmem:[%s665 + $0x8] sm:$0xff]
    %v2725 = vld [vmem:[%s665 + $0x10] sm:$0xff]
    %2726 = vmatprep.subr.mxu0 %v2513
    %2727 = vmatpush1.msra.mxu0 %v2512
    %2728 = vmatprep.subr.mxu0 %v2516
    %2729 = vmatpush1.msra.mxu0 %v2515
    %2730 = vmatprep.subr.mxu0 %v2519
    %2731 = vmatpush1.msra.mxu0 %v2518
    %2732 = vmatprep.subr.mxu0 %v2522
    %2733 = vmatpush1.msra.mxu0 %v2521
    %2734 = vmatprep.subr.mxu0 %v2525
    %2735 = vmatpush1.msra.mxu0 %v2524
    %2736 = vmatprep.subr.mxu0 %v2528
    %2737 = vmatpush1.msra.mxu0 %v2527
    %2738 = vmatprep.subr.mxu0 %v2531
    %2739 = vmatpush1.msra.mxu0 %v2530
    %2740 = vmatprep.subr.mxu0 %v2534
    %2741 = vmatpush1.msra.mxu0 %v2533
    %2742 = vmatprep.subr.mxu0 %v2537
    %2743 = vmatpush1.msra.mxu0 %v2536
    %2744 = vmatprep.subr.mxu0 %v2540
    %2745 = vmatpush1.msra.mxu0 %v2539
    %2746 = vmatprep.subr.mxu0 %v2543
    %2747 = vmatpush1.msra.mxu0 %v2542
    %2748 = vmatprep.subr.mxu0 %v2546
    %2749 = vmatpush1.msra.mxu0 %v2545
    %2750 = vmatprep.subr.mxu0 %v2549
    %2751 = vmatpush1.msra.mxu0 %v2548
    %2752 = vmatprep.subr.mxu0 %v2552
    %2753 = vmatpush1.msra.mxu0 %v2551
    %2754 = vmatprep.subr.mxu0 %v2555
    %2755 = vmatpush1.msra.mxu0 %v2554
    %2756 = vmatprep.subr.mxu0 %v2558
    %2757 = vmatpush1.msra.mxu0 %v2557
    %2758 = vmatprep.subr.mxu0 0.0
    %2759 = vmatpush1.msra.mxu0 0.0
    %2760 = vmatprep.subr.mxu0 0.0
    %2761 = vmatpush1.msra.mxu0 0.0
    %2762 = vmatprep.subr.mxu0 0.0
    %2763 = vmatpush1.msra.mxu0 0.0
    %2764 = vmatprep.subr.mxu0 0.0
    %2765 = vmatpush1.msra.mxu0 0.0
    %2766 = vmatprep.subr.mxu0 0.0
    %2767 = vmatpush1.msra.mxu0 0.0
    %2768 = vmatprep.subr.mxu0 0.0
    %2769 = vmatpush1.msra.mxu0 0.0
    %2770 = vmatprep.subr.mxu0 0.0
    %2771 = vmatpush1.msra.mxu0 0.0
    %2772 = vmatprep.subr.mxu0 0.0
    %2773 = vmatpush1.msra.mxu0 0.0
    %2774 = vmatprep.subr.mxu0 0.0
    %2775 = vmatpush1.msra.mxu0 0.0
    %2776 = vmatprep.subr.mxu0 0.0
    %2777 = vmatpush1.msra.mxu0 0.0
    %2778 = vmatprep.subr.mxu0 0.0
    %2779 = vmatpush1.msra.mxu0 0.0
    %2780 = vmatprep.subr.mxu0 0.0
    %2781 = vmatpush1.msra.mxu0 0.0
    %2782 = vmatprep.subr.mxu0 0.0
    %2783 = vmatpush1.msra.mxu0 0.0
    %2784 = vmatprep.subr.mxu0 0.0
    %2785 = vmatpush1.msra.mxu0 0.0
    %2786 = vmatprep.subr.mxu0 0.0
    %2787 = vmatpush1.msra.mxu0 0.0
    %2788 = vmatprep.subr.mxu0 0.0
    %2789 = vmatpush1.msra.mxu0 0.0
    %2790 = vmatprep.mubr.f32.mxu0 0.0
    %2791 = vmatmul.mubr.f32.gmra.mrb[0].mxu0 %v2722
    %v2792 = vpop.f32.mrb[0].mxu0
    %v2793 = vadd.f32 0.0, %v2792
    %v2794 = vpop.f32.mrb[0].mxu0
    %v2795 = vadd.f32 0.0, %v2794
    %2796 = vdwg.mxu0
    %2797 = vmatprep.subr.mxu0 0.0
    %2798 = vmatpush1.msra.mxu0 %v2514
    %2799 = vmatprep.subr.mxu0 0.0
    %2800 = vmatpush1.msra.mxu0 %v2517
    %2801 = vmatprep.subr.mxu0 0.0
    %2802 = vmatpush1.msra.mxu0 %v2520
    %2803 = vmatprep.subr.mxu0 0.0
    %2804 = vmatpush1.msra.mxu0 %v2523
    %2805 = vmatprep.subr.mxu0 0.0
    %2806 = vmatpush1.msra.mxu0 %v2526
    %2807 = vmatprep.subr.mxu0 0.0
    %2808 = vmatpush1.msra.mxu0 %v2529
    %2809 = vmatprep.subr.mxu0 0.0
    %2810 = vmatpush1.msra.mxu0 %v2532
    %2811 = vmatprep.subr.mxu0 0.0
    %2812 = vmatpush1.msra.mxu0 %v2535
    %2813 = vmatprep.subr.mxu0 0.0
    %2814 = vmatpush1.msra.mxu0 %v2538
    %2815 = vmatprep.subr.mxu0 0.0
    %2816 = vmatpush1.msra.mxu0 %v2541
    %2817 = vmatprep.subr.mxu0 0.0
    %2818 = vmatpush1.msra.mxu0 %v2544
    %2819 = vmatprep.subr.mxu0 0.0
    %2820 = vmatpush1.msra.mxu0 %v2547
    %2821 = vmatprep.subr.mxu0 0.0
    %2822 = vmatpush1.msra.mxu0 %v2550
    %2823 = vmatprep.subr.mxu0 0.0
    %2824 = vmatpush1.msra.mxu0 %v2553
    %2825 = vmatprep.subr.mxu0 0.0
    %2826 = vmatpush1.msra.mxu0 %v2556
    %2827 = vmatprep.subr.mxu0 0.0
    %2828 = vmatpush1.msra.mxu0 %v2559
    %2829 = vmatprep.subr.mxu0 0.0
    %2830 = vmatpush1.msra.mxu0 0.0
    %2831 = vmatprep.subr.mxu0 0.0
    %2832 = vmatpush1.msra.mxu0 0.0
    %2833 = vmatprep.subr.mxu0 0.0
    %2834 = vmatpush1.msra.mxu0 0.0
    %2835 = vmatprep.subr.mxu0 0.0
    %2836 = vmatpush1.msra.mxu0 0.0
    %2837 = vmatprep.subr.mxu0 0.0
    %2838 = vmatpush1.msra.mxu0 0.0
    %2839 = vmatprep.subr.mxu0 0.0
    %2840 = vmatpush1.msra.mxu0 0.0
    %2841 = vmatprep.subr.mxu0 0.0
    %2842 = vmatpush1.msra.mxu0 0.0
    %2843 = vmatprep.subr.mxu0 0.0
    %2844 = vmatpush1.msra.mxu0 0.0
    %2845 = vmatprep.subr.mxu0 0.0
    %2846 = vmatpush1.msra.mxu0 0.0
    %2847 = vmatprep.subr.mxu0 0.0
    %2848 = vmatpush1.msra.mxu0 0.0
    %2849 = vmatprep.subr.mxu0 0.0
    %2850 = vmatpush1.msra.mxu0 0.0
    %2851 = vmatprep.subr.mxu0 0.0
    %2852 = vmatpush1.msra.mxu0 0.0
    %2853 = vmatprep.subr.mxu0 0.0
    %2854 = vmatpush1.msra.mxu0 0.0
    %2855 = vmatprep.subr.mxu0 0.0
    %2856 = vmatpush1.msra.mxu0 0.0
    %2857 = vmatprep.subr.mxu0 0.0
    %2858 = vmatpush1.msra.mxu0 0.0
    %2859 = vmatprep.subr.mxu0 0.0
    %2860 = vmatpush1.msra.mxu0 0.0
    %2861 = vmatprep.mubr.f32.mxu0 0.0
    %2862 = vmatmul.mubr.f32.gmra.mrb[0].mxu0 %v2722
    %v2863 = vpop.f32.mrb[0].mxu0
    %v2864 = vadd.f32 0.0, %v2863
    %v2865 = vpop.f32.mrb[0].mxu0
    %2866 = vdwg.mxu0
    %v2867 = vadd.f32 %v2723, %v2793
    %v2868 = vxor.u32 %v2867, 2147483648
    %v2869 = vmul.f32 %v2868, 1.442695
    %v2870 = vpow.pop %v2869
    %v2871 = vadd.f32 %v2870, 1.0
    %v2872 = vrcp.pop %v2871
    %v2873 = vmul.f32 1.0, %v2872
    %v2874 = vadd.f32 %v2724, %v2795
    %v2875 = vxor.u32 %v2874, 2147483648
    %v2876 = vmul.f32 %v2875, 1.442695
    %v2877 = vpow.pop %v2876
    %v2878 = vadd.f32 %v2877, 1.0
    %v2879 = vrcp.pop %v2878
    %v2880 = vmul.f32 1.0, %v2879
    %v2881 = vadd.f32 %v2864, %v2505
    %v2882 = vmul.f32 %v2873, %v2881
    %v2883 = vadd.f32 %v2725, %v2882
    %v2884 = vtanh.pop %v2883
    %v2885 = vsub.f32 1.0, %v2880
    %v2886 = vmul.f32 %v2885, %v2884
    %v2887 = vmul.f32 %v2880, %v2722
    %v2888 = vadd.f32 %v2886, %v2887
    %v2889 = vld [vmem:[%s882] sm:$0xff]
    %v2890 = vld [vmem:[%s882 + $0x8] sm:$0xff]
    %v2891 = vld [vmem:[%s882 + $0x10] sm:$0xff]
    %2892 = vmatprep.subr.mxu0 %v2513
    %2893 = vmatpush1.msra.mxu0 %v2512
    %2894 = vmatprep.subr.mxu0 %v2516
    %2895 = vmatpush1.msra.mxu0 %v2515
    %2896 = vmatprep.subr.mxu0 %v2519
    %2897 = vmatpush1.msra.mxu0 %v2518
    %2898 = vmatprep.subr.mxu0 %v2522
    %2899 = vmatpush1.msra.mxu0 %v2521
    %2900 = vmatprep.subr.mxu0 %v2525
    %2901 = vmatpush1.msra.mxu0 %v2524
    %2902 = vmatprep.subr.mxu0 %v2528
    %2903 = vmatpush1.msra.mxu0 %v2527
    %2904 = vmatprep.subr.mxu0 %v2531
    %2905 = vmatpush1.msra.mxu0 %v2530
    %2906 = vmatprep.subr.mxu0 %v2534
    %2907 = vmatpush1.msra.mxu0 %v2533
    %2908 = vmatprep.subr.mxu0 %v2537
    %2909 = vmatpush1.msra.mxu0 %v2536
    %2910 = vmatprep.subr.mxu0 %v2540
    %2911 = vmatpush1.msra.mxu0 %v2539
    %2912 = vmatprep.subr.mxu0 %v2543
    %2913 = vmatpush1.msra.mxu0 %v2542
    %2914 = vmatprep.subr.mxu0 %v2546
    %2915 = vmatpush1.msra.mxu0 %v2545
    %2916 = vmatprep.subr.mxu0 %v2549
    %2917 = vmatpush1.msra.mxu0 %v2548
    %2918 = vmatprep.subr.mxu0 %v2552
    %2919 = vmatpush1.msra.mxu0 %v2551
    %2920 = vmatprep.subr.mxu0 %v2555
    %2921 = vmatpush1.msra.mxu0 %v2554
    %2922 = vmatprep.subr.mxu0 %v2558
    %2923 = vmatpush1.msra.mxu0 %v2557
    %2924 = vmatprep.subr.mxu0 0.0
    %2925 = vmatpush1.msra.mxu0 0.0
    %2926 = vmatprep.subr.mxu0 0.0
    %2927 = vmatpush1.msra.mxu0 0.0
    %2928 = vmatprep.subr.mxu0 0.0
    %2929 = vmatpush1.msra.mxu0 0.0
    %2930 = vmatprep.subr.mxu0 0.0
    %2931 = vmatpush1.msra.mxu0 0.0
    %2932 = vmatprep.subr.mxu0 0.0
    %2933 = vmatpush1.msra.mxu0 0.0
    %2934 = vmatprep.subr.mxu0 0.0
    %2935 = vmatpush1.msra.mxu0 0.0
    %2936 = vmatprep.subr.mxu0 0.0
    %2937 = vmatpush1.msra.mxu0 0.0
    %2938 = vmatprep.subr.mxu0 0.0
    %2939 = vmatpush1.msra.mxu0 0.0
    %2940 = vmatprep.subr.mxu0 0.0
    %2941 = vmatpush1.msra.mxu0 0.0
    %2942 = vmatprep.subr.mxu0 0.0
    %2943 = vmatpush1.msra.mxu0 0.0
    %2944 = vmatprep.subr.mxu0 0.0
    %2945 = vmatpush1.msra.mxu0 0.0
    %2946 = vmatprep.subr.mxu0 0.0
    %2947 = vmatpush1.msra.mxu0 0.0
    %2948 = vmatprep.subr.mxu0 0.0
    %2949 = vmatpush1.msra.mxu0 0.0
    %2950 = vmatprep.subr.mxu0 0.0
    %2951 = vmatpush1.msra.mxu0 0.0
    %2952 = vmatprep.subr.mxu0 0.0
    %2953 = vmatpush1.msra.mxu0 0.0
    %2954 = vmatprep.subr.mxu0 0.0
    %2955 = vmatpush1.msra.mxu0 0.0
    %2956 = vmatprep.mubr.f32.mxu0 0.0
    %2957 = vmatmul.mubr.f32.gmra.mrb[0].mxu0 %v2888
    %v2958 = vpop.f32.mrb[0].mxu0
    %v2959 = vadd.f32 0.0, %v2958
    %v2960 = vpop.f32.mrb[0].mxu0
    %v2961 = vadd.f32 0.0, %v2960
    %2962 = vdwg.mxu0
    %2963 = vmatprep.subr.mxu0 0.0
    %2964 = vmatpush1.msra.mxu0 %v2514
    %2965 = vmatprep.subr.mxu0 0.0
    %2966 = vmatpush1.msra.mxu0 %v2517
    %2967 = vmatprep.subr.mxu0 0.0
    %2968 = vmatpush1.msra.mxu0 %v2520
    %2969 = vmatprep.subr.mxu0 0.0
    %2970 = vmatpush1.msra.mxu0 %v2523
    %2971 = vmatprep.subr.mxu0 0.0
    %2972 = vmatpush1.msra.mxu0 %v2526
    %2973 = vmatprep.subr.mxu0 0.0
    %2974 = vmatpush1.msra.mxu0 %v2529
    %2975 = vmatprep.subr.mxu0 0.0
    %2976 = vmatpush1.msra.mxu0 %v2532
    %2977 = vmatprep.subr.mxu0 0.0
    %2978 = vmatpush1.msra.mxu0 %v2535
    %2979 = vmatprep.subr.mxu0 0.0
    %2980 = vmatpush1.msra.mxu0 %v2538
    %2981 = vmatprep.subr.mxu0 0.0
    %2982 = vmatpush1.msra.mxu0 %v2541
    %2983 = vmatprep.subr.mxu0 0.0
    %2984 = vmatpush1.msra.mxu0 %v2544
    %2985 = vmatprep.subr.mxu0 0.0
    %2986 = vmatpush1.msra.mxu0 %v2547
    %2987 = vmatprep.subr.mxu0 0.0
    %2988 = vmatpush1.msra.mxu0 %v2550
    %2989 = vmatprep.subr.mxu0 0.0
    %2990 = vmatpush1.msra.mxu0 %v2553
    %2991 = vmatprep.subr.mxu0 0.0
    %2992 = vmatpush1.msra.mxu0 %v2556
    %2993 = vmatprep.subr.mxu0 0.0
    %2994 = vmatpush1.msra.mxu0 %v2559
    %2995 = vmatprep.subr.mxu0 0.0
    %2996 = vmatpush1.msra.mxu0 0.0
    %2997 = vmatprep.subr.mxu0 0.0
    %2998 = vmatpush1.msra.mxu0 0.0
    %2999 = vmatprep.subr.mxu0 0.0
    %3000 = vmatpush1.msra.mxu0 0.0
    %3001 = vmatprep.subr.mxu0 0.0
    %3002 = vmatpush1.msra.mxu0 0.0
    %3003 = vmatprep.subr.mxu0 0.0
    %3004 = vmatpush1.msra.mxu0 0.0
    %3005 = vmatprep.subr.mxu0 0.0
    %3006 = vmatpush1.msra.mxu0 0.0
    %3007 = vmatprep.subr.mxu0 0.0
    %3008 = vmatpush1.msra.mxu0 0.0
    %3009 = vmatprep.subr.mxu0 0.0
    %3010 = vmatpush1.msra.mxu0 0.0
    %3011 = vmatprep.subr.mxu0 0.0
    %3012 = vmatpush1.msra.mxu0 0.0
    %3013 = vmatprep.subr.mxu0 0.0
    %3014 = vmatpush1.msra.mxu0 0.0
    %3015 = vmatprep.subr.mxu0 0.0
    %3016 = vmatpush1.msra.mxu0 0.0
    %3017 = vmatprep.subr.mxu0 0.0
    %3018 = vmatpush1.msra.mxu0 0.0
    %3019 = vmatprep.subr.mxu0 0.0
    %3020 = vmatpush1.msra.mxu0 0.0
    %3021 = vmatprep.subr.mxu0 0.0
    %3022 = vmatpush1.msra.mxu0 0.0
    %3023 = vmatprep.subr.mxu0 0.0
    %3024 = vmatpush1.msra.mxu0 0.0
    %3025 = vmatprep.subr.mxu0 0.0
    %3026 = vmatpush1.msra.mxu0 0.0
    %3027 = vmatprep.mubr.f32.mxu0 0.0
    %3028 = vmatmul.mubr.f32.gmra.mrb[0].mxu0 %v2888
    %v3029 = vpop.f32.mrb[0].mxu0
    %v3030 = vadd.f32 0.0, %v3029
    %v3031 = vpop.f32.mrb[0].mxu0
    %3032 = vdwg.mxu0
    %v3033 = vadd.f32 %v2889, %v2959
    %v3034 = vxor.u32 %v3033, 2147483648
    %v3035 = vmul.f32 %v3034, 1.442695
    %v3036 = vpow.pop %v3035
    %v3037 = vadd.f32 %v3036, 1.0
    %v3038 = vrcp.pop %v3037
    %v3039 = vmul.f32 1.0, %v3038
    %v3040 = vadd.f32 %v2890, %v2961
    %v3041 = vxor.u32 %v3040, 2147483648
    %v3042 = vmul.f32 %v3041, 1.442695
    %v3043 = vpow.pop %v3042
    %v3044 = vadd.f32 %v3043, 1.0
    %v3045 = vrcp.pop %v3044
    %v3046 = vmul.f32 1.0, %v3045
    %v3047 = vadd.f32 %v3030, %v2505
    %v3048 = vmul.f32 %v3039, %v3047
    %v3049 = vadd.f32 %v2891, %v3048
    %v3050 = vtanh.pop %v3049
    %v3051 = vsub.f32 1.0, %v3046
    %v3052 = vmul.f32 %v3051, %v3050
    %v3053 = vmul.f32 %v3046, %v2888
    %v3054 = vadd.f32 %v3052, %v3053
    %v3055 = vld [vmem:[%s1099] sm:$0xff]
    %v3056 = vld [vmem:[%s1099 + $0x8] sm:$0xff]
    %v3057 = vld [vmem:[%s1099 + $0x10] sm:$0xff]
    %3058 = vmatprep.subr.mxu0 %v2513
    %3059 = vmatpush1.msra.mxu0 %v2512
    %3060 = vmatprep.subr.mxu0 %v2516
    %3061 = vmatpush1.msra.mxu0 %v2515
    %3062 = vmatprep.subr.mxu0 %v2519
    %3063 = vmatpush1.msra.mxu0 %v2518
    %3064 = vmatprep.subr.mxu0 %v2522
    %3065 = vmatpush1.msra.mxu0 %v2521
    %3066 = vmatprep.subr.mxu0 %v2525
    %3067 = vmatpush1.msra.mxu0 %v2524
    %3068 = vmatprep.subr.mxu0 %v2528
    %3069 = vmatpush1.msra.mxu0 %v2527
    %3070 = vmatprep.subr.mxu0 %v2531
    %3071 = vmatpush1.msra.mxu0 %v2530
    %3072 = vmatprep.subr.mxu0 %v2534
    %3073 = vmatpush1.msra.mxu0 %v2533
    %3074 = vmatprep.subr.mxu0 %v2537
    %3075 = vmatpush1.msra.mxu0 %v2536
    %3076 = vmatprep.subr.mxu0 %v2540
    %3077 = vmatpush1.msra.mxu0 %v2539
    %3078 = vmatprep.subr.mxu0 %v2543
    %3079 = vmatpush1.msra.mxu0 %v2542
    %3080 = vmatprep.subr.mxu0 %v2546
    %3081 = vmatpush1.msra.mxu0 %v2545
    %3082 = vmatprep.subr.mxu0 %v2549
    %3083 = vmatpush1.msra.mxu0 %v2548
    %3084 = vmatprep.subr.mxu0 %v2552
    %3085 = vmatpush1.msra.mxu0 %v2551
    %3086 = vmatprep.subr.mxu0 %v2555
    %3087 = vmatpush1.msra.mxu0 %v2554
    %3088 = vmatprep.subr.mxu0 %v2558
    %3089 = vmatpush1.msra.mxu0 %v2557
    %3090 = vmatprep.subr.mxu0 0.0
    %3091 = vmatpush1.msra.mxu0 0.0
    %3092 = vmatprep.subr.mxu0 0.0
    %3093 = vmatpush1.msra.mxu0 0.0
    %3094 = vmatprep.subr.mxu0 0.0
    %3095 = vmatpush1.msra.mxu0 0.0
    %3096 = vmatprep.subr.mxu0 0.0
    %3097 = vmatpush1.msra.mxu0 0.0
    %3098 = vmatprep.subr.mxu0 0.0
    %3099 = vmatpush1.msra.mxu0 0.0
    %3100 = vmatprep.subr.mxu0 0.0
    %3101 = vmatpush1.msra.mxu0 0.0
    %3102 = vmatprep.subr.mxu0 0.0
    %3103 = vmatpush1.msra.mxu0 0.0
    %3104 = vmatprep.subr.mxu0 0.0
    %3105 = vmatpush1.msra.mxu0 0.0
    %3106 = vmatprep.subr.mxu0 0.0
    %3107 = vmatpush1.msra.mxu0 0.0
    %3108 = vmatprep.subr.mxu0 0.0
    %3109 = vmatpush1.msra.mxu0 0.0
    %3110 = vmatprep.subr.mxu0 0.0
    %3111 = vmatpush1.msra.mxu0 0.0
    %3112 = vmatprep.subr.mxu0 0.0
    %3113 = vmatpush1.msra.mxu0 0.0
    %3114 = vmatprep.subr.mxu0 0.0
    %3115 = vmatpush1.msra.mxu0 0.0
    %3116 = vmatprep.subr.mxu0 0.0
    %3117 = vmatpush1.msra.mxu0 0.0
    %3118 = vmatprep.subr.mxu0 0.0
    %3119 = vmatpush1.msra.mxu0 0.0
    %3120 = vmatprep.subr.mxu0 0.0
    %3121 = vmatpush1.msra.mxu0 0.0
    %3122 = vmatprep.mubr.f32.mxu0 0.0
    %3123 = vmatmul.mubr.f32.gmra.mrb[0].mxu0 %v3054
    %v3124 = vpop.f32.mrb[0].mxu0
    %v3125 = vadd.f32 0.0, %v3124
    %v3126 = vpop.f32.mrb[0].mxu0
    %v3127 = vadd.f32 0.0, %v3126
    %3128 = vdwg.mxu0
    %3129 = vmatprep.subr.mxu0 0.0
    %3130 = vmatpush1.msra.mxu0 %v2514
    %3131 = vmatprep.subr.mxu0 0.0
    %3132 = vmatpush1.msra.mxu0 %v2517
    %3133 = vmatprep.subr.mxu0 0.0
    %3134 = vmatpush1.msra.mxu0 %v2520
    %3135 = vmatprep.subr.mxu0 0.0
    %3136 = vmatpush1.msra.mxu0 %v2523
    %3137 = vmatprep.subr.mxu0 0.0
    %3138 = vmatpush1.msra.mxu0 %v2526
    %3139 = vmatprep.subr.mxu0 0.0
    %3140 = vmatpush1.msra.mxu0 %v2529
    %3141 = vmatprep.subr.mxu0 0.0
    %3142 = vmatpush1.msra.mxu0 %v2532
    %3143 = vmatprep.subr.mxu0 0.0
    %3144 = vmatpush1.msra.mxu0 %v2535
    %3145 = vmatprep.subr.mxu0 0.0
    %3146 = vmatpush1.msra.mxu0 %v2538
    %3147 = vmatprep.subr.mxu0 0.0
    %3148 = vmatpush1.msra.mxu0 %v2541
    %3149 = vmatprep.subr.mxu0 0.0
    %3150 = vmatpush1.msra.mxu0 %v2544
    %3151 = vmatprep.subr.mxu0 0.0
    %3152 = vmatpush1.msra.mxu0 %v2547
    %3153 = vmatprep.subr.mxu0 0.0
    %3154 = vmatpush1.msra.mxu0 %v2550
    %3155 = vmatprep.subr.mxu0 0.0
    %3156 = vmatpush1.msra.mxu0 %v2553
    %3157 = vmatprep.subr.mxu0 0.0
    %3158 = vmatpush1.msra.mxu0 %v2556
    %3159 = vmatprep.subr.mxu0 0.0
    %3160 = vmatpush1.msra.mxu0 %v2559
    %3161 = vmatprep.subr.mxu0 0.0
    %3162 = vmatpush1.msra.mxu0 0.0
    %3163 = vmatprep.subr.mxu0 0.0
    %3164 = vmatpush1.msra.mxu0 0.0
    %3165 = vmatprep.subr.mxu0 0.0
    %3166 = vmatpush1.msra.mxu0 0.0
    %3167 = vmatprep.subr.mxu0 0.0
    %3168 = vmatpush1.msra.mxu0 0.0
    %3169 = vmatprep.subr.mxu0 0.0
    %3170 = vmatpush1.msra.mxu0 0.0
    %3171 = vmatprep.subr.mxu0 0.0
    %3172 = vmatpush1.msra.mxu0 0.0
    %3173 = vmatprep.subr.mxu0 0.0
    %3174 = vmatpush1.msra.mxu0 0.0
    %3175 = vmatprep.subr.mxu0 0.0
    %3176 = vmatpush1.msra.mxu0 0.0
    %3177 = vmatprep.subr.mxu0 0.0
    %3178 = vmatpush1.msra.mxu0 0.0
    %3179 = vmatprep.subr.mxu0 0.0
    %3180 = vmatpush1.msra.mxu0 0.0
    %3181 = vmatprep.subr.mxu0 0.0
    %3182 = vmatpush1.msra.mxu0 0.0
    %3183 = vmatprep.subr.mxu0 0.0
    %3184 = vmatpush1.msra.mxu0 0.0
    %3185 = vmatprep.subr.mxu0 0.0
    %3186 = vmatpush1.msra.mxu0 0.0
    %3187 = vmatprep.subr.mxu0 0.0
    %3188 = vmatpush1.msra.mxu0 0.0
    %3189 = vmatprep.subr.mxu0 0.0
    %3190 = vmatpush1.msra.mxu0 0.0
    %3191 = vmatprep.subr.mxu0 0.0
    %3192 = vmatpush1.msra.mxu0 0.0
    %3193 = vmatprep.mubr.f32.mxu0 0.0
    %3194 = vmatmul.mubr.f32.gmra.mrb[0].mxu0 %v3054
    %v3195 = vpop.f32.mrb[0].mxu0
    %v3196 = vadd.f32 0.0, %v3195
    %v3197 = vpop.f32.mrb[0].mxu0
    %3198 = vdwg.mxu0
    %v3199 = vadd.f32 %v3055, %v3125
    %v3200 = vxor.u32 %v3199, 2147483648
    %v3201 = vmul.f32 %v3200, 1.442695
    %v3202 = vpow.pop %v3201
    %v3203 = vadd.f32 %v3202, 1.0
    %v3204 = vrcp.pop %v3203
    %v3205 = vmul.f32 1.0, %v3204
    %v3206 = vadd.f32 %v3056, %v3127
    %v3207 = vxor.u32 %v3206, 2147483648
    %v3208 = vmul.f32 %v3207, 1.442695
    %v3209 = vpow.pop %v3208
    %v3210 = vadd.f32 %v3209, 1.0
    %v3211 = vrcp.pop %v3210
    %v3212 = vmul.f32 1.0, %v3211
    %v3213 = vadd.f32 %v3196, %v2505
    %v3214 = vmul.f32 %v3205, %v3213
    %v3215 = vadd.f32 %v3057, %v3214
    %v3216 = vtanh.pop %v3215
    %v3217 = vsub.f32 1.0, %v3212
    %v3218 = vmul.f32 %v3217, %v3216
    %v3219 = vmul.f32 %v3212, %v3054
    %v3220 = vadd.f32 %v3218, %v3219
    %v3221 = vld [vmem:[%s1316] sm:$0xff]
    %v3222 = vld [vmem:[%s1316 + $0x8] sm:$0xff]
    %v3223 = vld [vmem:[%s1316 + $0x10] sm:$0xff]
    %3224 = vmatprep.subr.mxu0 %v2513
    %3225 = vmatpush1.msra.mxu0 %v2512
    %3226 = vmatprep.subr.mxu0 %v2516
    %3227 = vmatpush1.msra.mxu0 %v2515
    %3228 = vmatprep.subr.mxu0 %v2519
    %3229 = vmatpush1.msra.mxu0 %v2518
    %3230 = vmatprep.subr.mxu0 %v2522
    %3231 = vmatpush1.msra.mxu0 %v2521
    %3232 = vmatprep.subr.mxu0 %v2525
    %3233 = vmatpush1.msra.mxu0 %v2524
    %3234 = vmatprep.subr.mxu0 %v2528
    %3235 = vmatpush1.msra.mxu0 %v2527
    %3236 = vmatprep.subr.mxu0 %v2531
    %3237 = vmatpush1.msra.mxu0 %v2530
    %3238 = vmatprep.subr.mxu0 %v2534
    %3239 = vmatpush1.msra.mxu0 %v2533
    %3240 = vmatprep.subr.mxu0 %v2537
    %3241 = vmatpush1.msra.mxu0 %v2536
    %3242 = vmatprep.subr.mxu0 %v2540
    %3243 = vmatpush1.msra.mxu0 %v2539
    %3244 = vmatprep.subr.mxu0 %v2543
    %3245 = vmatpush1.msra.mxu0 %v2542
    %3246 = vmatprep.subr.mxu0 %v2546
    %3247 = vmatpush1.msra.mxu0 %v2545
    %3248 = vmatprep.subr.mxu0 %v2549
    %3249 = vmatpush1.msra.mxu0 %v2548
    %3250 = vmatprep.subr.mxu0 %v2552
    %3251 = vmatpush1.msra.mxu0 %v2551
    %3252 = vmatprep.subr.mxu0 %v2555
    %3253 = vmatpush1.msra.mxu0 %v2554
    %3254 = vmatprep.subr.mxu0 %v2558
    %3255 = vmatpush1.msra.mxu0 %v2557
    %3256 = vmatprep.subr.mxu0 0.0
    %3257 = vmatpush1.msra.mxu0 0.0
    %3258 = vmatprep.subr.mxu0 0.0
    %3259 = vmatpush1.msra.mxu0 0.0
    %3260 = vmatprep.subr.mxu0 0.0
    %3261 = vmatpush1.msra.mxu0 0.0
    %3262 = vmatprep.subr.mxu0 0.0
    %3263 = vmatpush1.msra.mxu0 0.0
    %3264 = vmatprep.subr.mxu0 0.0
    %3265 = vmatpush1.msra.mxu0 0.0
    %3266 = vmatprep.subr.mxu0 0.0
    %3267 = vmatpush1.msra.mxu0 0.0
    %3268 = vmatprep.subr.mxu0 0.0
    %3269 = vmatpush1.msra.mxu0 0.0
    %3270 = vmatprep.subr.mxu0 0.0
    %3271 = vmatpush1.msra.mxu0 0.0
    %3272 = vmatprep.subr.mxu0 0.0
    %3273 = vmatpush1.msra.mxu0 0.0
    %3274 = vmatprep.subr.mxu0 0.0
    %3275 = vmatpush1.msra.mxu0 0.0
    %3276 = vmatprep.subr.mxu0 0.0
    %3277 = vmatpush1.msra.mxu0 0.0
    %3278 = vmatprep.subr.mxu0 0.0
    %3279 = vmatpush1.msra.mxu0 0.0
    %3280 = vmatprep.subr.mxu0 0.0
    %3281 = vmatpush1.msra.mxu0 0.0
    %3282 = vmatprep.subr.mxu0 0.0
    %3283 = vmatpush1.msra.mxu0 0.0
    %3284 = vmatprep.subr.mxu0 0.0
    %3285 = vmatpush1.msra.mxu0 0.0
    %3286 = vmatprep.subr.mxu0 0.0
    %3287 = vmatpush1.msra.mxu0 0.0
    %3288 = vmatprep.mubr.f32.mxu0 0.0
    %3289 = vmatmul.mubr.f32.gmra.mrb[0].mxu0 %v3220
    %v3290 = vpop.f32.mrb[0].mxu0
    %v3291 = vadd.f32 0.0, %v3290
    %v3292 = vpop.f32.mrb[0].mxu0
    %v3293 = vadd.f32 0.0, %v3292
    %3294 = vdwg.mxu0
    %3295 = vmatprep.subr.mxu0 0.0
    %3296 = vmatpush1.msra.mxu0 %v2514
    %3297 = vmatprep.subr.mxu0 0.0
    %3298 = vmatpush1.msra.mxu0 %v2517
    %3299 = vmatprep.subr.mxu0 0.0
    %3300 = vmatpush1.msra.mxu0 %v2520
    %3301 = vmatprep.subr.mxu0 0.0
    %3302 = vmatpush1.msra.mxu0 %v2523
    %3303 = vmatprep.subr.mxu0 0.0
    %3304 = vmatpush1.msra.mxu0 %v2526
    %3305 = vmatprep.subr.mxu0 0.0
    %3306 = vmatpush1.msra.mxu0 %v2529
    %3307 = vmatprep.subr.mxu0 0.0
    %3308 = vmatpush1.msra.mxu0 %v2532
    %3309 = vmatprep.subr.mxu0 0.0
    %3310 = vmatpush1.msra.mxu0 %v2535
    %3311 = vmatprep.subr.mxu0 0.0
    %3312 = vmatpush1.msra.mxu0 %v2538
    %3313 = vmatprep.subr.mxu0 0.0
    %3314 = vmatpush1.msra.mxu0 %v2541
    %3315 = vmatprep.subr.mxu0 0.0
    %3316 = vmatpush1.msra.mxu0 %v2544
    %3317 = vmatprep.subr.mxu0 0.0
    %3318 = vmatpush1.msra.mxu0 %v2547
    %3319 = vmatprep.subr.mxu0 0.0
    %3320 = vmatpush1.msra.mxu0 %v2550
    %3321 = vmatprep.subr.mxu0 0.0
    %3322 = vmatpush1.msra.mxu0 %v2553
    %3323 = vmatprep.subr.mxu0 0.0
    %3324 = vmatpush1.msra.mxu0 %v2556
    %3325 = vmatprep.subr.mxu0 0.0
    %3326 = vmatpush1.msra.mxu0 %v2559
    %3327 = vmatprep.subr.mxu0 0.0
    %3328 = vmatpush1.msra.mxu0 0.0
    %3329 = vmatprep.subr.mxu0 0.0
    %3330 = vmatpush1.msra.mxu0 0.0
    %3331 = vmatprep.subr.mxu0 0.0
    %3332 = vmatpush1.msra.mxu0 0.0
    %3333 = vmatprep.subr.mxu0 0.0
    %3334 = vmatpush1.msra.mxu0 0.0
    %3335 = vmatprep.subr.mxu0 0.0
    %3336 = vmatpush1.msra.mxu0 0.0
    %3337 = vmatprep.subr.mxu0 0.0
    %3338 = vmatpush1.msra.mxu0 0.0
    %3339 = vmatprep.subr.mxu0 0.0
    %3340 = vmatpush1.msra.mxu0 0.0
    %3341 = vmatprep.subr.mxu0 0.0
    %3342 = vmatpush1.msra.mxu0 0.0
    %3343 = vmatprep.subr.mxu0 0.0
    %3344 = vmatpush1.msra.mxu0 0.0
    %3345 = vmatprep.subr.mxu0 0.0
    %3346 = vmatpush1.msra.mxu0 0.0
    %3347 = vmatprep.subr.mxu0 0.0
    %3348 = vmatpush1.msra.mxu0 0.0
    %3349 = vmatprep.subr.mxu0 0.0
    %3350 = vmatpush1.msra.mxu0 0.0
    %3351 = vmatprep.subr.mxu0 0.0
    %3352 = vmatpush1.msra.mxu0 0.0
    %3353 = vmatprep.subr.mxu0 0.0
    %3354 = vmatpush1.msra.mxu0 0.0
    %3355 = vmatprep.subr.mxu0 0.0
    %3356 = vmatpush1.msra.mxu0 0.0
    %3357 = vmatprep.subr.mxu0 0.0
    %3358 = vmatpush1.msra.mxu0 0.0
    %3359 = vmatprep.mubr.f32.mxu0 0.0
    %3360 = vmatmul.mubr.f32.gmra.mrb[0].mxu0 %v3220
    %v3361 = vpop.f32.mrb[0].mxu0
    %v3362 = vadd.f32 0.0, %v3361
    %v3363 = vpop.f32.mrb[0].mxu0
    %3364 = vdwg.mxu0
    %v3365 = vadd.f32 %v3221, %v3291
    %v3366 = vxor.u32 %v3365, 2147483648
    %v3367 = vmul.f32 %v3366, 1.442695
    %v3368 = vpow.pop %v3367
    %v3369 = vadd.f32 %v3368, 1.0
    %v3370 = vrcp.pop %v3369
    %v3371 = vmul.f32 1.0, %v3370
    %v3372 = vadd.f32 %v3222, %v3293
    %v3373 = vxor.u32 %v3372, 2147483648
    %v3374 = vmul.f32 %v3373, 1.442695
    %v3375 = vpow.pop %v3374
    %v3376 = vadd.f32 %v3375, 1.0
    %v3377 = vrcp.pop %v3376
    %v3378 = vmul.f32 1.0, %v3377
    %v3379 = vadd.f32 %v3362, %v2505
    %v3380 = vmul.f32 %v3371, %v3379
    %v3381 = vadd.f32 %v3223, %v3380
    %v3382 = vtanh.pop %v3381
    %v3383 = vsub.f32 1.0, %v3378
    %v3384 = vmul.f32 %v3383, %v3382
    %v3385 = vmul.f32 %v3378, %v3220
    %v3386 = vadd.f32 %v3384, %v3385
    %v3387 = vld [vmem:[%s1533] sm:$0xff]
    %v3388 = vld [vmem:[%s1533 + $0x8] sm:$0xff]
    %v3389 = vld [vmem:[%s1533 + $0x10] sm:$0xff]
    %3390 = vmatprep.subr.mxu0 %v2513
    %3391 = vmatpush1.msra.mxu0 %v2512
    %3392 = vmatprep.subr.mxu0 %v2516
    %3393 = vmatpush1.msra.mxu0 %v2515
    %3394 = vmatprep.subr.mxu0 %v2519
    %3395 = vmatpush1.msra.mxu0 %v2518
    %3396 = vmatprep.subr.mxu0 %v2522
    %3397 = vmatpush1.msra.mxu0 %v2521
    %3398 = vmatprep.subr.mxu0 %v2525
    %3399 = vmatpush1.msra.mxu0 %v2524
    %3400 = vmatprep.subr.mxu0 %v2528
    %3401 = vmatpush1.msra.mxu0 %v2527
    %3402 = vmatprep.subr.mxu0 %v2531
    %3403 = vmatpush1.msra.mxu0 %v2530
    %3404 = vmatprep.subr.mxu0 %v2534
    %3405 = vmatpush1.msra.mxu0 %v2533
    %3406 = vmatprep.subr.mxu0 %v2537
    %3407 = vmatpush1.msra.mxu0 %v2536
    %3408 = vmatprep.subr.mxu0 %v2540
    %3409 = vmatpush1.msra.mxu0 %v2539
    %3410 = vmatprep.subr.mxu0 %v2543
    %3411 = vmatpush1.msra.mxu0 %v2542
    %3412 = vmatprep.subr.mxu0 %v2546
    %3413 = vmatpush1.msra.mxu0 %v2545
    %3414 = vmatprep.subr.mxu0 %v2549
    %3415 = vmatpush1.msra.mxu0 %v2548
    %3416 = vmatprep.subr.mxu0 %v2552
    %3417 = vmatpush1.msra.mxu0 %v2551
    %3418 = vmatprep.subr.mxu0 %v2555
    %3419 = vmatpush1.msra.mxu0 %v2554
    %3420 = vmatprep.subr.mxu0 %v2558
    %3421 = vmatpush1.msra.mxu0 %v2557
    %3422 = vmatprep.subr.mxu0 0.0
    %3423 = vmatpush1.msra.mxu0 0.0
    %3424 = vmatprep.subr.mxu0 0.0
    %3425 = vmatpush1.msra.mxu0 0.0
    %3426 = vmatprep.subr.mxu0 0.0
    %3427 = vmatpush1.msra.mxu0 0.0
    %3428 = vmatprep.subr.mxu0 0.0
    %3429 = vmatpush1.msra.mxu0 0.0
    %3430 = vmatprep.subr.mxu0 0.0
    %3431 = vmatpush1.msra.mxu0 0.0
    %3432 = vmatprep.subr.mxu0 0.0
    %3433 = vmatpush1.msra.mxu0 0.0
    %3434 = vmatprep.subr.mxu0 0.0
    %3435 = vmatpush1.msra.mxu0 0.0
    %3436 = vmatprep.subr.mxu0 0.0
    %3437 = vmatpush1.msra.mxu0 0.0
    %3438 = vmatprep.subr.mxu0 0.0
    %3439 = vmatpush1.msra.mxu0 0.0
    %3440 = vmatprep.subr.mxu0 0.0
    %3441 = vmatpush1.msra.mxu0 0.0
    %3442 = vmatprep.subr.mxu0 0.0
    %3443 = vmatpush1.msra.mxu0 0.0
    %3444 = vmatprep.subr.mxu0 0.0
    %3445 = vmatpush1.msra.mxu0 0.0
    %3446 = vmatprep.subr.mxu0 0.0
    %3447 = vmatpush1.msra.mxu0 0.0
    %3448 = vmatprep.subr.mxu0 0.0
    %3449 = vmatpush1.msra.mxu0 0.0
    %3450 = vmatprep.subr.mxu0 0.0
    %3451 = vmatpush1.msra.mxu0 0.0
    %3452 = vmatprep.subr.mxu0 0.0
    %3453 = vmatpush1.msra.mxu0 0.0
    %3454 = vmatprep.mubr.f32.mxu0 0.0
    %3455 = vmatmul.mubr.f32.gmra.mrb[0].mxu0 %v3386
    %v3456 = vpop.f32.mrb[0].mxu0
    %v3457 = vadd.f32 0.0, %v3456
    %v3458 = vpop.f32.mrb[0].mxu0
    %v3459 = vadd.f32 0.0, %v3458
    %3460 = vdwg.mxu0
    %3461 = vmatprep.subr.mxu0 0.0
    %3462 = vmatpush1.msra.mxu0 %v2514
    %3463 = vmatprep.subr.mxu0 0.0
    %3464 = vmatpush1.msra.mxu0 %v2517
    %3465 = vmatprep.subr.mxu0 0.0
    %3466 = vmatpush1.msra.mxu0 %v2520
    %3467 = vmatprep.subr.mxu0 0.0
    %3468 = vmatpush1.msra.mxu0 %v2523
    %3469 = vmatprep.subr.mxu0 0.0
    %3470 = vmatpush1.msra.mxu0 %v2526
    %3471 = vmatprep.subr.mxu0 0.0
    %3472 = vmatpush1.msra.mxu0 %v2529
    %3473 = vmatprep.subr.mxu0 0.0
    %3474 = vmatpush1.msra.mxu0 %v2532
    %3475 = vmatprep.subr.mxu0 0.0
    %3476 = vmatpush1.msra.mxu0 %v2535
    %3477 = vmatprep.subr.mxu0 0.0
    %3478 = vmatpush1.msra.mxu0 %v2538
    %3479 = vmatprep.subr.mxu0 0.0
    %3480 = vmatpush1.msra.mxu0 %v2541
    %3481 = vmatprep.subr.mxu0 0.0
    %3482 = vmatpush1.msra.mxu0 %v2544
    %3483 = vmatprep.subr.mxu0 0.0
    %3484 = vmatpush1.msra.mxu0 %v2547
    %3485 = vmatprep.subr.mxu0 0.0
    %3486 = vmatpush1.msra.mxu0 %v2550
    %3487 = vmatprep.subr.mxu0 0.0
    %3488 = vmatpush1.msra.mxu0 %v2553
    %3489 = vmatprep.subr.mxu0 0.0
    %3490 = vmatpush1.msra.mxu0 %v2556
    %3491 = vmatprep.subr.mxu0 0.0
    %3492 = vmatpush1.msra.mxu0 %v2559
    %3493 = vmatprep.subr.mxu0 0.0
    %3494 = vmatpush1.msra.mxu0 0.0
    %3495 = vmatprep.subr.mxu0 0.0
    %3496 = vmatpush1.msra.mxu0 0.0
    %3497 = vmatprep.subr.mxu0 0.0
    %3498 = vmatpush1.msra.mxu0 0.0
    %3499 = vmatprep.subr.mxu0 0.0
    %3500 = vmatpush1.msra.mxu0 0.0
    %3501 = vmatprep.subr.mxu0 0.0
    %3502 = vmatpush1.msra.mxu0 0.0
    %3503 = vmatprep.subr.mxu0 0.0
    %3504 = vmatpush1.msra.mxu0 0.0
    %3505 = vmatprep.subr.mxu0 0.0
    %3506 = vmatpush1.msra.mxu0 0.0
    %3507 = vmatprep.subr.mxu0 0.0
    %3508 = vmatpush1.msra.mxu0 0.0
    %3509 = vmatprep.subr.mxu0 0.0
    %3510 = vmatpush1.msra.mxu0 0.0
    %3511 = vmatprep.subr.mxu0 0.0
    %3512 = vmatpush1.msra.mxu0 0.0
    %3513 = vmatprep.subr.mxu0 0.0
    %3514 = vmatpush1.msra.mxu0 0.0
    %3515 = vmatprep.subr.mxu0 0.0
    %3516 = vmatpush1.msra.mxu0 0.0
    %3517 = vmatprep.subr.mxu0 0.0
    %3518 = vmatpush1.msra.mxu0 0.0
    %3519 = vmatprep.subr.mxu0 0.0
    %3520 = vmatpush1.msra.mxu0 0.0
    %3521 = vmatprep.subr.mxu0 0.0
    %3522 = vmatpush1.msra.mxu0 0.0
    %3523 = vmatprep.subr.mxu0 0.0
    %3524 = vmatpush1.msra.mxu0 0.0
    %3525 = vmatprep.mubr.f32.mxu0 0.0
    %3526 = vmatmul.mubr.f32.gmra.mrb[0].mxu0 %v3386
    %v3527 = vpop.f32.mrb[0].mxu0
    %v3528 = vadd.f32 0.0, %v3527
    %v3529 = vpop.f32.mrb[0].mxu0
    %3530 = vdwg.mxu0
    %v3531 = vadd.f32 %v3387, %v3457
    %v3532 = vxor.u32 %v3531, 2147483648
    %v3533 = vmul.f32 %v3532, 1.442695
    %v3534 = vpow.pop %v3533
    %v3535 = vadd.f32 %v3534, 1.0
    %v3536 = vrcp.pop %v3535
    %v3537 = vmul.f32 1.0, %v3536
    %v3538 = vadd.f32 %v3388, %v3459
    %v3539 = vxor.u32 %v3538, 2147483648
    %v3540 = vmul.f32 %v3539, 1.442695
    %v3541 = vpow.pop %v3540
    %v3542 = vadd.f32 %v3541, 1.0
    %v3543 = vrcp.pop %v3542
    %v3544 = vmul.f32 1.0, %v3543
    %v3545 = vadd.f32 %v3528, %v2505
    %v3546 = vmul.f32 %v3537, %v3545
    %v3547 = vadd.f32 %v3389, %v3546
    %v3548 = vtanh.pop %v3547
    %v3549 = vsub.f32 1.0, %v3544
    %v3550 = vmul.f32 %v3549, %v3548
    %v3551 = vmul.f32 %v3544, %v3386
    %v3552 = vadd.f32 %v3550, %v3551
    %v3553 = vld [vmem:[%s1750] sm:$0xff]
    %v3554 = vld [vmem:[%s1750 + $0x8] sm:$0xff]
    %v3555 = vld [vmem:[%s1750 + $0x10] sm:$0xff]
    %3556 = vmatprep.subr.mxu0 %v2513
    %3557 = vmatpush1.msra.mxu0 %v2512
    %3558 = vmatprep.subr.mxu0 %v2516
    %3559 = vmatpush1.msra.mxu0 %v2515
    %3560 = vmatprep.subr.mxu0 %v2519
    %3561 = vmatpush1.msra.mxu0 %v2518
    %3562 = vmatprep.subr.mxu0 %v2522
    %3563 = vmatpush1.msra.mxu0 %v2521
    %3564 = vmatprep.subr.mxu0 %v2525
    %3565 = vmatpush1.msra.mxu0 %v2524
    %3566 = vmatprep.subr.mxu0 %v2528
    %3567 = vmatpush1.msra.mxu0 %v2527
    %3568 = vmatprep.subr.mxu0 %v2531
    %3569 = vmatpush1.msra.mxu0 %v2530
    %3570 = vmatprep.subr.mxu0 %v2534
    %3571 = vmatpush1.msra.mxu0 %v2533
    %3572 = vmatprep.subr.mxu0 %v2537
    %3573 = vmatpush1.msra.mxu0 %v2536
    %3574 = vmatprep.subr.mxu0 %v2540
    %3575 = vmatpush1.msra.mxu0 %v2539
    %3576 = vmatprep.subr.mxu0 %v2543
    %3577 = vmatpush1.msra.mxu0 %v2542
    %3578 = vmatprep.subr.mxu0 %v2546
    %3579 = vmatpush1.msra.mxu0 %v2545
    %3580 = vmatprep.subr.mxu0 %v2549
    %3581 = vmatpush1.msra.mxu0 %v2548
    %3582 = vmatprep.subr.mxu0 %v2552
    %3583 = vmatpush1.msra.mxu0 %v2551
    %3584 = vmatprep.subr.mxu0 %v2555
    %3585 = vmatpush1.msra.mxu0 %v2554
    %3586 = vmatprep.subr.mxu0 %v2558
    %3587 = vmatpush1.msra.mxu0 %v2557
    %3588 = vmatprep.subr.mxu0 0.0
    %3589 = vmatpush1.msra.mxu0 0.0
    %3590 = vmatprep.subr.mxu0 0.0
    %3591 = vmatpush1.msra.mxu0 0.0
    %3592 = vmatprep.subr.mxu0 0.0
    %3593 = vmatpush1.msra.mxu0 0.0
    %3594 = vmatprep.subr.mxu0 0.0
    %3595 = vmatpush1.msra.mxu0 0.0
    %3596 = vmatprep.subr.mxu0 0.0
    %3597 = vmatpush1.msra.mxu0 0.0
    %3598 = vmatprep.subr.mxu0 0.0
    %3599 = vmatpush1.msra.mxu0 0.0
    %3600 = vmatprep.subr.mxu0 0.0
    %3601 = vmatpush1.msra.mxu0 0.0
    %3602 = vmatprep.subr.mxu0 0.0
    %3603 = vmatpush1.msra.mxu0 0.0
    %3604 = vmatprep.subr.mxu0 0.0
    %3605 = vmatpush1.msra.mxu0 0.0
    %3606 = vmatprep.subr.mxu0 0.0
    %3607 = vmatpush1.msra.mxu0 0.0
    %3608 = vmatprep.subr.mxu0 0.0
    %3609 = vmatpush1.msra.mxu0 0.0
    %3610 = vmatprep.subr.mxu0 0.0
    %3611 = vmatpush1.msra.mxu0 0.0
    %3612 = vmatprep.subr.mxu0 0.0
    %3613 = vmatpush1.msra.mxu0 0.0
    %3614 = vmatprep.subr.mxu0 0.0
    %3615 = vmatpush1.msra.mxu0 0.0
    %3616 = vmatprep.subr.mxu0 0.0
    %3617 = vmatpush1.msra.mxu0 0.0
    %3618 = vmatprep.subr.mxu0 0.0
    %3619 = vmatpush1.msra.mxu0 0.0
    %3620 = vmatprep.mubr.f32.mxu0 0.0
    %3621 = vmatmul.mubr.f32.gmra.mrb[0].mxu0 %v3552
    %v3622 = vpop.f32.mrb[0].mxu0
    %v3623 = vadd.f32 0.0, %v3622
    %v3624 = vpop.f32.mrb[0].mxu0
    %v3625 = vadd.f32 0.0, %v3624
    %3626 = vdwg.mxu0
    %3627 = vmatprep.subr.mxu0 0.0
    %3628 = vmatpush1.msra.mxu0 %v2514
    %3629 = vmatprep.subr.mxu0 0.0
    %3630 = vmatpush1.msra.mxu0 %v2517
    %3631 = vmatprep.subr.mxu0 0.0
    %3632 = vmatpush1.msra.mxu0 %v2520
    %3633 = vmatprep.subr.mxu0 0.0
    %3634 = vmatpush1.msra.mxu0 %v2523
    %3635 = vmatprep.subr.mxu0 0.0
    %3636 = vmatpush1.msra.mxu0 %v2526
    %3637 = vmatprep.subr.mxu0 0.0
    %3638 = vmatpush1.msra.mxu0 %v2529
    %3639 = vmatprep.subr.mxu0 0.0
    %3640 = vmatpush1.msra.mxu0 %v2532
    %3641 = vmatprep.subr.mxu0 0.0
    %3642 = vmatpush1.msra.mxu0 %v2535
    %3643 = vmatprep.subr.mxu0 0.0
    %3644 = vmatpush1.msra.mxu0 %v2538
    %3645 = vmatprep.subr.mxu0 0.0
    %3646 = vmatpush1.msra.mxu0 %v2541
    %3647 = vmatprep.subr.mxu0 0.0
    %3648 = vmatpush1.msra.mxu0 %v2544
    %3649 = vmatprep.subr.mxu0 0.0
    %3650 = vmatpush1.msra.mxu0 %v2547
    %3651 = vmatprep.subr.mxu0 0.0
    %3652 = vmatpush1.msra.mxu0 %v2550
    %3653 = vmatprep.subr.mxu0 0.0
    %3654 = vmatpush1.msra.mxu0 %v2553
    %3655 = vmatprep.subr.mxu0 0.0
    %3656 = vmatpush1.msra.mxu0 %v2556
    %3657 = vmatprep.subr.mxu0 0.0
    %3658 = vmatpush1.msra.mxu0 %v2559
    %3659 = vmatprep.subr.mxu0 0.0
    %3660 = vmatpush1.msra.mxu0 0.0
    %3661 = vmatprep.subr.mxu0 0.0
    %3662 = vmatpush1.msra.mxu0 0.0
    %3663 = vmatprep.subr.mxu0 0.0
    %3664 = vmatpush1.msra.mxu0 0.0
    %3665 = vmatprep.subr.mxu0 0.0
    %3666 = vmatpush1.msra.mxu0 0.0
    %3667 = vmatprep.subr.mxu0 0.0
    %3668 = vmatpush1.msra.mxu0 0.0
    %3669 = vmatprep.subr.mxu0 0.0
    %3670 = vmatpush1.msra.mxu0 0.0
    %3671 = vmatprep.subr.mxu0 0.0
    %3672 = vmatpush1.msra.mxu0 0.0
    %3673 = vmatprep.subr.mxu0 0.0
    %3674 = vmatpush1.msra.mxu0 0.0
    %3675 = vmatprep.subr.mxu0 0.0
    %3676 = vmatpush1.msra.mxu0 0.0
    %3677 = vmatprep.subr.mxu0 0.0
    %3678 = vmatpush1.msra.mxu0 0.0
    %3679 = vmatprep.subr.mxu0 0.0
    %3680 = vmatpush1.msra.mxu0 0.0
    %3681 = vmatprep.subr.mxu0 0.0
    %3682 = vmatpush1.msra.mxu0 0.0
    %3683 = vmatprep.subr.mxu0 0.0
    %3684 = vmatpush1.msra.mxu0 0.0
    %3685 = vmatprep.subr.mxu0 0.0
    %3686 = vmatpush1.msra.mxu0 0.0
    %3687 = vmatprep.subr.mxu0 0.0
    %3688 = vmatpush1.msra.mxu0 0.0
    %3689 = vmatprep.subr.mxu0 0.0
    %3690 = vmatpush1.msra.mxu0 0.0
    %3691 = vmatprep.mubr.f32.mxu0 0.0
    %3692 = vmatmul.mubr.f32.gmra.mrb[0].mxu0 %v3552
    %v3693 = vpop.f32.mrb[0].mxu0
    %v3694 = vadd.f32 0.0, %v3693
    %v3695 = vpop.f32.mrb[0].mxu0
    %3696 = vdwg.mxu0
    %v3697 = vadd.f32 %v3553, %v3623
    %v3698 = vxor.u32 %v3697, 2147483648
    %v3699 = vmul.f32 %v3698, 1.442695
    %v3700 = vpow.pop %v3699
    %v3701 = vadd.f32 %v3700, 1.0
    %v3702 = vrcp.pop %v3701
    %v3703 = vmul.f32 1.0, %v3702
    %v3704 = vadd.f32 %v3554, %v3625
    %v3705 = vxor.u32 %v3704, 2147483648
    %v3706 = vmul.f32 %v3705, 1.442695
    %v3707 = vpow.pop %v3706
    %v3708 = vadd.f32 %v3707, 1.0
    %v3709 = vrcp.pop %v3708
    %v3710 = vmul.f32 1.0, %v3709
    %v3711 = vadd.f32 %v3694, %v2505
    %v3712 = vmul.f32 %v3703, %v3711
    %v3713 = vadd.f32 %v3555, %v3712
    %v3714 = vtanh.pop %v3713
    %v3715 = vsub.f32 1.0, %v3710
    %v3716 = vmul.f32 %v3715, %v3714
    %v3717 = vmul.f32 %v3710, %v3552
    %v3718 = vadd.f32 %v3716, %v3717
    %v3719 = vld [vmem:[%s1967] sm:$0xff]
    %v3720 = vld [vmem:[%s1967 + $0x8] sm:$0xff]
    %v3721 = vld [vmem:[%s1967 + $0x10] sm:$0xff]
    %3722 = vmatprep.subr.mxu0 %v2513
    %3723 = vmatpush1.msra.mxu0 %v2512
    %3724 = vmatprep.subr.mxu0 %v2516
    %3725 = vmatpush1.msra.mxu0 %v2515
    %3726 = vmatprep.subr.mxu0 %v2519
    %3727 = vmatpush1.msra.mxu0 %v2518
    %3728 = vmatprep.subr.mxu0 %v2522
    %3729 = vmatpush1.msra.mxu0 %v2521
    %3730 = vmatprep.subr.mxu0 %v2525
    %3731 = vmatpush1.msra.mxu0 %v2524
    %3732 = vmatprep.subr.mxu0 %v2528
    %3733 = vmatpush1.msra.mxu0 %v2527
    %3734 = vmatprep.subr.mxu0 %v2531
    %3735 = vmatpush1.msra.mxu0 %v2530
    %3736 = vmatprep.subr.mxu0 %v2534
    %3737 = vmatpush1.msra.mxu0 %v2533
    %3738 = vmatprep.subr.mxu0 %v2537
    %3739 = vmatpush1.msra.mxu0 %v2536
    %3740 = vmatprep.subr.mxu0 %v2540
    %3741 = vmatpush1.msra.mxu0 %v2539
    %3742 = vmatprep.subr.mxu0 %v2543
    %3743 = vmatpush1.msra.mxu0 %v2542
    %3744 = vmatprep.subr.mxu0 %v2546
    %3745 = vmatpush1.msra.mxu0 %v2545
    %3746 = vmatprep.subr.mxu0 %v2549
    %3747 = vmatpush1.msra.mxu0 %v2548
    %3748 = vmatprep.subr.mxu0 %v2552
    %3749 = vmatpush1.msra.mxu0 %v2551
    %3750 = vmatprep.subr.mxu0 %v2555
    %3751 = vmatpush1.msra.mxu0 %v2554
    %3752 = vmatprep.subr.mxu0 %v2558
    %3753 = vmatpush1.msra.mxu0 %v2557
    %3754 = vmatprep.subr.mxu0 0.0
    %3755 = vmatpush1.msra.mxu0 0.0
    %3756 = vmatprep.subr.mxu0 0.0
    %3757 = vmatpush1.msra.mxu0 0.0
    %3758 = vmatprep.subr.mxu0 0.0
    %3759 = vmatpush1.msra.mxu0 0.0
    %3760 = vmatprep.subr.mxu0 0.0
    %3761 = vmatpush1.msra.mxu0 0.0
    %3762 = vmatprep.subr.mxu0 0.0
    %3763 = vmatpush1.msra.mxu0 0.0
    %3764 = vmatprep.subr.mxu0 0.0
    %3765 = vmatpush1.msra.mxu0 0.0
    %3766 = vmatprep.subr.mxu0 0.0
    %3767 = vmatpush1.msra.mxu0 0.0
    %3768 = vmatprep.subr.mxu0 0.0
    %3769 = vmatpush1.msra.mxu0 0.0
    %3770 = vmatprep.subr.mxu0 0.0
    %3771 = vmatpush1.msra.mxu0 0.0
    %3772 = vmatprep.subr.mxu0 0.0
    %3773 = vmatpush1.msra.mxu0 0.0
    %3774 = vmatprep.subr.mxu0 0.0
    %3775 = vmatpush1.msra.mxu0 0.0
    %3776 = vmatprep.subr.mxu0 0.0
    %3777 = vmatpush1.msra.mxu0 0.0
    %3778 = vmatprep.subr.mxu0 0.0
    %3779 = vmatpush1.msra.mxu0 0.0
    %3780 = vmatprep.subr.mxu0 0.0
    %3781 = vmatpush1.msra.mxu0 0.0
    %3782 = vmatprep.subr.mxu0 0.0
    %3783 = vmatpush1.msra.mxu0 0.0
    %3784 = vmatprep.subr.mxu0 0.0
    %3785 = vmatpush1.msra.mxu0 0.0
    %3786 = vmatprep.mubr.f32.mxu0 0.0
    %3787 = vmatmul.mubr.f32.gmra.mrb[0].mxu0 %v3718
    %v3788 = vpop.f32.mrb[0].mxu0
    %v3789 = vadd.f32 0.0, %v3788
    %v3790 = vpop.f32.mrb[0].mxu0
    %v3791 = vadd.f32 0.0, %v3790
    %3792 = vdwg.mxu0
    %3793 = vmatprep.subr.mxu0 0.0
    %3794 = vmatpush1.msra.mxu0 %v2514
    %3795 = vmatprep.subr.mxu0 0.0
    %3796 = vmatpush1.msra.mxu0 %v2517
    %3797 = vmatprep.subr.mxu0 0.0
    %3798 = vmatpush1.msra.mxu0 %v2520
    %3799 = vmatprep.subr.mxu0 0.0
    %3800 = vmatpush1.msra.mxu0 %v2523
    %3801 = vmatprep.subr.mxu0 0.0
    %3802 = vmatpush1.msra.mxu0 %v2526
    %3803 = vmatprep.subr.mxu0 0.0
    %3804 = vmatpush1.msra.mxu0 %v2529
    %3805 = vmatprep.subr.mxu0 0.0
    %3806 = vmatpush1.msra.mxu0 %v2532
    %3807 = vmatprep.subr.mxu0 0.0
    %3808 = vmatpush1.msra.mxu0 %v2535
    %3809 = vmatprep.subr.mxu0 0.0
    %3810 = vmatpush1.msra.mxu0 %v2538
    %3811 = vmatprep.subr.mxu0 0.0
    %3812 = vmatpush1.msra.mxu0 %v2541
    %3813 = vmatprep.subr.mxu0 0.0
    %3814 = vmatpush1.msra.mxu0 %v2544
    %3815 = vmatprep.subr.mxu0 0.0
    %3816 = vmatpush1.msra.mxu0 %v2547
    %3817 = vmatprep.subr.mxu0 0.0
    %3818 = vmatpush1.msra.mxu0 %v2550
    %3819 = vmatprep.subr.mxu0 0.0
    %3820 = vmatpush1.msra.mxu0 %v2553
    %3821 = vmatprep.subr.mxu0 0.0
    %3822 = vmatpush1.msra.mxu0 %v2556
    %3823 = vmatprep.subr.mxu0 0.0
    %3824 = vmatpush1.msra.mxu0 %v2559
    %3825 = vmatprep.subr.mxu0 0.0
    %3826 = vmatpush1.msra.mxu0 0.0
    %3827 = vmatprep.subr.mxu0 0.0
    %3828 = vmatpush1.msra.mxu0 0.0
    %3829 = vmatprep.subr.mxu0 0.0
    %3830 = vmatpush1.msra.mxu0 0.0
    %3831 = vmatprep.subr.mxu0 0.0
    %3832 = vmatpush1.msra.mxu0 0.0
    %3833 = vmatprep.subr.mxu0 0.0
    %3834 = vmatpush1.msra.mxu0 0.0
    %3835 = vmatprep.subr.mxu0 0.0
    %3836 = vmatpush1.msra.mxu0 0.0
    %3837 = vmatprep.subr.mxu0 0.0
    %3838 = vmatpush1.msra.mxu0 0.0
    %3839 = vmatprep.subr.mxu0 0.0
    %3840 = vmatpush1.msra.mxu0 0.0
    %3841 = vmatprep.subr.mxu0 0.0
    %3842 = vmatpush1.msra.mxu0 0.0
    %3843 = vmatprep.subr.mxu0 0.0
    %3844 = vmatpush1.msra.mxu0 0.0
    %3845 = vmatprep.subr.mxu0 0.0
    %3846 = vmatpush1.msra.mxu0 0.0
    %3847 = vmatprep.subr.mxu0 0.0
    %3848 = vmatpush1.msra.mxu0 0.0
    %3849 = vmatprep.subr.mxu0 0.0
    %3850 = vmatpush1.msra.mxu0 0.0
    %3851 = vmatprep.subr.mxu0 0.0
    %3852 = vmatpush1.msra.mxu0 0.0
    %3853 = vmatprep.subr.mxu0 0.0
    %3854 = vmatpush1.msra.mxu0 0.0
    %3855 = vmatprep.subr.mxu0 0.0
    %3856 = vmatpush1.msra.mxu0 0.0
    %3857 = vmatprep.mubr.f32.mxu0 0.0
    %3858 = vmatmul.mubr.f32.gmra.mrb[0].mxu0 %v3718
    %v3859 = vpop.f32.mrb[0].mxu0
    %v3860 = vadd.f32 0.0, %v3859
    %v3861 = vpop.f32.mrb[0].mxu0
    %3862 = vdwg.mxu0
    %v3863 = vadd.f32 %v3719, %v3789
    %v3864 = vxor.u32 %v3863, 2147483648
    %v3865 = vmul.f32 %v3864, 1.442695
    %v3866 = vpow.pop %v3865
    %v3867 = vadd.f32 %v3866, 1.0
    %v3868 = vrcp.pop %v3867
    %v3869 = vmul.f32 1.0, %v3868
    %v3870 = vadd.f32 %v3720, %v3791
    %v3871 = vxor.u32 %v3870, 2147483648
    %v3872 = vmul.f32 %v3871, 1.442695
    %v3873 = vpow.pop %v3872
    %v3874 = vadd.f32 %v3873, 1.0
    %v3875 = vrcp.pop %v3874
    %v3876 = vmul.f32 1.0, %v3875
    %v3877 = vadd.f32 %v3860, %v2505
    %v3878 = vmul.f32 %v3869, %v3877
    %v3879 = vadd.f32 %v3721, %v3878
    %v3880 = vtanh.pop %v3879
    %v3881 = vsub.f32 1.0, %v3876
    %v3882 = vmul.f32 %v3881, %v3880
    %v3883 = vmul.f32 %v3876, %v3718
    %v3884 = vadd.f32 %v3882, %v3883
    %3885 = vst [vmem:[%s2507] sm:$0xff] %v3884
    // Predicated region
    $region74: #{tpu_custom_call.1} parent=1 // pred_check
      %p3886 = pneg %p121
    $region75: #{tpu_custom_call.1} parent=1 // pred_check_branch
      %3888 = sbr.rel (%p3886) target = $region77
    $region76: #{tpu_custom_call.1} parent=1 // pred_region
      %v3889 = vld [vmem:[%s2507] sm:$0xff]
      %v3890 = vld [vmem:[#allocation14] sm:$0xff]
      %v3891 = vld [vmem:[#allocation14 + $0x8] sm:$0xff]
      %v3892 = vld [vmem:[#allocation14 + $0x10] sm:$0xff]
      %v3893 = vld [vmem:[#allocation14 + $0x18] sm:$0xff]
      %v3894 = vld [vmem:[#allocation14 + $0x20] sm:$0xff]
      %v3895 = vld [vmem:[#allocation14 + $0x28] sm:$0xff]
      %v3896 = vld [vmem:[#allocation14 + $0x30] sm:$0xff]
      %v3897 = vld [vmem:[#allocation14 + $0x38] sm:$0xff]
      %v3898 = vld [vmem:[#allocation14 + $0x40] sm:$0xff]
      %v3899 = vld [vmem:[#allocation14 + $0x48] sm:$0xff]
      %v3900 = vld [vmem:[#allocation14 + $0x50] sm:$0xff]
      %v3901 = vld [vmem:[#allocation14 + $0x58] sm:$0xff]
      %v3902 = vld [vmem:[#allocation14 + $0x60] sm:$0xff]
      %v3903 = vld [vmem:[#allocation14 + $0x68] sm:$0xff]
      %v3904 = vld [vmem:[#allocation14 + $0x70] sm:$0xff]
      %v3905 = vld [vmem:[#allocation14 + $0x78] sm:$0xff]
      %v3906 = vld [vmem:[%s10] sm:$0x1]
      %v3908 = vlaneseq
      %v3909 = vshrl.u32 %v3908, 7
      %v3910 = vsub.s32 0, %v3909
      %v3911 = vrot.slane %v3906, %v3910
      %3913 = vmatprep.subr.mxu0 0.0
      %3914 = vmatpush1.msra.mxu0 %v3890
      %3915 = vmatprep.subr.mxu0 0.0
      %3916 = vmatpush1.msra.mxu0 %v3891
      %3917 = vmatprep.subr.mxu0 0.0
      %3918 = vmatpush1.msra.mxu0 %v3892
      %3919 = vmatprep.subr.mxu0 0.0
      %3920 = vmatpush1.msra.mxu0 %v3893
      %3921 = vmatprep.subr.mxu0 0.0
      %3922 = vmatpush1.msra.mxu0 %v3894
      %3923 = vmatprep.subr.mxu0 0.0
      %3924 = vmatpush1.msra.mxu0 %v3895
      %3925 = vmatprep.subr.mxu0 0.0
      %3926 = vmatpush1.msra.mxu0 %v3896
      %3927 = vmatprep.subr.mxu0 0.0
      %3928 = vmatpush1.msra.mxu0 %v3897
      %3929 = vmatprep.subr.mxu0 0.0
      %3930 = vmatpush1.msra.mxu0 %v3898
      %3931 = vmatprep.subr.mxu0 0.0
      %3932 = vmatpush1.msra.mxu0 %v3899
      %3933 = vmatprep.subr.mxu0 0.0
      %3934 = vmatpush1.msra.mxu0 %v3900
      %3935 = vmatprep.subr.mxu0 0.0
      %3936 = vmatpush1.msra.mxu0 %v3901
      %3937 = vmatprep.subr.mxu0 0.0
      %3938 = vmatpush1.msra.mxu0 %v3902
      %3939 = vmatprep.subr.mxu0 0.0
      %3940 = vmatpush1.msra.mxu0 %v3903
      %3941 = vmatprep.subr.mxu0 0.0
      %3942 = vmatpush1.msra.mxu0 %v3904
      %3943 = vmatprep.subr.mxu0 0.0
      %3944 = vmatpush1.msra.mxu0 %v3905
      %3945 = vmatprep.subr.mxu0 0.0
      %3946 = vmatpush1.msra.mxu0 0.0
      %3947 = vmatprep.subr.mxu0 0.0
      %3948 = vmatpush1.msra.mxu0 0.0
      %3949 = vmatprep.subr.mxu0 0.0
      %3950 = vmatpush1.msra.mxu0 0.0
      %3951 = vmatprep.subr.mxu0 0.0
      %3952 = vmatpush1.msra.mxu0 0.0
      %3953 = vmatprep.subr.mxu0 0.0
      %3954 = vmatpush1.msra.mxu0 0.0
      %3955 = vmatprep.subr.mxu0 0.0
      %3956 = vmatpush1.msra.mxu0 0.0
      %3957 = vmatprep.subr.mxu0 0.0
      %3958 = vmatpush1.msra.mxu0 0.0
      %3959 = vmatprep.subr.mxu0 0.0
      %3960 = vmatpush1.msra.mxu0 0.0
      %3961 = vmatprep.subr.mxu0 0.0
      %3962 = vmatpush1.msra.mxu0 0.0
      %3963 = vmatprep.subr.mxu0 0.0
      %3964 = vmatpush1.msra.mxu0 0.0
      %3965 = vmatprep.subr.mxu0 0.0
      %3966 = vmatpush1.msra.mxu0 0.0
      %3967 = vmatprep.subr.mxu0 0.0
      %3968 = vmatpush1.msra.mxu0 0.0
      %3969 = vmatprep.subr.mxu0 0.0
      %3970 = vmatpush1.msra.mxu0 0.0
      %3971 = vmatprep.subr.mxu0 0.0
      %3972 = vmatpush1.msra.mxu0 0.0
      %3973 = vmatprep.subr.mxu0 0.0
      %3974 = vmatpush1.msra.mxu0 0.0
      %3975 = vmatprep.subr.mxu0 0.0
      %3976 = vmatpush1.msra.mxu0 0.0
      %3977 = vmatprep.mubr.f32.mxu0 0.0
      %3978 = vmatmul.mubr.f32.gmra.mrb[0].mxu0 %v3889
      %v3979 = vpop.f32.mrb[0].mxu0
      %v3980 = vadd.f32 %v3911, %v3979
      %v3981 = vpop.f32.mrb[0].mxu0
      %3982 = vdwg.mxu0
      %3983 = vst [vmem:[#allocation16] sm:$0xff] %v3980
    $region77: #{tpu_custom_call.1} parent=1 // pred_fallthru
      _
    // Predicated region
    $region78: #{tpu_custom_call.1} parent=1 // pred_check
      _
    $region79: #{tpu_custom_call.1} parent=1 // pred_check_branch
      %3985 = sbr.rel (0) target = $region81
    $region80: #{tpu_custom_call.1} parent=1 // pred_region
      %s3987 = ssub.s32 128, 128
      %3988 = vsyncadd [#allocation7], %s3987
      %s3990 = sshll.u32 [#allocation16], 4
      %s3991 = int_to_ptr.vmem [resolvable:$true] %s3990
      %3993 = dma.vmem_to_hbm [thread:$0]  %s3991, 128, %s11, [#allocation7]
    $region81: #{tpu_custom_call.1} parent=1 // pred_fallthru
      _
    // Predicated region
    $region82: #{tpu_custom_call.1} parent=1 // pred_check
      _
    $region83: #{tpu_custom_call.1} parent=1 // pred_check_branch
      %3995 = sbr.rel (0) target = $region85
    $region84: #{tpu_custom_call.1} parent=1 // pred_region
      %3996 = dma.done [#allocation7], 128
    $region85: #{tpu_custom_call.1} parent=1 // pred_fallthru
      _
    %3997 = vsyncpa [#allocation6], 1
    %3998 = vsyncpa [#allocation9], 1
    %3999 = vsyncpa [#allocation12], 1
    %4000 = vsyncpa [#allocation15], 1
    %4001 = vsyncpa [#allocation7], 1

</llo_original>
